<compile_context>
chip_gen: v6e
topology: v6e:2x2x1
jax: 0.10.0
libtpu: 0.0.40
codegen_flags: <defaults>
</compile_context>

<pallas_src>
import functools

import jax
import jax.numpy as jnp
import numpy as np
from jax.experimental import pallas as pl
from jax.experimental.pallas import tpu as pltpu


# ----------------------------------------------------------------------------
# Fused Pallas kernel: the entire DRNetwork forward for one node batch.
# ----------------------------------------------------------------------------
def _dr_fused_kernel(x_ref, bcol_ref, brow_ref,
                     w1T_ref, b1_ref,
                     wgT_ref, bg_ref,
                     wm1T_ref, bm1_ref, wm2T_ref, bm2_ref, wm3T_ref, bm3_ref,
                     emb_ref, mask_ref, *, k, hid):
    f32 = jnp.float32
    big = f32(1e30)

    # ---- 1. self.linear:  h = x @ W1^T + b1 ---------------------------------
    h = jnp.dot(x_ref[...], w1T_ref[...], preferred_element_type=f32) + b1_ref[...]
    n = h.shape[0]

    # ---- 2. knn_graph: pairwise squared distances, masked -------------------
    sq = jnp.sum(h * h, axis=-1, keepdims=True)                        # [N,1]
    dist = sq + sq.T - 2.0 * jnp.dot(h, h.T, preferred_element_type=f32)
    dist = jnp.maximum(dist, 0.0)        # kill tiny negative rounding; keeps the
                                         # non-negative-float bit-order trick valid
    # batch arrives pre-shaped [N,1] / [1,N] -> no in-kernel i32 transpose.
    same_graph = bcol_ref[...] == brow_ref[...]                        # [N,N]
    row = jax.lax.broadcasted_iota(jnp.int32, (n, n), 0)
    col = jax.lax.broadcasted_iota(jnp.int32, (n, n), 1)
    diag = row == col
    dist = jnp.where(same_graph & (~diag), dist, big)

    # ---- 3. in-kernel top-k with a fused (value, column) key ----------------
    # One XLU min-reduce per sweep.  Assumes every graph has >= k+1 nodes and
    # N < 2^23 (column index fits in the cleared mantissa bits).  Near-exact
    # distance ties (within 2^-(23-log2 N) relative) may pick a different
    # neighbour than an exact top-k; the returned mask is authoritative.
    nbits = max(1, (n - 1).bit_length())
    high_mask = jnp.int32(-(1 << nbits))
    keys = (pltpu.bitcast(dist, jnp.int32) & high_mask) | col          # [N,N] i32
    taken = jnp.int32(0x7F000000)        # > any real distance key
    adj = diag                           # GATConv add_self_loops=True
    for _ in range(k):                   # k is static -> unrolled
        mn = jnp.min(keys, axis=-1, keepdims=True)                     # [N,1]
        sel = keys == mn                 # keys unique per row -> one True / row
        adj = adj | sel                  # edge: source j -> target i
        keys = jnp.where(sel, taken, keys)

    # ---- 4. GATConv (single head, negative_slope=0.2, dropout=0) ------------
    # wgT_ref = [wgT | wgT@att_dst | wgT@att_src]: one matmul yields hp plus
    # both attention projections (replaces 2 broadcast matmuls).
    hp_aug = jnp.dot(h, wgT_ref[...], preferred_element_type=f32)      # [N,hid+2]
    hp = hp_aug[:, :hid]
    a_dst = hp_aug[:, hid:hid + 1]                                     # [N,1]
    a_src = hp_aug[:, hid + 1:hid + 2]                                 # [N,1]
    e = a_dst + a_src.T                  # e[i,j] = a_dst[i] + a_src[j]
    e = jnp.where(e > 0, e, 0.2 * e)                                   # LeakyReLU
    e = jnp.where(adj, e, f32(-1e30))
    m = jnp.max(e, axis=-1, keepdims=True)
    p = jnp.where(adj, jnp.exp(e - m), 0.0)
    denom = jnp.sum(p, axis=-1, keepdims=True)   # >= 1 term (self loop) -> > 0
    # Normalize AFTER the aggregation matmul (EUP approx reciprocal).
    g = (jnp.dot(p, hp, preferred_element_type=f32)
         * pl.reciprocal(denom, approx=True) + bg_ref[...])

    # ---- 5. embedding_dnn: Linear -> ReLU -> Linear -> ReLU -> Linear -------
    h1 = jnp.maximum(jnp.dot(g, wm1T_ref[...], preferred_element_type=f32)
                     + bm1_ref[...], 0.0)
    h2 = jnp.maximum(jnp.dot(h1, wm2T_ref[...], preferred_element_type=f32)
                     + bm2_ref[...], 0.0)
    # wm3T/bm3 are zero-padded to 128 output lanes in the wrapper -> unmasked
    # lane-dense stores; wrapper slices back to out_dim.
    emb_ref[...] = (jnp.dot(h2, wm3T_ref[...], preferred_element_type=f32)
                    + bm3_ref[...])
    mask_ref[...] = adj.astype(jnp.int8)         # int8: 4x less writeback


# ----------------------------------------------------------------------------
# Wrapper
# ----------------------------------------------------------------------------
_VMEM = pl.BlockSpec(memory_space=pltpu.MemorySpace.VMEM)


def dr_network_forward(params, x, batch, pairs_indices, pairs_labels, k):
    """Pallas implementation of DRNetwork.forward (single fused kernel)."""
    n = x.shape[0]
    hid = params["w1T"].shape[1]
    out_dim = params["wm3T"].shape[1]
    out_pad = -(-out_dim // 128) * 128           # lane-dense output width

    # Fold att_src / att_dst into the GAT weight (tiny wrapper-side matmuls).
    c_dst = params["wgT"] @ params["att_dst"]
    c_src = params["wgT"] @ params["att_src"]
    wgT_aug = jnp.concatenate(
        [params["wgT"], c_dst[:, None], c_src[:, None]], axis=1)       # [hid,hid+2]
    wm3T_pad = jnp.pad(params["wm3T"], ((0, 0), (0, out_pad - out_dim)))
    bm3_pad = jnp.pad(params["bm3"], (0, out_pad - out_dim)).reshape(1, -1)

    b_i32 = batch.astype(jnp.int32)

    emb_pad, mask = pl.pallas_call(
        functools.partial(_dr_fused_kernel, k=k, hid=hid),
        out_shape=(jax.ShapeDtypeStruct((n, out_pad), jnp.float32),
                   jax.ShapeDtypeStruct((n, n), jnp.int8)),
        in_specs=[_VMEM] * 13,
        out_specs=(_VMEM, _VMEM),
    )(x,
      b_i32.reshape(n, 1), b_i32.reshape(1, n),
      params["w1T"], params["b1"].reshape(1, hid),
      wgT_aug, params["bg"].reshape(1, hid),
      params["wm1T"], params["bm1"].reshape(1, -1),
      params["wm2T"], params["bm2"].reshape(1, -1),
      wm3T_pad, bm3_pad)

    emb = emb_pad[:, :out_dim]

    if pairs_indices.shape[0] > 0:
        # NOTE: the torch forward computes ptr/offsets/adjusted indices but
        # never uses them for the returned value -> dead code, omitted here.
        # TODO(synk): pair row gather kept as jnp indexing (XLA gather) — at
        # P=8 there is no payoff to pulling it into the kernel.
        first = emb[pairs_indices[:, 0]]
        second = emb[pairs_indices[:, 1]]
        pair_embeddings = jnp.stack([first, second], axis=0)           # [2,P,out]
        return pair_embeddings, pairs_labels, mask
    else:
        return (jnp.zeros((2, 0, out_dim), emb.dtype),
                jnp.zeros((0,), jnp.float32), mask)


# ----------------------------------------------------------------------------
# Pure-JAX reference (uses the kernel's kNN mask to avoid top-k tie ambiguity)
# ----------------------------------------------------------------------------
def reference_forward(params, x, mask, pairs_indices):
    with jax.default_matmul_precision("highest"):
        h = x @ params["w1T"] + params["b1"]
        hp = h @ params["wgT"]
        a_src = jnp.sum(hp * params["att_src"], axis=-1, keepdims=True)
        a_dst = jnp.sum(hp * params["att_dst"], axis=-1, keepdims=True)
        e = a_dst + a_src.T
        e = jnp.where(e > 0, e, 0.2 * e)
        m = mask > 0
        e = jnp.where(m, e, -1e30)
        e = e - jnp.max(e, axis=-1, keepdims=True)
        p = jnp.where(m, jnp.exp(e), 0.0)
        alpha = p / jnp.sum(p, axis=-1, keepdims=True)
        g = alpha @ hp + params["bg"]
        h1 = jnp.maximum(g @ params["wm1T"] + params["bm1"], 0.0)
        h2 = jnp.maximum(h1 @ params["wm2T"] + params["bm2"], 0.0)
        emb = h2 @ params["wm3T"] + params["bm3"]
        return jnp.stack([emb[pairs_indices[:, 0]], emb[pairs_indices[:, 1]]], 0)


# ----------------------------------------------------------------------------
# Main
# ----------------------------------------------------------------------------
def _uniform(key, shape, fan_in):
    bound = 1.0 / np.sqrt(fan_in)
    return jax.random.uniform(key, shape, jnp.float32, -bound, bound)


if __name__ == "__main__":
    D_IN, HID, OUT, K = 8, 32, 16, 4
    N_PER_GRAPH, NUM_GRAPHS = 32, 4          # N = 128: lane-dense node axis
    N = N_PER_GRAPH * NUM_GRAPHS

    key = jax.random.PRNGKey(0)
    ks = jax.random.split(key, 16)

    params = {
        # nn.Linear(input_dim, hidden_dim)
        "w1T": _uniform(ks[0], (D_IN, HID), D_IN),
        "b1": _uniform(ks[1], (HID,), D_IN),
        # GATConv(hidden_dim, hidden_dim): lin (no bias), att_src, att_dst, bias
        "wgT": _uniform(ks[2], (HID, HID), HID),
        "att_src": _uniform(ks[3], (HID,), HID),
        "att_dst": _uniform(ks[4], (HID,), HID),
        "bg": jnp.zeros((HID,), jnp.float32),
        # embedding_dnn
        "wm1T": _uniform(ks[5], (HID, 4 * HID), HID),
        "bm1": _uniform(ks[6], (4 * HID,), HID),
        "wm2T": _uniform(ks[7], (4 * HID, 2 * HID), 4 * HID),
        "bm2": _uniform(ks[8], (2 * HID,), 4 * HID),
        "wm3T": _uniform(ks[9], (2 * HID, OUT), 2 * HID),
        "bm3": _uniform(ks[10], (OUT,), 2 * HID),
    }

    x = jax.random.normal(ks[11], (N, D_IN), jnp.float32)
    batch = jnp.repeat(jnp.arange(NUM_GRAPHS, dtype=jnp.int32), N_PER_GRAPH)
    pairs_indices = jnp.array(
        [[0, 5], [3, 10], [12, 7], [32, 40], [33, 60], [50, 35],
         [70, 90], [100, 127]], jnp.int32)
    pairs_labels = jnp.array([1., 0., 1., 0., 1., 0., 1., 0.], jnp.float32)

    fwd = jax.jit(dr_network_forward, static_argnames=("k",))
    pair_emb, labels, mask = fwd(params, x, batch, pairs_indices,
                                 pairs_labels, k=K)
    pair_emb = jax.block_until_ready(pair_emb)
    labels = jax.block_until_ready(labels)
    mask = jax.block_until_ready(mask)

    assert pair_emb.shape == (2, pairs_indices.shape[0], OUT)
    assert labels.shape == (pairs_indices.shape[0],)

    # Structural checks on the in-kernel kNN mask: exactly k neighbours + self
    # per row, self loops present, no cross-graph edges.
    mask_np = np.asarray(mask)
    batch_np = np.asarray(batch)
    assert np.all(mask_np.sum(-1) == K + 1)
    assert np.all(np.diag(mask_np) == 1)
    assert not np.any((mask_np > 0) & (batch_np[:, None] != batch_np[None, :]))

    ref = jax.block_until_ready(
        reference_forward(params, x, mask, pairs_indices))
    np.testing.assert_allclose(np.asarray(pair_emb), np.asarray(ref),
                               rtol=5e-3, atol=5e-3)

    print("KERNEL_OK")
</pallas_src>

<mosaic_0001>
module attributes {stable_mosaic.version = 11 : i64} {
  func.func @_dr_fused_kernel(%arg0: memref<128x8xf32, #tpu.memory_space<vmem>>, %arg1: memref<128x1xi32, #tpu.memory_space<vmem>>, %arg2: memref<1x128xi32, #tpu.memory_space<vmem>>, %arg3: memref<8x32xf32, #tpu.memory_space<vmem>>, %arg4: memref<1x32xf32, #tpu.memory_space<vmem>>, %arg5: memref<32x34xf32, #tpu.memory_space<vmem>>, %arg6: memref<1x32xf32, #tpu.memory_space<vmem>>, %arg7: memref<32x128xf32, #tpu.memory_space<vmem>>, %arg8: memref<1x128xf32, #tpu.memory_space<vmem>>, %arg9: memref<128x64xf32, #tpu.memory_space<vmem>>, %arg10: memref<1x64xf32, #tpu.memory_space<vmem>>, %arg11: memref<64x128xf32, #tpu.memory_space<vmem>>, %arg12: memref<1x128xf32, #tpu.memory_space<vmem>>, %arg13: memref<128x128xf32, #tpu.memory_space<vmem>>, %arg14: memref<128x128xi8, #tpu.memory_space<vmem>>) attributes {dimension_semantics = [], scalar_prefetch = 0 : i64, scratch_operands = 0 : i64, tpu.core_type = #tpu.core_type<tc>} {
    %c0 = arith.constant 0 : index
    %c0_0 = arith.constant 0 : index
    %0 = vector.load %arg0[%c0, %c0_0] : memref<128x8xf32, #tpu.memory_space<vmem>>, vector<128x8xf32>
    %c0_1 = arith.constant 0 : index
    %c0_2 = arith.constant 0 : index
    %1 = vector.load %arg3[%c0_1, %c0_2] : memref<8x32xf32, #tpu.memory_space<vmem>>, vector<8x32xf32>
    %cst = arith.constant dense<0.000000e+00> : vector<128x32xf32>
    %2 = tpu.matmul %0, %1, %cst {dimension_numbers = #tpu.dot_dimension_numbers<[1], [0], [0], [1], [0, 0, 1, 1], [], []>} : vector<128x8xf32>, vector<8x32xf32>, vector<128x32xf32> -> vector<128x32xf32>
    %c0_3 = arith.constant 0 : index
    %c0_4 = arith.constant 0 : index
    %3 = vector.load %arg4[%c0_3, %c0_4] : memref<1x32xf32, #tpu.memory_space<vmem>>, vector<1x32xf32>
    %4 = vector.broadcast %3 : vector<1x32xf32> to vector<128x32xf32>
    %5 = arith.addf %2, %4 : vector<128x32xf32>
    %6 = arith.mulf %5, %5 : vector<128x32xf32>
    %cst_5 = arith.constant dense<0.000000e+00> : vector<128xf32>
    %7 = vector.multi_reduction <add>, %6, %cst_5 [1] : vector<128x32xf32> to vector<128xf32>
    %8 = vector.shape_cast %7 : vector<128xf32> to vector<128x1xf32>
    %9 = tpu.transpose %8, [1, 0] : vector<128x1xf32> -> vector<1x128xf32>
    %10 = vector.broadcast %8 : vector<128x1xf32> to vector<128x128xf32>
    %11 = vector.broadcast %9 : vector<1x128xf32> to vector<128x128xf32>
    %12 = arith.addf %10, %11 : vector<128x128xf32>
    %13 = tpu.transpose %5, [1, 0] : vector<128x32xf32> -> vector<32x128xf32>
    %cst_6 = arith.constant dense<0.000000e+00> : vector<128x128xf32>
    %14 = tpu.matmul %5, %13, %cst_6 {dimension_numbers = #tpu.dot_dimension_numbers<[1], [0], [0], [1], [0, 0, 1, 1], [], []>} : vector<128x32xf32>, vector<32x128xf32>, vector<128x128xf32> -> vector<128x128xf32>
    %cst_7 = arith.constant 2.000000e+00 : f32
    %15 = vector.broadcast %cst_7 : f32 to vector<128x128xf32>
    %16 = arith.mulf %15, %14 : vector<128x128xf32>
    %17 = arith.subf %12, %16 : vector<128x128xf32>
    %cst_8 = arith.constant 0.000000e+00 : f32
    %18 = vector.broadcast %cst_8 : f32 to vector<128x128xf32>
    %19 = arith.maximumf %17, %18 : vector<128x128xf32>
    %c0_9 = arith.constant 0 : index
    %c0_10 = arith.constant 0 : index
    %20 = vector.load %arg1[%c0_9, %c0_10] : memref<128x1xi32, #tpu.memory_space<vmem>>, vector<128x1xi32>
    %c0_11 = arith.constant 0 : index
    %c0_12 = arith.constant 0 : index
    %21 = vector.load %arg2[%c0_11, %c0_12] : memref<1x128xi32, #tpu.memory_space<vmem>>, vector<1x128xi32>
    %22 = vector.broadcast %20 : vector<128x1xi32> to vector<128x128xi32>
    %23 = vector.broadcast %21 : vector<1x128xi32> to vector<128x128xi32>
    %24 = arith.cmpi eq, %22, %23 : vector<128x128xi32>
    %25 = tpu.iota {dimensions = array<i32: 0>} : vector<128x128xi32>
    %26 = tpu.iota {dimensions = array<i32: 1>} : vector<128x128xi32>
    %27 = arith.cmpi eq, %25, %26 : vector<128x128xi32>
    %cst_13 = arith.constant dense<true> : vector<128x128xi1>
    %28 = arith.xori %27, %cst_13 : vector<128x128xi1>
    %29 = arith.andi %24, %28 : vector<128x128xi1>
    %cst_14 = arith.constant 1.000000e+30 : f32
    %30 = vector.broadcast %cst_14 : f32 to vector<128x128xf32>
    %31 = arith.select %29, %19, %30 : vector<128x128xi1>, vector<128x128xf32>
    %32 = tpu.bitcast %31 : vector<128x128xf32> -> vector<128x128xi32>
    %c-128_i32 = arith.constant -128 : i32
    %33 = vector.broadcast %c-128_i32 : i32 to vector<128x128xi32>
    %34 = arith.andi %32, %33 : vector<128x128xi32>
    %35 = arith.ori %34, %26 : vector<128x128xi32>
    %cst_15 = arith.constant dense<2147483647> : vector<128xi32>
    %36 = vector.multi_reduction <minsi>, %35, %cst_15 [1] : vector<128x128xi32> to vector<128xi32>
    %37 = vector.shape_cast %36 : vector<128xi32> to vector<128x1xi32>
    %38 = vector.broadcast %37 : vector<128x1xi32> to vector<128x128xi32>
    %39 = arith.cmpi eq, %35, %38 : vector<128x128xi32>
    %40 = arith.ori %27, %39 : vector<128x128xi1>
    %c2130706432_i32 = arith.constant 2130706432 : i32
    %41 = vector.broadcast %c2130706432_i32 : i32 to vector<128x128xi32>
    %42 = arith.select %39, %41, %35 : vector<128x128xi1>, vector<128x128xi32>
    %cst_16 = arith.constant dense<2147483647> : vector<128xi32>
    %43 = vector.multi_reduction <minsi>, %42, %cst_16 [1] : vector<128x128xi32> to vector<128xi32>
    %44 = vector.shape_cast %43 : vector<128xi32> to vector<128x1xi32>
    %45 = vector.broadcast %44 : vector<128x1xi32> to vector<128x128xi32>
    %46 = arith.cmpi eq, %42, %45 : vector<128x128xi32>
    %47 = arith.ori %40, %46 : vector<128x128xi1>
    %c2130706432_i32_17 = arith.constant 2130706432 : i32
    %48 = vector.broadcast %c2130706432_i32_17 : i32 to vector<128x128xi32>
    %49 = arith.select %46, %48, %42 : vector<128x128xi1>, vector<128x128xi32>
    %cst_18 = arith.constant dense<2147483647> : vector<128xi32>
    %50 = vector.multi_reduction <minsi>, %49, %cst_18 [1] : vector<128x128xi32> to vector<128xi32>
    %51 = vector.shape_cast %50 : vector<128xi32> to vector<128x1xi32>
    %52 = vector.broadcast %51 : vector<128x1xi32> to vector<128x128xi32>
    %53 = arith.cmpi eq, %49, %52 : vector<128x128xi32>
    %54 = arith.ori %47, %53 : vector<128x128xi1>
    %c2130706432_i32_19 = arith.constant 2130706432 : i32
    %55 = vector.broadcast %c2130706432_i32_19 : i32 to vector<128x128xi32>
    %56 = arith.select %53, %55, %49 : vector<128x128xi1>, vector<128x128xi32>
    %cst_20 = arith.constant dense<2147483647> : vector<128xi32>
    %57 = vector.multi_reduction <minsi>, %56, %cst_20 [1] : vector<128x128xi32> to vector<128xi32>
    %58 = vector.shape_cast %57 : vector<128xi32> to vector<128x1xi32>
    %59 = vector.broadcast %58 : vector<128x1xi32> to vector<128x128xi32>
    %60 = arith.cmpi eq, %56, %59 : vector<128x128xi32>
    %61 = arith.ori %54, %60 : vector<128x128xi1>
    %c0_21 = arith.constant 0 : index
    %c0_22 = arith.constant 0 : index
    %62 = vector.load %arg5[%c0_21, %c0_22] : memref<32x34xf32, #tpu.memory_space<vmem>>, vector<32x34xf32>
    %cst_23 = arith.constant dense<0.000000e+00> : vector<128x34xf32>
    %63 = tpu.matmul %5, %62, %cst_23 {dimension_numbers = #tpu.dot_dimension_numbers<[1], [0], [0], [1], [0, 0, 1, 1], [], []>} : vector<128x32xf32>, vector<32x34xf32>, vector<128x34xf32> -> vector<128x34xf32>
    %64 = vector.extract_strided_slice %63 {offsets = [0, 0], sizes = [128, 32], strides = [1, 1]} : vector<128x34xf32> to vector<128x32xf32>
    %65 = vector.extract_strided_slice %63 {offsets = [0, 32], sizes = [128, 1], strides = [1, 1]} : vector<128x34xf32> to vector<128x1xf32>
    %66 = vector.extract_strided_slice %63 {offsets = [0, 33], sizes = [128, 1], strides = [1, 1]} : vector<128x34xf32> to vector<128x1xf32>
    %67 = tpu.transpose %66, [1, 0] : vector<128x1xf32> -> vector<1x128xf32>
    %68 = vector.broadcast %65 : vector<128x1xf32> to vector<128x128xf32>
    %69 = vector.broadcast %67 : vector<1x128xf32> to vector<128x128xf32>
    %70 = arith.addf %68, %69 : vector<128x128xf32>
    %cst_24 = arith.constant 0.000000e+00 : f32
    %71 = vector.broadcast %cst_24 : f32 to vector<128x128xf32>
    %72 = arith.cmpf ogt, %70, %71 : vector<128x128xf32>
    %cst_25 = arith.constant 2.000000e-01 : f32
    %73 = vector.broadcast %cst_25 : f32 to vector<128x128xf32>
    %74 = arith.mulf %73, %70 : vector<128x128xf32>
    %75 = arith.select %72, %70, %74 : vector<128x128xi1>, vector<128x128xf32>
    %cst_26 = arith.constant -1.000000e+30 : f32
    %76 = vector.broadcast %cst_26 : f32 to vector<128x128xf32>
    %77 = arith.select %61, %75, %76 : vector<128x128xi1>, vector<128x128xf32>
    %cst_27 = arith.constant dense<0xFF800000> : vector<128xf32>
    %78 = vector.multi_reduction <maximumf>, %77, %cst_27 [1] : vector<128x128xf32> to vector<128xf32>
    %79 = vector.shape_cast %78 : vector<128xf32> to vector<128x1xf32>
    %80 = vector.broadcast %79 : vector<128x1xf32> to vector<128x128xf32>
    %81 = arith.subf %77, %80 : vector<128x128xf32>
    %82 = math.exp %81 : vector<128x128xf32>
    %cst_28 = arith.constant 0.000000e+00 : f32
    %83 = vector.broadcast %cst_28 : f32 to vector<128x128xf32>
    %84 = arith.select %61, %82, %83 : vector<128x128xi1>, vector<128x128xf32>
    %cst_29 = arith.constant dense<0.000000e+00> : vector<128xf32>
    %85 = vector.multi_reduction <add>, %84, %cst_29 [1] : vector<128x128xf32> to vector<128xf32>
    %86 = vector.shape_cast %85 : vector<128xf32> to vector<128x1xf32>
    %cst_30 = arith.constant dense<0.000000e+00> : vector<128x32xf32>
    %87 = tpu.matmul %84, %64, %cst_30 {dimension_numbers = #tpu.dot_dimension_numbers<[1], [0], [0], [1], [0, 0, 1, 1], [], []>} : vector<128x128xf32>, vector<128x32xf32>, vector<128x32xf32> -> vector<128x32xf32>
    %88 = tpu.reciprocal %86 {approx = true} : vector<128x1xf32> -> vector<128x1xf32>
    %89 = vector.broadcast %88 : vector<128x1xf32> to vector<128x32xf32>
    %90 = arith.mulf %87, %89 : vector<128x32xf32>
    %c0_31 = arith.constant 0 : index
    %c0_32 = arith.constant 0 : index
    %91 = vector.load %arg6[%c0_31, %c0_32] : memref<1x32xf32, #tpu.memory_space<vmem>>, vector<1x32xf32>
    %92 = vector.broadcast %91 : vector<1x32xf32> to vector<128x32xf32>
    %93 = arith.addf %90, %92 : vector<128x32xf32>
    %c0_33 = arith.constant 0 : index
    %c0_34 = arith.constant 0 : index
    %94 = vector.load %arg7[%c0_33, %c0_34] : memref<32x128xf32, #tpu.memory_space<vmem>>, vector<32x128xf32>
    %cst_35 = arith.constant dense<0.000000e+00> : vector<128x128xf32>
    %95 = tpu.matmul %93, %94, %cst_35 {dimension_numbers = #tpu.dot_dimension_numbers<[1], [0], [0], [1], [0, 0, 1, 1], [], []>} : vector<128x32xf32>, vector<32x128xf32>, vector<128x128xf32> -> vector<128x128xf32>
    %c0_36 = arith.constant 0 : index
    %c0_37 = arith.constant 0 : index
    %96 = vector.load %arg8[%c0_36, %c0_37] : memref<1x128xf32, #tpu.memory_space<vmem>>, vector<1x128xf32>
    %97 = vector.broadcast %96 : vector<1x128xf32> to vector<128x128xf32>
    %98 = arith.addf %95, %97 : vector<128x128xf32>
    %cst_38 = arith.constant 0.000000e+00 : f32
    %99 = vector.broadcast %cst_38 : f32 to vector<128x128xf32>
    %100 = arith.maximumf %98, %99 : vector<128x128xf32>
    %c0_39 = arith.constant 0 : index
    %c0_40 = arith.constant 0 : index
    %101 = vector.load %arg9[%c0_39, %c0_40] : memref<128x64xf32, #tpu.memory_space<vmem>>, vector<128x64xf32>
    %cst_41 = arith.constant dense<0.000000e+00> : vector<128x64xf32>
    %102 = tpu.matmul %100, %101, %cst_41 {dimension_numbers = #tpu.dot_dimension_numbers<[1], [0], [0], [1], [0, 0, 1, 1], [], []>} : vector<128x128xf32>, vector<128x64xf32>, vector<128x64xf32> -> vector<128x64xf32>
    %c0_42 = arith.constant 0 : index
    %c0_43 = arith.constant 0 : index
    %103 = vector.load %arg10[%c0_42, %c0_43] : memref<1x64xf32, #tpu.memory_space<vmem>>, vector<1x64xf32>
    %104 = vector.broadcast %103 : vector<1x64xf32> to vector<128x64xf32>
    %105 = arith.addf %102, %104 : vector<128x64xf32>
    %cst_44 = arith.constant 0.000000e+00 : f32
    %106 = vector.broadcast %cst_44 : f32 to vector<128x64xf32>
    %107 = arith.maximumf %105, %106 : vector<128x64xf32>
    %c0_45 = arith.constant 0 : index
    %c0_46 = arith.constant 0 : index
    %108 = vector.load %arg11[%c0_45, %c0_46] : memref<64x128xf32, #tpu.memory_space<vmem>>, vector<64x128xf32>
    %cst_47 = arith.constant dense<0.000000e+00> : vector<128x128xf32>
    %109 = tpu.matmul %107, %108, %cst_47 {dimension_numbers = #tpu.dot_dimension_numbers<[1], [0], [0], [1], [0, 0, 1, 1], [], []>} : vector<128x64xf32>, vector<64x128xf32>, vector<128x128xf32> -> vector<128x128xf32>
    %c0_48 = arith.constant 0 : index
    %c0_49 = arith.constant 0 : index
    %110 = vector.load %arg12[%c0_48, %c0_49] : memref<1x128xf32, #tpu.memory_space<vmem>>, vector<1x128xf32>
    %111 = vector.broadcast %110 : vector<1x128xf32> to vector<128x128xf32>
    %112 = arith.addf %109, %111 : vector<128x128xf32>
    %c0_50 = arith.constant 0 : index
    %c0_51 = arith.constant 0 : index
    %113 = vector.load %arg13[%c0_50, %c0_51] : memref<128x128xf32, #tpu.memory_space<vmem>>, vector<128x128xf32>
    tpu.vector_store %arg13[%c0_50, %c0_51], %112 {strides = array<i32>} : memref<128x128xf32, #tpu.memory_space<vmem>>, vector<128x128xf32>,
    %114 = arith.extui %61 : vector<128x128xi1> to vector<128x128xi8>
    %c0_52 = arith.constant 0 : index
    %c0_53 = arith.constant 0 : index
    %115 = vector.load %arg14[%c0_52, %c0_53] : memref<128x128xi8, #tpu.memory_space<vmem>>, vector<128x128xi8>
    tpu.vector_store %arg14[%c0_52, %c0_53], %114 {strides = array<i32>} : memref<128x128xi8, #tpu.memory_space<vmem>>, vector<128x128xi8>,
    return
  }
}

</mosaic_0001>

<llo_original>
// kernel: dr_network_forward.1
$region0: #{dr_network_forward.1}
  #allocation0 [shape = 'u32[]', space=smem, size = 0x4, offset = 0x4, fixed_abs, tag = 'smem constant byte address 0x4 - core index']
  #allocation1 [shape = 'u32[144,128]{1,0:T(1,128)}', space=vmem, size = 0x12000, scoped, tag = 'internal scratch']
  %s0 = inlined_call_operand.vmem [shape: f32[128,8], index: 0, kind: input, shape index: {}]
  %s1 = inlined_call_operand.vmem [shape: s32[128,1], index: 1, kind: input, shape index: {}]
  %s2 = inlined_call_operand.vmem [shape: s32[1,128], index: 2, kind: input, shape index: {}]
  %s3 = inlined_call_operand.vmem [shape: f32[8,32], index: 3, kind: input, shape index: {}]
  %s4 = inlined_call_operand.vmem [shape: f32[1,32], index: 4, kind: input, shape index: {}]
  %s5 = inlined_call_operand.vmem [shape: f32[32,34], index: 5, kind: input, shape index: {}]
  %s6 = inlined_call_operand.vmem [shape: f32[1,32], index: 6, kind: input, shape index: {}]
  %s7 = inlined_call_operand.vmem [shape: f32[32,128], index: 7, kind: input, shape index: {}]
  %s8 = inlined_call_operand.vmem [shape: f32[1,128], index: 8, kind: input, shape index: {}]
  %s9 = inlined_call_operand.vmem [shape: f32[128,64], index: 9, kind: input, shape index: {}]
  %s10 = inlined_call_operand.vmem [shape: f32[1,64], index: 10, kind: input, shape index: {}]
  %s11 = inlined_call_operand.vmem [shape: f32[64,128], index: 11, kind: input, shape index: {}]
  %s12 = inlined_call_operand.vmem [shape: f32[1,128], index: 12, kind: input, shape index: {}]
  %s13 = inlined_call_operand.vmem [shape: f32[128,128], index: 13, kind: output, shape index: {0}]
  %s14 = inlined_call_operand.hbm [shape: s8[128,128], index: 14, kind: output, shape index: {1}]
  %15 = xla_tuple %s13, %s14
  %s16 = sld [smem:[#allocation0]]
  $region70: #{dr_network_forward.1} parent=0
    _
  %s18 = ssub.s32 1, %s16
  %s19 = scalar_select 0, %s18, %s16
  $region1: #{dr_network_forward.1} parent=0
    #allocation2 [shape = 'u8[16384]{0}', space=vmem, size = 0x4000, scoped, tag = 'output window, operand 1, single buffered']
    #allocation3 [shape = 's32[1]{0}', space=sflag, size = 0x4, scoped, tag = 'scoped memory for dr_network_forward.1']
    %20 = vsyncpa [#allocation3], 0
    // Predicated region
    $region2: #{dr_network_forward.1} parent=1 // pred_check
      _
    $region3: #{dr_network_forward.1} parent=1 // pred_check_branch
      %22 = sbr.rel (0) target = $region5
    $region4: #{dr_network_forward.1} parent=1 // pred_region
      _
    $region5: #{dr_network_forward.1} parent=1 // pred_fallthru
      _
    // Predicated region
    $region6: #{dr_network_forward.1} parent=1 // pred_check
      _
    $region7: #{dr_network_forward.1} parent=1 // pred_check_branch
      %24 = sbr.rel (0) target = $region9
    $region8: #{dr_network_forward.1} parent=1 // pred_region
      _
    $region9: #{dr_network_forward.1} parent=1 // pred_fallthru
      _
    // Predicated region
    $region10: #{dr_network_forward.1} parent=1 // pred_check
      _
    $region11: #{dr_network_forward.1} parent=1 // pred_check_branch
      %26 = sbr.rel (0) target = $region13
    $region12: #{dr_network_forward.1} parent=1 // pred_region
      _
    $region13: #{dr_network_forward.1} parent=1 // pred_fallthru
      _
    // Predicated region
    $region14: #{dr_network_forward.1} parent=1 // pred_check
      _
    $region15: #{dr_network_forward.1} parent=1 // pred_check_branch
      %28 = sbr.rel (0) target = $region17
    $region16: #{dr_network_forward.1} parent=1 // pred_region
      _
    $region17: #{dr_network_forward.1} parent=1 // pred_fallthru
      _
    // Predicated region
    $region18: #{dr_network_forward.1} parent=1 // pred_check
      _
    $region19: #{dr_network_forward.1} parent=1 // pred_check_branch
      %30 = sbr.rel (0) target = $region21
    $region20: #{dr_network_forward.1} parent=1 // pred_region
      _
    $region21: #{dr_network_forward.1} parent=1 // pred_fallthru
      _
    // Predicated region
    $region22: #{dr_network_forward.1} parent=1 // pred_check
      _
    $region23: #{dr_network_forward.1} parent=1 // pred_check_branch
      %32 = sbr.rel (0) target = $region25
    $region24: #{dr_network_forward.1} parent=1 // pred_region
      _
    $region25: #{dr_network_forward.1} parent=1 // pred_fallthru
      _
    // Predicated region
    $region26: #{dr_network_forward.1} parent=1 // pred_check
      _
    $region27: #{dr_network_forward.1} parent=1 // pred_check_branch
      %34 = sbr.rel (0) target = $region29
    $region28: #{dr_network_forward.1} parent=1 // pred_region
      _
    $region29: #{dr_network_forward.1} parent=1 // pred_fallthru
      _
    // Predicated region
    $region30: #{dr_network_forward.1} parent=1 // pred_check
      _
    $region31: #{dr_network_forward.1} parent=1 // pred_check_branch
      %36 = sbr.rel (0) target = $region33
    $region32: #{dr_network_forward.1} parent=1 // pred_region
      _
    $region33: #{dr_network_forward.1} parent=1 // pred_fallthru
      _
    // Predicated region
    $region34: #{dr_network_forward.1} parent=1 // pred_check
      _
    $region35: #{dr_network_forward.1} parent=1 // pred_check_branch
      %38 = sbr.rel (0) target = $region37
    $region36: #{dr_network_forward.1} parent=1 // pred_region
      _
    $region37: #{dr_network_forward.1} parent=1 // pred_fallthru
      _
    // Predicated region
    $region38: #{dr_network_forward.1} parent=1 // pred_check
      _
    $region39: #{dr_network_forward.1} parent=1 // pred_check_branch
      %40 = sbr.rel (0) target = $region41
    $region40: #{dr_network_forward.1} parent=1 // pred_region
      _
    $region41: #{dr_network_forward.1} parent=1 // pred_fallthru
      _
    // Predicated region
    $region42: #{dr_network_forward.1} parent=1 // pred_check
      _
    $region43: #{dr_network_forward.1} parent=1 // pred_check_branch
      %42 = sbr.rel (0) target = $region45
    $region44: #{dr_network_forward.1} parent=1 // pred_region
      _
    $region45: #{dr_network_forward.1} parent=1 // pred_fallthru
      _
    // Predicated region
    $region46: #{dr_network_forward.1} parent=1 // pred_check
      _
    $region47: #{dr_network_forward.1} parent=1 // pred_check_branch
      %44 = sbr.rel (0) target = $region49
    $region48: #{dr_network_forward.1} parent=1 // pred_region
      _
    $region49: #{dr_network_forward.1} parent=1 // pred_fallthru
      _
    // Predicated region
    $region50: #{dr_network_forward.1} parent=1 // pred_check
      _
    $region51: #{dr_network_forward.1} parent=1 // pred_check_branch
      %46 = sbr.rel (0) target = $region53
    $region52: #{dr_network_forward.1} parent=1 // pred_region
      _
    $region53: #{dr_network_forward.1} parent=1 // pred_fallthru
      _
    %v49 = vld [vmem:[%s0] sm:$0xff]
    %v50 = vld [vmem:[%s0 + $0x8] sm:$0xff]
    %v51 = vld [vmem:[%s0 + $0x10] sm:$0xff]
    %v52 = vld [vmem:[%s0 + $0x18] sm:$0xff]
    %v53 = vld [vmem:[%s0 + $0x20] sm:$0xff]
    %v54 = vld [vmem:[%s0 + $0x28] sm:$0xff]
    %v55 = vld [vmem:[%s0 + $0x30] sm:$0xff]
    %v56 = vld [vmem:[%s0 + $0x38] sm:$0xff]
    %v57 = vld [vmem:[%s0 + $0x40] sm:$0xff]
    %v58 = vld [vmem:[%s0 + $0x48] sm:$0xff]
    %v59 = vld [vmem:[%s0 + $0x50] sm:$0xff]
    %v60 = vld [vmem:[%s0 + $0x58] sm:$0xff]
    %v61 = vld [vmem:[%s0 + $0x60] sm:$0xff]
    %v62 = vld [vmem:[%s0 + $0x68] sm:$0xff]
    %v63 = vld [vmem:[%s0 + $0x70] sm:$0xff]
    %v64 = vld [vmem:[%s0 + $0x78] sm:$0xff]
    %v65 = vld [vmem:[%s3] sm:$0xff]
    %v66 = vld [vmem:[%s4] sm:$0x1]
    %v68 = vlaneseq
    %v69 = vshrl.u32 %v68, 7
    %v70 = vsub.s32 0, %v69
    %v71 = vrot.slane %v66, %v70
    %vm73 = vcmask 64512
    %v75 = vsel %vm73, %v49, 0
    %v78 = vsel %vm73, %v50, 0
    %v81 = vsel %vm73, %v51, 0
    %v84 = vsel %vm73, %v52, 0
    %v87 = vsel %vm73, %v53, 0
    %v90 = vsel %vm73, %v54, 0
    %v93 = vsel %vm73, %v55, 0
    %v96 = vsel %vm73, %v56, 0
    %v99 = vsel %vm73, %v57, 0
    %v102 = vsel %vm73, %v58, 0
    %v105 = vsel %vm73, %v59, 0
    %v108 = vsel %vm73, %v60, 0
    %v111 = vsel %vm73, %v61, 0
    %v114 = vsel %vm73, %v62, 0
    %v117 = vsel %vm73, %v63, 0
    %v120 = vsel %vm73, %v64, 0
    %122 = vmatprep.subr.mxu0 0.0
    %123 = vmatpush1.msra.mxu0 0.0
    %124 = vmatprep.subr.mxu0 0.0
    %125 = vmatpush1.msra.mxu0 0.0
    %126 = vmatprep.subr.mxu0 0.0
    %127 = vmatpush1.msra.mxu0 0.0
    %128 = vmatprep.subr.mxu0 0.0
    %129 = vmatpush1.msra.mxu0 0.0
    %130 = vmatprep.subr.mxu0 0.0
    %131 = vmatpush1.msra.mxu0 0.0
    %132 = vmatprep.subr.mxu0 0.0
    %133 = vmatpush1.msra.mxu0 0.0
    %134 = vmatprep.subr.mxu0 0.0
    %135 = vmatpush1.msra.mxu0 0.0
    %136 = vmatprep.subr.mxu0 0.0
    %137 = vmatpush1.msra.mxu0 0.0
    %138 = vmatprep.subr.mxu0 0.0
    %139 = vmatpush1.msra.mxu0 0.0
    %140 = vmatprep.subr.mxu0 0.0
    %141 = vmatpush1.msra.mxu0 0.0
    %142 = vmatprep.subr.mxu0 0.0
    %143 = vmatpush1.msra.mxu0 0.0
    %144 = vmatprep.subr.mxu0 0.0
    %145 = vmatpush1.msra.mxu0 0.0
    %146 = vmatprep.subr.mxu0 0.0
    %147 = vmatpush1.msra.mxu0 0.0
    %148 = vmatprep.subr.mxu0 0.0
    %149 = vmatpush1.msra.mxu0 0.0
    %150 = vmatprep.subr.mxu0 0.0
    %151 = vmatpush1.msra.mxu0 0.0
    %152 = vmatprep.subr.mxu0 0.0
    %153 = vmatpush1.msra.mxu0 %v65
    %154 = vmatprep.subr.mxu0 0.0
    %155 = vmatpush2.msra.mxu0 0.0
    %156 = vmatprep.subr.mxu0 0.0
    %157 = vmatpush2.msra.mxu0 0.0
    %158 = vmatprep.subr.mxu0 0.0
    %159 = vmatpush2.msra.mxu0 0.0
    %160 = vmatprep.subr.mxu0 0.0
    %161 = vmatpush2.msra.mxu0 0.0
    %162 = vmatprep.subr.mxu0 0.0
    %163 = vmatpush2.msra.mxu0 0.0
    %164 = vmatprep.subr.mxu0 0.0
    %165 = vmatpush2.msra.mxu0 0.0
    %166 = vmatprep.subr.mxu0 0.0
    %167 = vmatpush2.msra.mxu0 0.0
    %168 = vmatprep.subr.mxu0 0.0
    %169 = vmatpush2.msra.mxu0 0.0
    %170 = vmatprep.subr.mxu0 0.0
    %171 = vmatpush2.msra.mxu0 0.0
    %172 = vmatprep.subr.mxu0 0.0
    %173 = vmatpush2.msra.mxu0 0.0
    %174 = vmatprep.subr.mxu0 0.0
    %175 = vmatpush2.msra.mxu0 0.0
    %176 = vmatprep.subr.mxu0 0.0
    %177 = vmatpush2.msra.mxu0 0.0
    %178 = vmatprep.subr.mxu0 0.0
    %179 = vmatpush2.msra.mxu0 0.0
    %180 = vmatprep.subr.mxu0 0.0
    %181 = vmatpush2.msra.mxu0 0.0
    %182 = vmatprep.subr.mxu0 0.0
    %183 = vmatpush2.msra.mxu0 0.0
    %184 = vmatprep.subr.mxu0 0.0
    %185 = vmatpush2.msra.mxu0 0.0
    %186 = vmatprep.mubr.f32.mxu0 0.0
    %187 = vmatmul.mubr.f32.gmra.mxu0 %v75
    %v188 = vpop.f32.mrf.mxu0
    %v189 = vadd.f32 %v71, %v188
    %v190 = vpop.f32.mrf.mxu0
    %191 = vmatprep.mubr.f32.mxu0 0.0
    %192 = vmatmul.mubr.f32.gmra.mxu0 %v78
    %v193 = vpop.f32.mrf.mxu0
    %v194 = vadd.f32 %v71, %v193
    %v195 = vpop.f32.mrf.mxu0
    %196 = vmatprep.mubr.f32.mxu0 0.0
    %197 = vmatmul.mubr.f32.gmra.mxu0 %v81
    %v198 = vpop.f32.mrf.mxu0
    %v199 = vadd.f32 %v71, %v198
    %v200 = vpop.f32.mrf.mxu0
    %201 = vmatprep.mubr.f32.mxu0 0.0
    %202 = vmatmul.mubr.f32.gmra.mxu0 %v84
    %v203 = vpop.f32.mrf.mxu0
    %v204 = vadd.f32 %v71, %v203
    %v205 = vpop.f32.mrf.mxu0
    %206 = vmatprep.mubr.f32.mxu0 0.0
    %207 = vmatmul.mubr.f32.gmra.mxu0 %v87
    %v208 = vpop.f32.mrf.mxu0
    %v209 = vadd.f32 %v71, %v208
    %v210 = vpop.f32.mrf.mxu0
    %211 = vmatprep.mubr.f32.mxu0 0.0
    %212 = vmatmul.mubr.f32.gmra.mxu0 %v90
    %v213 = vpop.f32.mrf.mxu0
    %v214 = vadd.f32 %v71, %v213
    %v215 = vpop.f32.mrf.mxu0
    %216 = vmatprep.mubr.f32.mxu0 0.0
    %217 = vmatmul.mubr.f32.gmra.mxu0 %v93
    %v218 = vpop.f32.mrf.mxu0
    %v219 = vadd.f32 %v71, %v218
    %v220 = vpop.f32.mrf.mxu0
    %221 = vmatprep.mubr.f32.mxu0 0.0
    %222 = vmatmul.mubr.f32.gmra.mxu0 %v96
    %v223 = vpop.f32.mrf.mxu0
    %v224 = vadd.f32 %v71, %v223
    %v225 = vpop.f32.mrf.mxu0
    %226 = vmatprep.mubr.f32.mxu0 0.0
    %227 = vmatmul.mubr.f32.gmra.mxu0 %v99
    %v228 = vpop.f32.mrf.mxu0
    %v229 = vadd.f32 %v71, %v228
    %v230 = vpop.f32.mrf.mxu0
    %231 = vmatprep.mubr.f32.mxu0 0.0
    %232 = vmatmul.mubr.f32.gmra.mxu0 %v102
    %v233 = vpop.f32.mrf.mxu0
    %v234 = vadd.f32 %v71, %v233
    %v235 = vpop.f32.mrf.mxu0
    %236 = vmatprep.mubr.f32.mxu0 0.0
    %237 = vmatmul.mubr.f32.gmra.mxu0 %v105
    %v238 = vpop.f32.mrf.mxu0
    %v239 = vadd.f32 %v71, %v238
    %v240 = vpop.f32.mrf.mxu0
    %241 = vmatprep.mubr.f32.mxu0 0.0
    %242 = vmatmul.mubr.f32.gmra.mxu0 %v108
    %v243 = vpop.f32.mrf.mxu0
    %v244 = vadd.f32 %v71, %v243
    %v245 = vpop.f32.mrf.mxu0
    %246 = vmatprep.mubr.f32.mxu0 0.0
    %247 = vmatmul.mubr.f32.gmra.mxu0 %v111
    %v248 = vpop.f32.mrf.mxu0
    %v249 = vadd.f32 %v71, %v248
    %v250 = vpop.f32.mrf.mxu0
    %251 = vmatprep.mubr.f32.mxu0 0.0
    %252 = vmatmul.mubr.f32.gmra.mxu0 %v114
    %v253 = vpop.f32.mrf.mxu0
    %v254 = vadd.f32 %v71, %v253
    %v255 = vpop.f32.mrf.mxu0
    %256 = vmatprep.mubr.f32.mxu0 0.0
    %257 = vmatmul.mubr.f32.gmra.mxu0 %v117
    %v258 = vpop.f32.mrf.mxu0
    %v259 = vadd.f32 %v71, %v258
    %v260 = vpop.f32.mrf.mxu0
    %261 = vmatprep.mubr.f32.mxu0 0.0
    %262 = vmatmul.mubr.f32.gmra.mxu0 %v120
    %v263 = vpop.f32.mrf.mxu0
    %v264 = vadd.f32 %v71, %v263
    %v265 = vpop.f32.mrf.mxu0
    %266 = vdwg.mxu0
    %v267 = vmul.f32 %v189, %v189
    %v268 = vmul.f32 %v194, %v194
    %v269 = vmul.f32 %v199, %v199
    %v270 = vmul.f32 %v204, %v204
    %v271 = vmul.f32 %v209, %v209
    %v272 = vmul.f32 %v214, %v214
    %v273 = vmul.f32 %v219, %v219
    %v274 = vmul.f32 %v224, %v224
    %v275 = vmul.f32 %v229, %v229
    %v276 = vmul.f32 %v234, %v234
    %v277 = vmul.f32 %v239, %v239
    %v278 = vmul.f32 %v244, %v244
    %v279 = vmul.f32 %v249, %v249
    %v280 = vmul.f32 %v254, %v254
    %v281 = vmul.f32 %v259, %v259
    %v282 = vmul.f32 %v264, %v264
    %vm283 = vcmask 261120
    %v284 = vsel %vm283, %v267, 0.0
    %285 = vadd.xlane.f32.xlu0 %v284
    %v286 = vpop.xlane.xlu0 %285
    %v287 = vsel %vm283, %v268, 0.0
    %288 = vadd.xlane.f32.xlu0 %v287
    %v289 = vpop.xlane.xlu0 %288
    %v290 = vsel %vm283, %v269, 0.0
    %291 = vadd.xlane.f32.xlu0 %v290
    %v292 = vpop.xlane.xlu0 %291
    %v293 = vsel %vm283, %v270, 0.0
    %294 = vadd.xlane.f32.xlu0 %v293
    %v295 = vpop.xlane.xlu0 %294
    %v296 = vsel %vm283, %v271, 0.0
    %297 = vadd.xlane.f32.xlu0 %v296
    %v298 = vpop.xlane.xlu0 %297
    %v299 = vsel %vm283, %v272, 0.0
    %300 = vadd.xlane.f32.xlu0 %v299
    %v301 = vpop.xlane.xlu0 %300
    %v302 = vsel %vm283, %v273, 0.0
    %303 = vadd.xlane.f32.xlu0 %v302
    %v304 = vpop.xlane.xlu0 %303
    %v305 = vsel %vm283, %v274, 0.0
    %306 = vadd.xlane.f32.xlu0 %v305
    %v307 = vpop.xlane.xlu0 %306
    %v308 = vsel %vm283, %v275, 0.0
    %309 = vadd.xlane.f32.xlu0 %v308
    %v310 = vpop.xlane.xlu0 %309
    %v311 = vsel %vm283, %v276, 0.0
    %312 = vadd.xlane.f32.xlu0 %v311
    %v313 = vpop.xlane.xlu0 %312
    %v314 = vsel %vm283, %v277, 0.0
    %315 = vadd.xlane.f32.xlu0 %v314
    %v316 = vpop.xlane.xlu0 %315
    %v317 = vsel %vm283, %v278, 0.0
    %318 = vadd.xlane.f32.xlu0 %v317
    %v319 = vpop.xlane.xlu0 %318
    %v320 = vsel %vm283, %v279, 0.0
    %321 = vadd.xlane.f32.xlu0 %v320
    %v322 = vpop.xlane.xlu0 %321
    %v323 = vsel %vm283, %v280, 0.0
    %324 = vadd.xlane.f32.xlu0 %v323
    %v325 = vpop.xlane.xlu0 %324
    %v326 = vsel %vm283, %v281, 0.0
    %327 = vadd.xlane.f32.xlu0 %v326
    %v328 = vpop.xlane.xlu0 %327
    %v329 = vsel %vm283, %v282, 0.0
    %330 = vadd.xlane.f32.xlu0 %v329
    %v331 = vpop.xlane.xlu0 %330
    %332 = vxpose.xlu0.b32.start [1/16] %v286, 128
    %333 = vxpose.xlu0.b32.cont [2/16] %v289, 128
    %334 = vxpose.xlu0.b32.cont [3/16] %v292, 128
    %335 = vxpose.xlu0.b32.cont [4/16] %v295, 128
    %336 = vxpose.xlu0.b32.cont [5/16] %v298, 128
    %337 = vxpose.xlu0.b32.cont [6/16] %v301, 128
    %338 = vxpose.xlu0.b32.cont [7/16] %v304, 128
    %339 = vxpose.xlu0.b32.cont [8/16] %v307, 128
    %340 = vxpose.xlu0.b32.cont [9/16] %v310, 128
    %341 = vxpose.xlu0.b32.cont [10/16] %v313, 128
    %342 = vxpose.xlu0.b32.cont [11/16] %v316, 128
    %343 = vxpose.xlu0.b32.cont [12/16] %v319, 128
    %344 = vxpose.xlu0.b32.cont [13/16] %v322, 128
    %345 = vxpose.xlu0.b32.cont [14/16] %v325, 128
    %346 = vxpose.xlu0.b32.cont [15/16] %v328, 128
    %347 = vxpose.xlu0.b32.end [16/16] %v331, 128
    %v348 = vpop.trf.xlu0
    %v349 = vpop.trf.xlu0
    %v350 = vpop.trf.xlu0
    %v351 = vpop.trf.xlu0
    %v352 = vpop.trf.xlu0
    %v353 = vpop.trf.xlu0
    %v354 = vpop.trf.xlu0
    %v355 = vpop.trf.xlu0
    %v356 = vpop.trf.xlu0
    %v357 = vpop.trf.xlu0
    %v358 = vpop.trf.xlu0
    %v359 = vpop.trf.xlu0
    %v360 = vpop.trf.xlu0
    %v361 = vpop.trf.xlu0
    %v362 = vpop.trf.xlu0
    %v363 = vpop.trf.xlu0
    %v364 = vlaneseq
    %v365 = vshrl.u32 %v364, 7
    %v366 = vsub.s32 0, %v365
    %v367 = vrot.slane %v348, %v366
    %v368 = vadd.f32 %v286, %v367
    %v369 = vadd.f32 %v289, %v367
    %v370 = vadd.f32 %v292, %v367
    %v371 = vadd.f32 %v295, %v367
    %v372 = vadd.f32 %v298, %v367
    %v373 = vadd.f32 %v301, %v367
    %v374 = vadd.f32 %v304, %v367
    %v375 = vadd.f32 %v307, %v367
    %v376 = vadd.f32 %v310, %v367
    %v377 = vadd.f32 %v313, %v367
    %v378 = vadd.f32 %v316, %v367
    %v379 = vadd.f32 %v319, %v367
    %v380 = vadd.f32 %v322, %v367
    %v381 = vadd.f32 %v325, %v367
    %v382 = vadd.f32 %v328, %v367
    %v383 = vadd.f32 %v331, %v367
    %v385 = vsel %vm283, %v189, 0
    %v388 = vsel %vm283, %v194, 0
    %v391 = vsel %vm283, %v199, 0
    %v394 = vsel %vm283, %v204, 0
    %v397 = vsel %vm283, %v209, 0
    %v400 = vsel %vm283, %v214, 0
    %v403 = vsel %vm283, %v219, 0
    %v406 = vsel %vm283, %v224, 0
    %v409 = vsel %vm283, %v229, 0
    %v412 = vsel %vm283, %v234, 0
    %v415 = vsel %vm283, %v239, 0
    %v418 = vsel %vm283, %v244, 0
    %v421 = vsel %vm283, %v249, 0
    %v424 = vsel %vm283, %v254, 0
    %v427 = vsel %vm283, %v259, 0
    %v430 = vsel %vm283, %v264, 0
    %432 = vmatprep.subr.mxu0 0.0
    %433 = vmatpush1.xpose.msra.mxu0 %v430
    %434 = vmatprep.subr.mxu0 0.0
    %435 = vmatpush1.xpose.msra.mxu0 %v427
    %436 = vmatprep.subr.mxu0 0.0
    %437 = vmatpush1.xpose.msra.mxu0 %v424
    %438 = vmatprep.subr.mxu0 0.0
    %439 = vmatpush1.xpose.msra.mxu0 %v421
    %440 = vmatprep.subr.mxu0 0.0
    %441 = vmatpush1.xpose.msra.mxu0 %v418
    %442 = vmatprep.subr.mxu0 0.0
    %443 = vmatpush1.xpose.msra.mxu0 %v415
    %444 = vmatprep.subr.mxu0 0.0
    %445 = vmatpush1.xpose.msra.mxu0 %v412
    %446 = vmatprep.subr.mxu0 0.0
    %447 = vmatpush1.xpose.msra.mxu0 %v409
    %448 = vmatprep.subr.mxu0 0.0
    %449 = vmatpush1.xpose.msra.mxu0 %v406
    %450 = vmatprep.subr.mxu0 0.0
    %451 = vmatpush1.xpose.msra.mxu0 %v403
    %452 = vmatprep.subr.mxu0 0.0
    %453 = vmatpush1.xpose.msra.mxu0 %v400
    %454 = vmatprep.subr.mxu0 0.0
    %455 = vmatpush1.xpose.msra.mxu0 %v397
    %456 = vmatprep.subr.mxu0 0.0
    %457 = vmatpush1.xpose.msra.mxu0 %v394
    %458 = vmatprep.subr.mxu0 0.0
    %459 = vmatpush1.xpose.msra.mxu0 %v391
    %460 = vmatprep.subr.mxu0 0.0
    %461 = vmatpush1.xpose.msra.mxu0 %v388
    %462 = vmatprep.subr.mxu0 0.0
    %463 = vmatpush1.xpose.msra.mxu0 %v385
    %464 = vmatprep.subr.mxu0 0.0
    %465 = vmatpush2.xpose.msra.mxu0 0.0
    %466 = vmatprep.subr.mxu0 0.0
    %467 = vmatpush2.xpose.msra.mxu0 0.0
    %468 = vmatprep.subr.mxu0 0.0
    %469 = vmatpush2.xpose.msra.mxu0 0.0
    %470 = vmatprep.subr.mxu0 0.0
    %471 = vmatpush2.xpose.msra.mxu0 0.0
    %472 = vmatprep.subr.mxu0 0.0
    %473 = vmatpush2.xpose.msra.mxu0 0.0
    %474 = vmatprep.subr.mxu0 0.0
    %475 = vmatpush2.xpose.msra.mxu0 0.0
    %476 = vmatprep.subr.mxu0 0.0
    %477 = vmatpush2.xpose.msra.mxu0 0.0
    %478 = vmatprep.subr.mxu0 0.0
    %479 = vmatpush2.xpose.msra.mxu0 0.0
    %480 = vmatprep.subr.mxu0 0.0
    %481 = vmatpush2.xpose.msra.mxu0 0.0
    %482 = vmatprep.subr.mxu0 0.0
    %483 = vmatpush2.xpose.msra.mxu0 0.0
    %484 = vmatprep.subr.mxu0 0.0
    %485 = vmatpush2.xpose.msra.mxu0 0.0
    %486 = vmatprep.subr.mxu0 0.0
    %487 = vmatpush2.xpose.msra.mxu0 0.0
    %488 = vmatprep.subr.mxu0 0.0
    %489 = vmatpush2.xpose.msra.mxu0 0.0
    %490 = vmatprep.subr.mxu0 0.0
    %491 = vmatpush2.xpose.msra.mxu0 0.0
    %492 = vmatprep.subr.mxu0 0.0
    %493 = vmatpush2.xpose.msra.mxu0 0.0
    %494 = vmatprep.subr.mxu0 0.0
    %495 = vmatpush2.xpose.msra.mxu0 0.0
    %496 = vmatprep.mubr.f32.mxu0 0.0
    %497 = vmatmul.mubr.f32.gmra.mxu0 %v385
    %v498 = vpop.f32.mrf.mxu0
    %v499 = vadd.f32 0.0, %v498
    %v500 = vpop.f32.mrf.mxu0
    %501 = vmatprep.mubr.f32.mxu0 0.0
    %502 = vmatmul.mubr.f32.gmra.mxu0 %v388
    %v503 = vpop.f32.mrf.mxu0
    %v504 = vadd.f32 0.0, %v503
    %v505 = vpop.f32.mrf.mxu0
    %506 = vmatprep.mubr.f32.mxu0 0.0
    %507 = vmatmul.mubr.f32.gmra.mxu0 %v391
    %v508 = vpop.f32.mrf.mxu0
    %v509 = vadd.f32 0.0, %v508
    %v510 = vpop.f32.mrf.mxu0
    %511 = vmatprep.mubr.f32.mxu0 0.0
    %512 = vmatmul.mubr.f32.gmra.mxu0 %v394
    %v513 = vpop.f32.mrf.mxu0
    %v514 = vadd.f32 0.0, %v513
    %v515 = vpop.f32.mrf.mxu0
    %516 = vmatprep.mubr.f32.mxu0 0.0
    %517 = vmatmul.mubr.f32.gmra.mxu0 %v397
    %v518 = vpop.f32.mrf.mxu0
    %v519 = vadd.f32 0.0, %v518
    %v520 = vpop.f32.mrf.mxu0
    %521 = vmatprep.mubr.f32.mxu0 0.0
    %522 = vmatmul.mubr.f32.gmra.mxu0 %v400
    %v523 = vpop.f32.mrf.mxu0
    %v524 = vadd.f32 0.0, %v523
    %v525 = vpop.f32.mrf.mxu0
    %526 = vmatprep.mubr.f32.mxu0 0.0
    %527 = vmatmul.mubr.f32.gmra.mxu0 %v403
    %v528 = vpop.f32.mrf.mxu0
    %v529 = vadd.f32 0.0, %v528
    %v530 = vpop.f32.mrf.mxu0
    %531 = vmatprep.mubr.f32.mxu0 0.0
    %532 = vmatmul.mubr.f32.gmra.mxu0 %v406
    %v533 = vpop.f32.mrf.mxu0
    %v534 = vadd.f32 0.0, %v533
    %v535 = vpop.f32.mrf.mxu0
    %536 = vmatprep.mubr.f32.mxu0 0.0
    %537 = vmatmul.mubr.f32.gmra.mxu0 %v409
    %v538 = vpop.f32.mrf.mxu0
    %v539 = vadd.f32 0.0, %v538
    %v540 = vpop.f32.mrf.mxu0
    %541 = vmatprep.mubr.f32.mxu0 0.0
    %542 = vmatmul.mubr.f32.gmra.mxu0 %v412
    %v543 = vpop.f32.mrf.mxu0
    %v544 = vadd.f32 0.0, %v543
    %v545 = vpop.f32.mrf.mxu0
    %546 = vmatprep.mubr.f32.mxu0 0.0
    %547 = vmatmul.mubr.f32.gmra.mxu0 %v415
    %v548 = vpop.f32.mrf.mxu0
    %v549 = vadd.f32 0.0, %v548
    %v550 = vpop.f32.mrf.mxu0
    %551 = vmatprep.mubr.f32.mxu0 0.0
    %552 = vmatmul.mubr.f32.gmra.mxu0 %v418
    %v553 = vpop.f32.mrf.mxu0
    %v554 = vadd.f32 0.0, %v553
    %v555 = vpop.f32.mrf.mxu0
    %556 = vmatprep.mubr.f32.mxu0 0.0
    %557 = vmatmul.mubr.f32.gmra.mxu0 %v421
    %v558 = vpop.f32.mrf.mxu0
    %v559 = vadd.f32 0.0, %v558
    %v560 = vpop.f32.mrf.mxu0
    %561 = vmatprep.mubr.f32.mxu0 0.0
    %562 = vmatmul.mubr.f32.gmra.mxu0 %v424
    %v563 = vpop.f32.mrf.mxu0
    %v564 = vadd.f32 0.0, %v563
    %v565 = vpop.f32.mrf.mxu0
    %566 = vmatprep.mubr.f32.mxu0 0.0
    %567 = vmatmul.mubr.f32.gmra.mxu0 %v427
    %v568 = vpop.f32.mrf.mxu0
    %v569 = vadd.f32 0.0, %v568
    %v570 = vpop.f32.mrf.mxu0
    %571 = vmatprep.mubr.f32.mxu0 0.0
    %572 = vmatmul.mubr.f32.gmra.mxu0 %v430
    %v573 = vpop.f32.mrf.mxu0
    %v574 = vadd.f32 0.0, %v573
    %v575 = vpop.f32.mrf.mxu0
    %576 = vdwg.mxu0
    %v577 = vmul.f32 %v499, 2.0
    %v578 = vmul.f32 %v504, 2.0
    %v579 = vmul.f32 %v509, 2.0
    %v580 = vmul.f32 %v514, 2.0
    %v581 = vmul.f32 %v519, 2.0
    %v582 = vmul.f32 %v524, 2.0
    %v583 = vmul.f32 %v529, 2.0
    %v584 = vmul.f32 %v534, 2.0
    %v585 = vmul.f32 %v539, 2.0
    %v586 = vmul.f32 %v544, 2.0
    %v587 = vmul.f32 %v549, 2.0
    %v588 = vmul.f32 %v554, 2.0
    %v589 = vmul.f32 %v559, 2.0
    %v590 = vmul.f32 %v564, 2.0
    %v591 = vmul.f32 %v569, 2.0
    %v592 = vmul.f32 %v574, 2.0
    %v593 = vsub.f32 %v368, %v577
    %v594 = vsub.f32 %v369, %v578
    %v595 = vsub.f32 %v370, %v579
    %v596 = vsub.f32 %v371, %v580
    %v597 = vsub.f32 %v372, %v581
    %v598 = vsub.f32 %v373, %v582
    %v599 = vsub.f32 %v374, %v583
    %v600 = vsub.f32 %v375, %v584
    %v601 = vsub.f32 %v376, %v585
    %v602 = vsub.f32 %v377, %v586
    %v603 = vsub.f32 %v378, %v587
    %v604 = vsub.f32 %v379, %v588
    %v605 = vsub.f32 %v380, %v589
    %v606 = vsub.f32 %v381, %v590
    %v607 = vsub.f32 %v382, %v591
    %v608 = vsub.f32 %v383, %v592
    %v609 = vmax.f32 %v593, 0.0
    %v610 = vmax.f32 %v594, 0.0
    %v611 = vmax.f32 %v595, 0.0
    %v612 = vmax.f32 %v596, 0.0
    %v613 = vmax.f32 %v597, 0.0
    %v614 = vmax.f32 %v598, 0.0
    %v615 = vmax.f32 %v599, 0.0
    %v616 = vmax.f32 %v600, 0.0
    %v617 = vmax.f32 %v601, 0.0
    %v618 = vmax.f32 %v602, 0.0
    %v619 = vmax.f32 %v603, 0.0
    %v620 = vmax.f32 %v604, 0.0
    %v621 = vmax.f32 %v605, 0.0
    %v622 = vmax.f32 %v606, 0.0
    %v623 = vmax.f32 %v607, 0.0
    %v624 = vmax.f32 %v608, 0.0
    %v625 = vld [vmem:[%s1] sm:$0xff]
    %v626 = vld [vmem:[%s1 + $0x8] sm:$0xff]
    %v627 = vld [vmem:[%s1 + $0x10] sm:$0xff]
    %v628 = vld [vmem:[%s1 + $0x18] sm:$0xff]
    %v629 = vld [vmem:[%s1 + $0x20] sm:$0xff]
    %v630 = vld [vmem:[%s1 + $0x28] sm:$0xff]
    %v631 = vld [vmem:[%s1 + $0x30] sm:$0xff]
    %v632 = vld [vmem:[%s1 + $0x38] sm:$0xff]
    %v633 = vld [vmem:[%s1 + $0x40] sm:$0xff]
    %v634 = vld [vmem:[%s1 + $0x48] sm:$0xff]
    %v635 = vld [vmem:[%s1 + $0x50] sm:$0xff]
    %v636 = vld [vmem:[%s1 + $0x58] sm:$0xff]
    %v637 = vld [vmem:[%s1 + $0x60] sm:$0xff]
    %v638 = vld [vmem:[%s1 + $0x68] sm:$0xff]
    %v639 = vld [vmem:[%s1 + $0x70] sm:$0xff]
    %v640 = vld [vmem:[%s1 + $0x78] sm:$0xff]
    %v641 = vld [vmem:[%s2] sm:$0x1]
    %642 = vset.pattern.permute.xlu0 0
    %643 = vperm.xlu0 %642, %v625
    %v644 = vpop.permute.xlu0 %643
    %645 = vset.pattern.permute.xlu0 0
    %646 = vperm.xlu0 %645, %v626
    %v647 = vpop.permute.xlu0 %646
    %648 = vset.pattern.permute.xlu0 0
    %649 = vperm.xlu0 %648, %v627
    %v650 = vpop.permute.xlu0 %649
    %651 = vset.pattern.permute.xlu0 0
    %652 = vperm.xlu0 %651, %v628
    %v653 = vpop.permute.xlu0 %652
    %654 = vset.pattern.permute.xlu0 0
    %655 = vperm.xlu0 %654, %v629
    %v656 = vpop.permute.xlu0 %655
    %657 = vset.pattern.permute.xlu0 0
    %658 = vperm.xlu0 %657, %v630
    %v659 = vpop.permute.xlu0 %658
    %660 = vset.pattern.permute.xlu0 0
    %661 = vperm.xlu0 %660, %v631
    %v662 = vpop.permute.xlu0 %661
    %663 = vset.pattern.permute.xlu0 0
    %664 = vperm.xlu0 %663, %v632
    %v665 = vpop.permute.xlu0 %664
    %666 = vset.pattern.permute.xlu0 0
    %667 = vperm.xlu0 %666, %v633
    %v668 = vpop.permute.xlu0 %667
    %669 = vset.pattern.permute.xlu0 0
    %670 = vperm.xlu0 %669, %v634
    %v671 = vpop.permute.xlu0 %670
    %672 = vset.pattern.permute.xlu0 0
    %673 = vperm.xlu0 %672, %v635
    %v674 = vpop.permute.xlu0 %673
    %675 = vset.pattern.permute.xlu0 0
    %676 = vperm.xlu0 %675, %v636
    %v677 = vpop.permute.xlu0 %676
    %678 = vset.pattern.permute.xlu0 0
    %679 = vperm.xlu0 %678, %v637
    %v680 = vpop.permute.xlu0 %679
    %681 = vset.pattern.permute.xlu0 0
    %682 = vperm.xlu0 %681, %v638
    %v683 = vpop.permute.xlu0 %682
    %684 = vset.pattern.permute.xlu0 0
    %685 = vperm.xlu0 %684, %v639
    %v686 = vpop.permute.xlu0 %685
    %687 = vset.pattern.permute.xlu0 0
    %688 = vperm.xlu0 %687, %v640
    %v689 = vpop.permute.xlu0 %688
    %v690 = vlaneseq
    %v691 = vshrl.u32 %v690, 7
    %v692 = vsub.s32 0, %v691
    %v693 = vrot.slane %v641, %v692
    %vm694 = vcmp.eq.s32.totalorder %v644, %v693
    %vm695 = vcmp.eq.s32.totalorder %v647, %v693
    %vm696 = vcmp.eq.s32.totalorder %v650, %v693
    %vm697 = vcmp.eq.s32.totalorder %v653, %v693
    %vm698 = vcmp.eq.s32.totalorder %v656, %v693
    %vm699 = vcmp.eq.s32.totalorder %v659, %v693
    %vm700 = vcmp.eq.s32.totalorder %v662, %v693
    %vm701 = vcmp.eq.s32.totalorder %v665, %v693
    %vm702 = vcmp.eq.s32.totalorder %v668, %v693
    %vm703 = vcmp.eq.s32.totalorder %v671, %v693
    %vm704 = vcmp.eq.s32.totalorder %v674, %v693
    %vm705 = vcmp.eq.s32.totalorder %v677, %v693
    %vm706 = vcmp.eq.s32.totalorder %v680, %v693
    %vm707 = vcmp.eq.s32.totalorder %v683, %v693
    %vm708 = vcmp.eq.s32.totalorder %v686, %v693
    %vm709 = vcmp.eq.s32.totalorder %v689, %v693
    %v710 = vlaneseq
    %v711 = vshrl.u32 %v710, 7
    %v712 = vadd.s32 %v711, 8
    %v713 = vadd.s32 %v711, 16
    %v714 = vadd.s32 %v711, 24
    %v715 = vadd.s32 %v711, 32
    %v716 = vadd.s32 %v711, 40
    %v717 = vadd.s32 %v711, 48
    %v718 = vadd.s32 %v711, 56
    %v719 = vadd.s32 %v711, 64
    %v720 = vadd.s32 %v711, 72
    %v721 = vadd.s32 %v711, 80
    %v722 = vadd.s32 %v711, 88
    %v723 = vadd.s32 %v711, 96
    %v724 = vadd.s32 %v711, 104
    %v725 = vadd.s32 %v711, 112
    %v726 = vadd.s32 %v711, 120
    %v727 = vlaneseq
    %v728 = vand.u32 %v727, 127
    %vm729 = vcmp.eq.s32.totalorder %v711, %v728
    %vm730 = vcmp.eq.s32.totalorder %v712, %v728
    %vm731 = vcmp.eq.s32.totalorder %v713, %v728
    %vm732 = vcmp.eq.s32.totalorder %v714, %v728
    %vm733 = vcmp.eq.s32.totalorder %v715, %v728
    %vm734 = vcmp.eq.s32.totalorder %v716, %v728
    %vm735 = vcmp.eq.s32.totalorder %v717, %v728
    %vm736 = vcmp.eq.s32.totalorder %v718, %v728
    %vm737 = vcmp.eq.s32.totalorder %v719, %v728
    %vm738 = vcmp.eq.s32.totalorder %v720, %v728
    %vm739 = vcmp.eq.s32.totalorder %v721, %v728
    %vm740 = vcmp.eq.s32.totalorder %v722, %v728
    %vm741 = vcmp.eq.s32.totalorder %v723, %v728
    %vm742 = vcmp.eq.s32.totalorder %v724, %v728
    %vm743 = vcmp.eq.s32.totalorder %v725, %v728
    %vm744 = vcmp.eq.s32.totalorder %v726, %v728
    %vm745 = vmxor %vm729, 1
    %vm746 = vmxor %vm730, 1
    %vm747 = vmxor %vm731, 1
    %vm748 = vmxor %vm732, 1
    %vm749 = vmxor %vm733, 1
    %vm750 = vmxor %vm734, 1
    %vm751 = vmxor %vm735, 1
    %vm752 = vmxor %vm736, 1
    %vm753 = vmxor %vm737, 1
    %vm754 = vmxor %vm738, 1
    %vm755 = vmxor %vm739, 1
    %vm756 = vmxor %vm740, 1
    %vm757 = vmxor %vm741, 1
    %vm758 = vmxor %vm742, 1
    %vm759 = vmxor %vm743, 1
    %vm760 = vmxor %vm744, 1
    %vm761 = vmand %vm694, %vm745
    %vm762 = vmand %vm695, %vm746
    %vm763 = vmand %vm696, %vm747
    %vm764 = vmand %vm697, %vm748
    %vm765 = vmand %vm698, %vm749
    %vm766 = vmand %vm699, %vm750
    %vm767 = vmand %vm700, %vm751
    %vm768 = vmand %vm701, %vm752
    %vm769 = vmand %vm702, %vm753
    %vm770 = vmand %vm703, %vm754
    %vm771 = vmand %vm704, %vm755
    %vm772 = vmand %vm705, %vm756
    %vm773 = vmand %vm706, %vm757
    %vm774 = vmand %vm707, %vm758
    %vm775 = vmand %vm708, %vm759
    %vm776 = vmand %vm709, %vm760
    %v777 = vsel %vm761, %v609, 1e+30
    %v778 = vsel %vm762, %v610, 1e+30
    %v779 = vsel %vm763, %v611, 1e+30
    %v780 = vsel %vm764, %v612, 1e+30
    %v781 = vsel %vm765, %v613, 1e+30
    %v782 = vsel %vm766, %v614, 1e+30
    %v783 = vsel %vm767, %v615, 1e+30
    %v784 = vsel %vm768, %v616, 1e+30
    %v785 = vsel %vm769, %v617, 1e+30
    %v786 = vsel %vm770, %v618, 1e+30
    %v787 = vsel %vm771, %v619, 1e+30
    %v788 = vsel %vm772, %v620, 1e+30
    %v789 = vsel %vm773, %v621, 1e+30
    %v790 = vsel %vm774, %v622, 1e+30
    %v791 = vsel %vm775, %v623, 1e+30
    %v792 = vsel %vm776, %v624, 1e+30
    %v809 = vand.u32 %v777, 4294967168
    %v810 = vand.u32 %v778, 4294967168
    %v811 = vand.u32 %v779, 4294967168
    %v812 = vand.u32 %v780, 4294967168
    %v813 = vand.u32 %v781, 4294967168
    %v814 = vand.u32 %v782, 4294967168
    %v815 = vand.u32 %v783, 4294967168
    %v816 = vand.u32 %v784, 4294967168
    %v817 = vand.u32 %v785, 4294967168
    %v818 = vand.u32 %v786, 4294967168
    %v819 = vand.u32 %v787, 4294967168
    %v820 = vand.u32 %v788, 4294967168
    %v821 = vand.u32 %v789, 4294967168
    %v822 = vand.u32 %v790, 4294967168
    %v823 = vand.u32 %v791, 4294967168
    %v824 = vand.u32 %v792, 4294967168
    %v825 = vor.u32 %v809, %v728
    %v826 = vor.u32 %v810, %v728
    %v827 = vor.u32 %v811, %v728
    %v828 = vor.u32 %v812, %v728
    %v829 = vor.u32 %v813, %v728
    %v830 = vor.u32 %v814, %v728
    %v831 = vor.u32 %v815, %v728
    %v832 = vor.u32 %v816, %v728
    %v833 = vor.u32 %v817, %v728
    %v834 = vor.u32 %v818, %v728
    %v835 = vor.u32 %v819, %v728
    %v836 = vor.u32 %v820, %v728
    %v837 = vor.u32 %v821, %v728
    %v838 = vor.u32 %v822, %v728
    %v839 = vor.u32 %v823, %v728
    %v840 = vor.u32 %v824, %v728
    %v841 = vand.u32 %v825, 65535
    %v842 = vshra.s32 %v825, 16
    %v843 = vcvt.s32.f32 %v841
    %v844 = vcvt.s32.f32 %v842
    %845 = vmin.xlane.f32.xlu0 %v844
    %v846 = vpop.xlane.xlu0 %845
    %vm847 = vcmp.eq.f32.partialorder %v844, %v846
    %v848 = vsel %vm847, %v843, inf
    %849 = vmin.xlane.f32.xlu0 %v848
    %v850 = vpop.xlane.xlu0 %849
    %v851 = vcvt.f32.s32 %v850
    %v852 = vcvt.f32.s32 %v846
    %v853 = vshll.u32 %v852, 16
    %v854 = vadd.s32 %v853, %v851
    %v855 = vand.u32 %v826, 65535
    %v856 = vshra.s32 %v826, 16
    %v857 = vcvt.s32.f32 %v855
    %v858 = vcvt.s32.f32 %v856
    %859 = vmin.xlane.f32.xlu0 %v858
    %v860 = vpop.xlane.xlu0 %859
    %vm861 = vcmp.eq.f32.partialorder %v858, %v860
    %v862 = vsel %vm861, %v857, inf
    %863 = vmin.xlane.f32.xlu0 %v862
    %v864 = vpop.xlane.xlu0 %863
    %v865 = vcvt.f32.s32 %v864
    %v866 = vcvt.f32.s32 %v860
    %v867 = vshll.u32 %v866, 16
    %v868 = vadd.s32 %v867, %v865
    %v869 = vand.u32 %v827, 65535
    %v870 = vshra.s32 %v827, 16
    %v871 = vcvt.s32.f32 %v869
    %v872 = vcvt.s32.f32 %v870
    %873 = vmin.xlane.f32.xlu0 %v872
    %v874 = vpop.xlane.xlu0 %873
    %vm875 = vcmp.eq.f32.partialorder %v872, %v874
    %v876 = vsel %vm875, %v871, inf
    %877 = vmin.xlane.f32.xlu0 %v876
    %v878 = vpop.xlane.xlu0 %877
    %v879 = vcvt.f32.s32 %v878
    %v880 = vcvt.f32.s32 %v874
    %v881 = vshll.u32 %v880, 16
    %v882 = vadd.s32 %v881, %v879
    %v883 = vand.u32 %v828, 65535
    %v884 = vshra.s32 %v828, 16
    %v885 = vcvt.s32.f32 %v883
    %v886 = vcvt.s32.f32 %v884
    %887 = vmin.xlane.f32.xlu0 %v886
    %v888 = vpop.xlane.xlu0 %887
    %vm889 = vcmp.eq.f32.partialorder %v886, %v888
    %v890 = vsel %vm889, %v885, inf
    %891 = vmin.xlane.f32.xlu0 %v890
    %v892 = vpop.xlane.xlu0 %891
    %v893 = vcvt.f32.s32 %v892
    %v894 = vcvt.f32.s32 %v888
    %v895 = vshll.u32 %v894, 16
    %v896 = vadd.s32 %v895, %v893
    %v897 = vand.u32 %v829, 65535
    %v898 = vshra.s32 %v829, 16
    %v899 = vcvt.s32.f32 %v897
    %v900 = vcvt.s32.f32 %v898
    %901 = vmin.xlane.f32.xlu0 %v900
    %v902 = vpop.xlane.xlu0 %901
    %vm903 = vcmp.eq.f32.partialorder %v900, %v902
    %v904 = vsel %vm903, %v899, inf
    %905 = vmin.xlane.f32.xlu0 %v904
    %v906 = vpop.xlane.xlu0 %905
    %v907 = vcvt.f32.s32 %v906
    %v908 = vcvt.f32.s32 %v902
    %v909 = vshll.u32 %v908, 16
    %v910 = vadd.s32 %v909, %v907
    %v911 = vand.u32 %v830, 65535
    %v912 = vshra.s32 %v830, 16
    %v913 = vcvt.s32.f32 %v911
    %v914 = vcvt.s32.f32 %v912
    %915 = vmin.xlane.f32.xlu0 %v914
    %v916 = vpop.xlane.xlu0 %915
    %vm917 = vcmp.eq.f32.partialorder %v914, %v916
    %v918 = vsel %vm917, %v913, inf
    %919 = vmin.xlane.f32.xlu0 %v918
    %v920 = vpop.xlane.xlu0 %919
    %v921 = vcvt.f32.s32 %v920
    %v922 = vcvt.f32.s32 %v916
    %v923 = vshll.u32 %v922, 16
    %v924 = vadd.s32 %v923, %v921
    %v925 = vand.u32 %v831, 65535
    %v926 = vshra.s32 %v831, 16
    %v927 = vcvt.s32.f32 %v925
    %v928 = vcvt.s32.f32 %v926
    %929 = vmin.xlane.f32.xlu0 %v928
    %v930 = vpop.xlane.xlu0 %929
    %vm931 = vcmp.eq.f32.partialorder %v928, %v930
    %v932 = vsel %vm931, %v927, inf
    %933 = vmin.xlane.f32.xlu0 %v932
    %v934 = vpop.xlane.xlu0 %933
    %v935 = vcvt.f32.s32 %v934
    %v936 = vcvt.f32.s32 %v930
    %v937 = vshll.u32 %v936, 16
    %v938 = vadd.s32 %v937, %v935
    %v939 = vand.u32 %v832, 65535
    %v940 = vshra.s32 %v832, 16
    %v941 = vcvt.s32.f32 %v939
    %v942 = vcvt.s32.f32 %v940
    %943 = vmin.xlane.f32.xlu0 %v942
    %v944 = vpop.xlane.xlu0 %943
    %vm945 = vcmp.eq.f32.partialorder %v942, %v944
    %v946 = vsel %vm945, %v941, inf
    %947 = vmin.xlane.f32.xlu0 %v946
    %v948 = vpop.xlane.xlu0 %947
    %v949 = vcvt.f32.s32 %v948
    %v950 = vcvt.f32.s32 %v944
    %v951 = vshll.u32 %v950, 16
    %v952 = vadd.s32 %v951, %v949
    %v953 = vand.u32 %v833, 65535
    %v954 = vshra.s32 %v833, 16
    %v955 = vcvt.s32.f32 %v953
    %v956 = vcvt.s32.f32 %v954
    %957 = vmin.xlane.f32.xlu0 %v956
    %v958 = vpop.xlane.xlu0 %957
    %vm959 = vcmp.eq.f32.partialorder %v956, %v958
    %v960 = vsel %vm959, %v955, inf
    %961 = vmin.xlane.f32.xlu0 %v960
    %v962 = vpop.xlane.xlu0 %961
    %v963 = vcvt.f32.s32 %v962
    %v964 = vcvt.f32.s32 %v958
    %v965 = vshll.u32 %v964, 16
    %v966 = vadd.s32 %v965, %v963
    %v967 = vand.u32 %v834, 65535
    %v968 = vshra.s32 %v834, 16
    %v969 = vcvt.s32.f32 %v967
    %v970 = vcvt.s32.f32 %v968
    %971 = vmin.xlane.f32.xlu0 %v970
    %v972 = vpop.xlane.xlu0 %971
    %vm973 = vcmp.eq.f32.partialorder %v970, %v972
    %v974 = vsel %vm973, %v969, inf
    %975 = vmin.xlane.f32.xlu0 %v974
    %v976 = vpop.xlane.xlu0 %975
    %v977 = vcvt.f32.s32 %v976
    %v978 = vcvt.f32.s32 %v972
    %v979 = vshll.u32 %v978, 16
    %v980 = vadd.s32 %v979, %v977
    %v981 = vand.u32 %v835, 65535
    %v982 = vshra.s32 %v835, 16
    %v983 = vcvt.s32.f32 %v981
    %v984 = vcvt.s32.f32 %v982
    %985 = vmin.xlane.f32.xlu0 %v984
    %v986 = vpop.xlane.xlu0 %985
    %vm987 = vcmp.eq.f32.partialorder %v984, %v986
    %v988 = vsel %vm987, %v983, inf
    %989 = vmin.xlane.f32.xlu0 %v988
    %v990 = vpop.xlane.xlu0 %989
    %v991 = vcvt.f32.s32 %v990
    %v992 = vcvt.f32.s32 %v986
    %v993 = vshll.u32 %v992, 16
    %v994 = vadd.s32 %v993, %v991
    %v995 = vand.u32 %v836, 65535
    %v996 = vshra.s32 %v836, 16
    %v997 = vcvt.s32.f32 %v995
    %v998 = vcvt.s32.f32 %v996
    %999 = vmin.xlane.f32.xlu0 %v998
    %v1000 = vpop.xlane.xlu0 %999
    %vm1001 = vcmp.eq.f32.partialorder %v998, %v1000
    %v1002 = vsel %vm1001, %v997, inf
    %1003 = vmin.xlane.f32.xlu0 %v1002
    %v1004 = vpop.xlane.xlu0 %1003
    %v1005 = vcvt.f32.s32 %v1004
    %v1006 = vcvt.f32.s32 %v1000
    %v1007 = vshll.u32 %v1006, 16
    %v1008 = vadd.s32 %v1007, %v1005
    %v1009 = vand.u32 %v837, 65535
    %v1010 = vshra.s32 %v837, 16
    %v1011 = vcvt.s32.f32 %v1009
    %v1012 = vcvt.s32.f32 %v1010
    %1013 = vmin.xlane.f32.xlu0 %v1012
    %v1014 = vpop.xlane.xlu0 %1013
    %vm1015 = vcmp.eq.f32.partialorder %v1012, %v1014
    %v1016 = vsel %vm1015, %v1011, inf
    %1017 = vmin.xlane.f32.xlu0 %v1016
    %v1018 = vpop.xlane.xlu0 %1017
    %v1019 = vcvt.f32.s32 %v1018
    %v1020 = vcvt.f32.s32 %v1014
    %v1021 = vshll.u32 %v1020, 16
    %v1022 = vadd.s32 %v1021, %v1019
    %v1023 = vand.u32 %v838, 65535
    %v1024 = vshra.s32 %v838, 16
    %v1025 = vcvt.s32.f32 %v1023
    %v1026 = vcvt.s32.f32 %v1024
    %1027 = vmin.xlane.f32.xlu0 %v1026
    %v1028 = vpop.xlane.xlu0 %1027
    %vm1029 = vcmp.eq.f32.partialorder %v1026, %v1028
    %v1030 = vsel %vm1029, %v1025, inf
    %1031 = vmin.xlane.f32.xlu0 %v1030
    %v1032 = vpop.xlane.xlu0 %1031
    %v1033 = vcvt.f32.s32 %v1032
    %v1034 = vcvt.f32.s32 %v1028
    %v1035 = vshll.u32 %v1034, 16
    %v1036 = vadd.s32 %v1035, %v1033
    %v1037 = vand.u32 %v839, 65535
    %v1038 = vshra.s32 %v839, 16
    %v1039 = vcvt.s32.f32 %v1037
    %v1040 = vcvt.s32.f32 %v1038
    %1041 = vmin.xlane.f32.xlu0 %v1040
    %v1042 = vpop.xlane.xlu0 %1041
    %vm1043 = vcmp.eq.f32.partialorder %v1040, %v1042
    %v1044 = vsel %vm1043, %v1039, inf
    %1045 = vmin.xlane.f32.xlu0 %v1044
    %v1046 = vpop.xlane.xlu0 %1045
    %v1047 = vcvt.f32.s32 %v1046
    %v1048 = vcvt.f32.s32 %v1042
    %v1049 = vshll.u32 %v1048, 16
    %v1050 = vadd.s32 %v1049, %v1047
    %v1051 = vand.u32 %v840, 65535
    %v1052 = vshra.s32 %v840, 16
    %v1053 = vcvt.s32.f32 %v1051
    %v1054 = vcvt.s32.f32 %v1052
    %1055 = vmin.xlane.f32.xlu0 %v1054
    %v1056 = vpop.xlane.xlu0 %1055
    %vm1057 = vcmp.eq.f32.partialorder %v1054, %v1056
    %v1058 = vsel %vm1057, %v1053, inf
    %1059 = vmin.xlane.f32.xlu0 %v1058
    %v1060 = vpop.xlane.xlu0 %1059
    %v1061 = vcvt.f32.s32 %v1060
    %v1062 = vcvt.f32.s32 %v1056
    %v1063 = vshll.u32 %v1062, 16
    %v1064 = vadd.s32 %v1063, %v1061
    %vm1065 = vcmp.eq.s32.totalorder %v825, %v854
    %vm1066 = vcmp.eq.s32.totalorder %v826, %v868
    %vm1067 = vcmp.eq.s32.totalorder %v827, %v882
    %vm1068 = vcmp.eq.s32.totalorder %v828, %v896
    %vm1069 = vcmp.eq.s32.totalorder %v829, %v910
    %vm1070 = vcmp.eq.s32.totalorder %v830, %v924
    %vm1071 = vcmp.eq.s32.totalorder %v831, %v938
    %vm1072 = vcmp.eq.s32.totalorder %v832, %v952
    %vm1073 = vcmp.eq.s32.totalorder %v833, %v966
    %vm1074 = vcmp.eq.s32.totalorder %v834, %v980
    %vm1075 = vcmp.eq.s32.totalorder %v835, %v994
    %vm1076 = vcmp.eq.s32.totalorder %v836, %v1008
    %vm1077 = vcmp.eq.s32.totalorder %v837, %v1022
    %vm1078 = vcmp.eq.s32.totalorder %v838, %v1036
    %vm1079 = vcmp.eq.s32.totalorder %v839, %v1050
    %vm1080 = vcmp.eq.s32.totalorder %v840, %v1064
    %vm1081 = vmor %vm729, %vm1065
    %vm1082 = vmor %vm730, %vm1066
    %vm1083 = vmor %vm731, %vm1067
    %vm1084 = vmor %vm732, %vm1068
    %vm1085 = vmor %vm733, %vm1069
    %vm1086 = vmor %vm734, %vm1070
    %vm1087 = vmor %vm735, %vm1071
    %vm1088 = vmor %vm736, %vm1072
    %vm1089 = vmor %vm737, %vm1073
    %vm1090 = vmor %vm738, %vm1074
    %vm1091 = vmor %vm739, %vm1075
    %vm1092 = vmor %vm740, %vm1076
    %vm1093 = vmor %vm741, %vm1077
    %vm1094 = vmor %vm742, %vm1078
    %vm1095 = vmor %vm743, %vm1079
    %vm1096 = vmor %vm744, %vm1080
    %v1097 = vsel %vm1065, 2130706432, %v825
    %v1098 = vsel %vm1066, 2130706432, %v826
    %v1099 = vsel %vm1067, 2130706432, %v827
    %v1100 = vsel %vm1068, 2130706432, %v828
    %v1101 = vsel %vm1069, 2130706432, %v829
    %v1102 = vsel %vm1070, 2130706432, %v830
    %v1103 = vsel %vm1071, 2130706432, %v831
    %v1104 = vsel %vm1072, 2130706432, %v832
    %v1105 = vsel %vm1073, 2130706432, %v833
    %v1106 = vsel %vm1074, 2130706432, %v834
    %v1107 = vsel %vm1075, 2130706432, %v835
    %v1108 = vsel %vm1076, 2130706432, %v836
    %v1109 = vsel %vm1077, 2130706432, %v837
    %v1110 = vsel %vm1078, 2130706432, %v838
    %v1111 = vsel %vm1079, 2130706432, %v839
    %v1112 = vsel %vm1080, 2130706432, %v840
    %v1113 = vand.u32 %v1097, 65535
    %v1114 = vshra.s32 %v1097, 16
    %v1115 = vcvt.s32.f32 %v1113
    %v1116 = vcvt.s32.f32 %v1114
    %1117 = vmin.xlane.f32.xlu0 %v1116
    %v1118 = vpop.xlane.xlu0 %1117
    %vm1119 = vcmp.eq.f32.partialorder %v1116, %v1118
    %v1120 = vsel %vm1119, %v1115, inf
    %1121 = vmin.xlane.f32.xlu0 %v1120
    %v1122 = vpop.xlane.xlu0 %1121
    %v1123 = vcvt.f32.s32 %v1122
    %v1124 = vcvt.f32.s32 %v1118
    %v1125 = vshll.u32 %v1124, 16
    %v1126 = vadd.s32 %v1125, %v1123
    %v1127 = vand.u32 %v1098, 65535
    %v1128 = vshra.s32 %v1098, 16
    %v1129 = vcvt.s32.f32 %v1127
    %v1130 = vcvt.s32.f32 %v1128
    %1131 = vmin.xlane.f32.xlu0 %v1130
    %v1132 = vpop.xlane.xlu0 %1131
    %vm1133 = vcmp.eq.f32.partialorder %v1130, %v1132
    %v1134 = vsel %vm1133, %v1129, inf
    %1135 = vmin.xlane.f32.xlu0 %v1134
    %v1136 = vpop.xlane.xlu0 %1135
    %v1137 = vcvt.f32.s32 %v1136
    %v1138 = vcvt.f32.s32 %v1132
    %v1139 = vshll.u32 %v1138, 16
    %v1140 = vadd.s32 %v1139, %v1137
    %v1141 = vand.u32 %v1099, 65535
    %v1142 = vshra.s32 %v1099, 16
    %v1143 = vcvt.s32.f32 %v1141
    %v1144 = vcvt.s32.f32 %v1142
    %1145 = vmin.xlane.f32.xlu0 %v1144
    %v1146 = vpop.xlane.xlu0 %1145
    %vm1147 = vcmp.eq.f32.partialorder %v1144, %v1146
    %v1148 = vsel %vm1147, %v1143, inf
    %1149 = vmin.xlane.f32.xlu0 %v1148
    %v1150 = vpop.xlane.xlu0 %1149
    %v1151 = vcvt.f32.s32 %v1150
    %v1152 = vcvt.f32.s32 %v1146
    %v1153 = vshll.u32 %v1152, 16
    %v1154 = vadd.s32 %v1153, %v1151
    %v1155 = vand.u32 %v1100, 65535
    %v1156 = vshra.s32 %v1100, 16
    %v1157 = vcvt.s32.f32 %v1155
    %v1158 = vcvt.s32.f32 %v1156
    %1159 = vmin.xlane.f32.xlu0 %v1158
    %v1160 = vpop.xlane.xlu0 %1159
    %vm1161 = vcmp.eq.f32.partialorder %v1158, %v1160
    %v1162 = vsel %vm1161, %v1157, inf
    %1163 = vmin.xlane.f32.xlu0 %v1162
    %v1164 = vpop.xlane.xlu0 %1163
    %v1165 = vcvt.f32.s32 %v1164
    %v1166 = vcvt.f32.s32 %v1160
    %v1167 = vshll.u32 %v1166, 16
    %v1168 = vadd.s32 %v1167, %v1165
    %v1169 = vand.u32 %v1101, 65535
    %v1170 = vshra.s32 %v1101, 16
    %v1171 = vcvt.s32.f32 %v1169
    %v1172 = vcvt.s32.f32 %v1170
    %1173 = vmin.xlane.f32.xlu0 %v1172
    %v1174 = vpop.xlane.xlu0 %1173
    %vm1175 = vcmp.eq.f32.partialorder %v1172, %v1174
    %v1176 = vsel %vm1175, %v1171, inf
    %1177 = vmin.xlane.f32.xlu0 %v1176
    %v1178 = vpop.xlane.xlu0 %1177
    %v1179 = vcvt.f32.s32 %v1178
    %v1180 = vcvt.f32.s32 %v1174
    %v1181 = vshll.u32 %v1180, 16
    %v1182 = vadd.s32 %v1181, %v1179
    %v1183 = vand.u32 %v1102, 65535
    %v1184 = vshra.s32 %v1102, 16
    %v1185 = vcvt.s32.f32 %v1183
    %v1186 = vcvt.s32.f32 %v1184
    %1187 = vmin.xlane.f32.xlu0 %v1186
    %v1188 = vpop.xlane.xlu0 %1187
    %vm1189 = vcmp.eq.f32.partialorder %v1186, %v1188
    %v1190 = vsel %vm1189, %v1185, inf
    %1191 = vmin.xlane.f32.xlu0 %v1190
    %v1192 = vpop.xlane.xlu0 %1191
    %v1193 = vcvt.f32.s32 %v1192
    %v1194 = vcvt.f32.s32 %v1188
    %v1195 = vshll.u32 %v1194, 16
    %v1196 = vadd.s32 %v1195, %v1193
    %v1197 = vand.u32 %v1103, 65535
    %v1198 = vshra.s32 %v1103, 16
    %v1199 = vcvt.s32.f32 %v1197
    %v1200 = vcvt.s32.f32 %v1198
    %1201 = vmin.xlane.f32.xlu0 %v1200
    %v1202 = vpop.xlane.xlu0 %1201
    %vm1203 = vcmp.eq.f32.partialorder %v1200, %v1202
    %v1204 = vsel %vm1203, %v1199, inf
    %1205 = vmin.xlane.f32.xlu0 %v1204
    %v1206 = vpop.xlane.xlu0 %1205
    %v1207 = vcvt.f32.s32 %v1206
    %v1208 = vcvt.f32.s32 %v1202
    %v1209 = vshll.u32 %v1208, 16
    %v1210 = vadd.s32 %v1209, %v1207
    %v1211 = vand.u32 %v1104, 65535
    %v1212 = vshra.s32 %v1104, 16
    %v1213 = vcvt.s32.f32 %v1211
    %v1214 = vcvt.s32.f32 %v1212
    %1215 = vmin.xlane.f32.xlu0 %v1214
    %v1216 = vpop.xlane.xlu0 %1215
    %vm1217 = vcmp.eq.f32.partialorder %v1214, %v1216
    %v1218 = vsel %vm1217, %v1213, inf
    %1219 = vmin.xlane.f32.xlu0 %v1218
    %v1220 = vpop.xlane.xlu0 %1219
    %v1221 = vcvt.f32.s32 %v1220
    %v1222 = vcvt.f32.s32 %v1216
    %v1223 = vshll.u32 %v1222, 16
    %v1224 = vadd.s32 %v1223, %v1221
    %v1225 = vand.u32 %v1105, 65535
    %v1226 = vshra.s32 %v1105, 16
    %v1227 = vcvt.s32.f32 %v1225
    %v1228 = vcvt.s32.f32 %v1226
    %1229 = vmin.xlane.f32.xlu0 %v1228
    %v1230 = vpop.xlane.xlu0 %1229
    %vm1231 = vcmp.eq.f32.partialorder %v1228, %v1230
    %v1232 = vsel %vm1231, %v1227, inf
    %1233 = vmin.xlane.f32.xlu0 %v1232
    %v1234 = vpop.xlane.xlu0 %1233
    %v1235 = vcvt.f32.s32 %v1234
    %v1236 = vcvt.f32.s32 %v1230
    %v1237 = vshll.u32 %v1236, 16
    %v1238 = vadd.s32 %v1237, %v1235
    %v1239 = vand.u32 %v1106, 65535
    %v1240 = vshra.s32 %v1106, 16
    %v1241 = vcvt.s32.f32 %v1239
    %v1242 = vcvt.s32.f32 %v1240
    %1243 = vmin.xlane.f32.xlu0 %v1242
    %v1244 = vpop.xlane.xlu0 %1243
    %vm1245 = vcmp.eq.f32.partialorder %v1242, %v1244
    %v1246 = vsel %vm1245, %v1241, inf
    %1247 = vmin.xlane.f32.xlu0 %v1246
    %v1248 = vpop.xlane.xlu0 %1247
    %v1249 = vcvt.f32.s32 %v1248
    %v1250 = vcvt.f32.s32 %v1244
    %v1251 = vshll.u32 %v1250, 16
    %v1252 = vadd.s32 %v1251, %v1249
    %v1253 = vand.u32 %v1107, 65535
    %v1254 = vshra.s32 %v1107, 16
    %v1255 = vcvt.s32.f32 %v1253
    %v1256 = vcvt.s32.f32 %v1254
    %1257 = vmin.xlane.f32.xlu0 %v1256
    %v1258 = vpop.xlane.xlu0 %1257
    %vm1259 = vcmp.eq.f32.partialorder %v1256, %v1258
    %v1260 = vsel %vm1259, %v1255, inf
    %1261 = vmin.xlane.f32.xlu0 %v1260
    %v1262 = vpop.xlane.xlu0 %1261
    %v1263 = vcvt.f32.s32 %v1262
    %v1264 = vcvt.f32.s32 %v1258
    %v1265 = vshll.u32 %v1264, 16
    %v1266 = vadd.s32 %v1265, %v1263
    %v1267 = vand.u32 %v1108, 65535
    %v1268 = vshra.s32 %v1108, 16
    %v1269 = vcvt.s32.f32 %v1267
    %v1270 = vcvt.s32.f32 %v1268
    %1271 = vmin.xlane.f32.xlu0 %v1270
    %v1272 = vpop.xlane.xlu0 %1271
    %vm1273 = vcmp.eq.f32.partialorder %v1270, %v1272
    %v1274 = vsel %vm1273, %v1269, inf
    %1275 = vmin.xlane.f32.xlu0 %v1274
    %v1276 = vpop.xlane.xlu0 %1275
    %v1277 = vcvt.f32.s32 %v1276
    %v1278 = vcvt.f32.s32 %v1272
    %v1279 = vshll.u32 %v1278, 16
    %v1280 = vadd.s32 %v1279, %v1277
    %v1281 = vand.u32 %v1109, 65535
    %v1282 = vshra.s32 %v1109, 16
    %v1283 = vcvt.s32.f32 %v1281
    %v1284 = vcvt.s32.f32 %v1282
    %1285 = vmin.xlane.f32.xlu0 %v1284
    %v1286 = vpop.xlane.xlu0 %1285
    %vm1287 = vcmp.eq.f32.partialorder %v1284, %v1286
    %v1288 = vsel %vm1287, %v1283, inf
    %1289 = vmin.xlane.f32.xlu0 %v1288
    %v1290 = vpop.xlane.xlu0 %1289
    %v1291 = vcvt.f32.s32 %v1290
    %v1292 = vcvt.f32.s32 %v1286
    %v1293 = vshll.u32 %v1292, 16
    %v1294 = vadd.s32 %v1293, %v1291
    %v1295 = vand.u32 %v1110, 65535
    %v1296 = vshra.s32 %v1110, 16
    %v1297 = vcvt.s32.f32 %v1295
    %v1298 = vcvt.s32.f32 %v1296
    %1299 = vmin.xlane.f32.xlu0 %v1298
    %v1300 = vpop.xlane.xlu0 %1299
    %vm1301 = vcmp.eq.f32.partialorder %v1298, %v1300
    %v1302 = vsel %vm1301, %v1297, inf
    %1303 = vmin.xlane.f32.xlu0 %v1302
    %v1304 = vpop.xlane.xlu0 %1303
    %v1305 = vcvt.f32.s32 %v1304
    %v1306 = vcvt.f32.s32 %v1300
    %v1307 = vshll.u32 %v1306, 16
    %v1308 = vadd.s32 %v1307, %v1305
    %v1309 = vand.u32 %v1111, 65535
    %v1310 = vshra.s32 %v1111, 16
    %v1311 = vcvt.s32.f32 %v1309
    %v1312 = vcvt.s32.f32 %v1310
    %1313 = vmin.xlane.f32.xlu0 %v1312
    %v1314 = vpop.xlane.xlu0 %1313
    %vm1315 = vcmp.eq.f32.partialorder %v1312, %v1314
    %v1316 = vsel %vm1315, %v1311, inf
    %1317 = vmin.xlane.f32.xlu0 %v1316
    %v1318 = vpop.xlane.xlu0 %1317
    %v1319 = vcvt.f32.s32 %v1318
    %v1320 = vcvt.f32.s32 %v1314
    %v1321 = vshll.u32 %v1320, 16
    %v1322 = vadd.s32 %v1321, %v1319
    %v1323 = vand.u32 %v1112, 65535
    %v1324 = vshra.s32 %v1112, 16
    %v1325 = vcvt.s32.f32 %v1323
    %v1326 = vcvt.s32.f32 %v1324
    %1327 = vmin.xlane.f32.xlu0 %v1326
    %v1328 = vpop.xlane.xlu0 %1327
    %vm1329 = vcmp.eq.f32.partialorder %v1326, %v1328
    %v1330 = vsel %vm1329, %v1325, inf
    %1331 = vmin.xlane.f32.xlu0 %v1330
    %v1332 = vpop.xlane.xlu0 %1331
    %v1333 = vcvt.f32.s32 %v1332
    %v1334 = vcvt.f32.s32 %v1328
    %v1335 = vshll.u32 %v1334, 16
    %v1336 = vadd.s32 %v1335, %v1333
    %vm1337 = vcmp.eq.s32.totalorder %v1097, %v1126
    %vm1338 = vcmp.eq.s32.totalorder %v1098, %v1140
    %vm1339 = vcmp.eq.s32.totalorder %v1099, %v1154
    %vm1340 = vcmp.eq.s32.totalorder %v1100, %v1168
    %vm1341 = vcmp.eq.s32.totalorder %v1101, %v1182
    %vm1342 = vcmp.eq.s32.totalorder %v1102, %v1196
    %vm1343 = vcmp.eq.s32.totalorder %v1103, %v1210
    %vm1344 = vcmp.eq.s32.totalorder %v1104, %v1224
    %vm1345 = vcmp.eq.s32.totalorder %v1105, %v1238
    %vm1346 = vcmp.eq.s32.totalorder %v1106, %v1252
    %vm1347 = vcmp.eq.s32.totalorder %v1107, %v1266
    %vm1348 = vcmp.eq.s32.totalorder %v1108, %v1280
    %vm1349 = vcmp.eq.s32.totalorder %v1109, %v1294
    %vm1350 = vcmp.eq.s32.totalorder %v1110, %v1308
    %vm1351 = vcmp.eq.s32.totalorder %v1111, %v1322
    %vm1352 = vcmp.eq.s32.totalorder %v1112, %v1336
    %vm1353 = vmor %vm1081, %vm1337
    %vm1354 = vmor %vm1082, %vm1338
    %vm1355 = vmor %vm1083, %vm1339
    %vm1356 = vmor %vm1084, %vm1340
    %vm1357 = vmor %vm1085, %vm1341
    %vm1358 = vmor %vm1086, %vm1342
    %vm1359 = vmor %vm1087, %vm1343
    %vm1360 = vmor %vm1088, %vm1344
    %vm1361 = vmor %vm1089, %vm1345
    %vm1362 = vmor %vm1090, %vm1346
    %vm1363 = vmor %vm1091, %vm1347
    %vm1364 = vmor %vm1092, %vm1348
    %vm1365 = vmor %vm1093, %vm1349
    %vm1366 = vmor %vm1094, %vm1350
    %vm1367 = vmor %vm1095, %vm1351
    %vm1368 = vmor %vm1096, %vm1352
    %v1369 = vsel %vm1337, 2130706432, %v1097
    %v1370 = vsel %vm1338, 2130706432, %v1098
    %v1371 = vsel %vm1339, 2130706432, %v1099
    %v1372 = vsel %vm1340, 2130706432, %v1100
    %v1373 = vsel %vm1341, 2130706432, %v1101
    %v1374 = vsel %vm1342, 2130706432, %v1102
    %v1375 = vsel %vm1343, 2130706432, %v1103
    %v1376 = vsel %vm1344, 2130706432, %v1104
    %v1377 = vsel %vm1345, 2130706432, %v1105
    %v1378 = vsel %vm1346, 2130706432, %v1106
    %v1379 = vsel %vm1347, 2130706432, %v1107
    %v1380 = vsel %vm1348, 2130706432, %v1108
    %v1381 = vsel %vm1349, 2130706432, %v1109
    %v1382 = vsel %vm1350, 2130706432, %v1110
    %v1383 = vsel %vm1351, 2130706432, %v1111
    %v1384 = vsel %vm1352, 2130706432, %v1112
    %v1385 = vand.u32 %v1369, 65535
    %v1386 = vshra.s32 %v1369, 16
    %v1387 = vcvt.s32.f32 %v1385
    %v1388 = vcvt.s32.f32 %v1386
    %1389 = vmin.xlane.f32.xlu0 %v1388
    %v1390 = vpop.xlane.xlu0 %1389
    %vm1391 = vcmp.eq.f32.partialorder %v1388, %v1390
    %v1392 = vsel %vm1391, %v1387, inf
    %1393 = vmin.xlane.f32.xlu0 %v1392
    %v1394 = vpop.xlane.xlu0 %1393
    %v1395 = vcvt.f32.s32 %v1394
    %v1396 = vcvt.f32.s32 %v1390
    %v1397 = vshll.u32 %v1396, 16
    %v1398 = vadd.s32 %v1397, %v1395
    %v1399 = vand.u32 %v1370, 65535
    %v1400 = vshra.s32 %v1370, 16
    %v1401 = vcvt.s32.f32 %v1399
    %v1402 = vcvt.s32.f32 %v1400
    %1403 = vmin.xlane.f32.xlu0 %v1402
    %v1404 = vpop.xlane.xlu0 %1403
    %vm1405 = vcmp.eq.f32.partialorder %v1402, %v1404
    %v1406 = vsel %vm1405, %v1401, inf
    %1407 = vmin.xlane.f32.xlu0 %v1406
    %v1408 = vpop.xlane.xlu0 %1407
    %v1409 = vcvt.f32.s32 %v1408
    %v1410 = vcvt.f32.s32 %v1404
    %v1411 = vshll.u32 %v1410, 16
    %v1412 = vadd.s32 %v1411, %v1409
    %v1413 = vand.u32 %v1371, 65535
    %v1414 = vshra.s32 %v1371, 16
    %v1415 = vcvt.s32.f32 %v1413
    %v1416 = vcvt.s32.f32 %v1414
    %1417 = vmin.xlane.f32.xlu0 %v1416
    %v1418 = vpop.xlane.xlu0 %1417
    %vm1419 = vcmp.eq.f32.partialorder %v1416, %v1418
    %v1420 = vsel %vm1419, %v1415, inf
    %1421 = vmin.xlane.f32.xlu0 %v1420
    %v1422 = vpop.xlane.xlu0 %1421
    %v1423 = vcvt.f32.s32 %v1422
    %v1424 = vcvt.f32.s32 %v1418
    %v1425 = vshll.u32 %v1424, 16
    %v1426 = vadd.s32 %v1425, %v1423
    %v1427 = vand.u32 %v1372, 65535
    %v1428 = vshra.s32 %v1372, 16
    %v1429 = vcvt.s32.f32 %v1427
    %v1430 = vcvt.s32.f32 %v1428
    %1431 = vmin.xlane.f32.xlu0 %v1430
    %v1432 = vpop.xlane.xlu0 %1431
    %vm1433 = vcmp.eq.f32.partialorder %v1430, %v1432
    %v1434 = vsel %vm1433, %v1429, inf
    %1435 = vmin.xlane.f32.xlu0 %v1434
    %v1436 = vpop.xlane.xlu0 %1435
    %v1437 = vcvt.f32.s32 %v1436
    %v1438 = vcvt.f32.s32 %v1432
    %v1439 = vshll.u32 %v1438, 16
    %v1440 = vadd.s32 %v1439, %v1437
    %v1441 = vand.u32 %v1373, 65535
    %v1442 = vshra.s32 %v1373, 16
    %v1443 = vcvt.s32.f32 %v1441
    %v1444 = vcvt.s32.f32 %v1442
    %1445 = vmin.xlane.f32.xlu0 %v1444
    %v1446 = vpop.xlane.xlu0 %1445
    %vm1447 = vcmp.eq.f32.partialorder %v1444, %v1446
    %v1448 = vsel %vm1447, %v1443, inf
    %1449 = vmin.xlane.f32.xlu0 %v1448
    %v1450 = vpop.xlane.xlu0 %1449
    %v1451 = vcvt.f32.s32 %v1450
    %v1452 = vcvt.f32.s32 %v1446
    %v1453 = vshll.u32 %v1452, 16
    %v1454 = vadd.s32 %v1453, %v1451
    %v1455 = vand.u32 %v1374, 65535
    %v1456 = vshra.s32 %v1374, 16
    %v1457 = vcvt.s32.f32 %v1455
    %v1458 = vcvt.s32.f32 %v1456
    %1459 = vmin.xlane.f32.xlu0 %v1458
    %v1460 = vpop.xlane.xlu0 %1459
    %vm1461 = vcmp.eq.f32.partialorder %v1458, %v1460
    %v1462 = vsel %vm1461, %v1457, inf
    %1463 = vmin.xlane.f32.xlu0 %v1462
    %v1464 = vpop.xlane.xlu0 %1463
    %v1465 = vcvt.f32.s32 %v1464
    %v1466 = vcvt.f32.s32 %v1460
    %v1467 = vshll.u32 %v1466, 16
    %v1468 = vadd.s32 %v1467, %v1465
    %v1469 = vand.u32 %v1375, 65535
    %v1470 = vshra.s32 %v1375, 16
    %v1471 = vcvt.s32.f32 %v1469
    %v1472 = vcvt.s32.f32 %v1470
    %1473 = vmin.xlane.f32.xlu0 %v1472
    %v1474 = vpop.xlane.xlu0 %1473
    %vm1475 = vcmp.eq.f32.partialorder %v1472, %v1474
    %v1476 = vsel %vm1475, %v1471, inf
    %1477 = vmin.xlane.f32.xlu0 %v1476
    %v1478 = vpop.xlane.xlu0 %1477
    %v1479 = vcvt.f32.s32 %v1478
    %v1480 = vcvt.f32.s32 %v1474
    %v1481 = vshll.u32 %v1480, 16
    %v1482 = vadd.s32 %v1481, %v1479
    %v1483 = vand.u32 %v1376, 65535
    %v1484 = vshra.s32 %v1376, 16
    %v1485 = vcvt.s32.f32 %v1483
    %v1486 = vcvt.s32.f32 %v1484
    %1487 = vmin.xlane.f32.xlu0 %v1486
    %v1488 = vpop.xlane.xlu0 %1487
    %vm1489 = vcmp.eq.f32.partialorder %v1486, %v1488
    %v1490 = vsel %vm1489, %v1485, inf
    %1491 = vmin.xlane.f32.xlu0 %v1490
    %v1492 = vpop.xlane.xlu0 %1491
    %v1493 = vcvt.f32.s32 %v1492
    %v1494 = vcvt.f32.s32 %v1488
    %v1495 = vshll.u32 %v1494, 16
    %v1496 = vadd.s32 %v1495, %v1493
    %v1497 = vand.u32 %v1377, 65535
    %v1498 = vshra.s32 %v1377, 16
    %v1499 = vcvt.s32.f32 %v1497
    %v1500 = vcvt.s32.f32 %v1498
    %1501 = vmin.xlane.f32.xlu0 %v1500
    %v1502 = vpop.xlane.xlu0 %1501
    %vm1503 = vcmp.eq.f32.partialorder %v1500, %v1502
    %v1504 = vsel %vm1503, %v1499, inf
    %1505 = vmin.xlane.f32.xlu0 %v1504
    %v1506 = vpop.xlane.xlu0 %1505
    %v1507 = vcvt.f32.s32 %v1506
    %v1508 = vcvt.f32.s32 %v1502
    %v1509 = vshll.u32 %v1508, 16
    %v1510 = vadd.s32 %v1509, %v1507
    %v1511 = vand.u32 %v1378, 65535
    %v1512 = vshra.s32 %v1378, 16
    %v1513 = vcvt.s32.f32 %v1511
    %v1514 = vcvt.s32.f32 %v1512
    %1515 = vmin.xlane.f32.xlu0 %v1514
    %v1516 = vpop.xlane.xlu0 %1515
    %vm1517 = vcmp.eq.f32.partialorder %v1514, %v1516
    %v1518 = vsel %vm1517, %v1513, inf
    %1519 = vmin.xlane.f32.xlu0 %v1518
    %v1520 = vpop.xlane.xlu0 %1519
    %v1521 = vcvt.f32.s32 %v1520
    %v1522 = vcvt.f32.s32 %v1516
    %v1523 = vshll.u32 %v1522, 16
    %v1524 = vadd.s32 %v1523, %v1521
    %v1525 = vand.u32 %v1379, 65535
    %v1526 = vshra.s32 %v1379, 16
    %v1527 = vcvt.s32.f32 %v1525
    %v1528 = vcvt.s32.f32 %v1526
    %1529 = vmin.xlane.f32.xlu0 %v1528
    %v1530 = vpop.xlane.xlu0 %1529
    %vm1531 = vcmp.eq.f32.partialorder %v1528, %v1530
    %v1532 = vsel %vm1531, %v1527, inf
    %1533 = vmin.xlane.f32.xlu0 %v1532
    %v1534 = vpop.xlane.xlu0 %1533
    %v1535 = vcvt.f32.s32 %v1534
    %v1536 = vcvt.f32.s32 %v1530
    %v1537 = vshll.u32 %v1536, 16
    %v1538 = vadd.s32 %v1537, %v1535
    %v1539 = vand.u32 %v1380, 65535
    %v1540 = vshra.s32 %v1380, 16
    %v1541 = vcvt.s32.f32 %v1539
    %v1542 = vcvt.s32.f32 %v1540
    %1543 = vmin.xlane.f32.xlu0 %v1542
    %v1544 = vpop.xlane.xlu0 %1543
    %vm1545 = vcmp.eq.f32.partialorder %v1542, %v1544
    %v1546 = vsel %vm1545, %v1541, inf
    %1547 = vmin.xlane.f32.xlu0 %v1546
    %v1548 = vpop.xlane.xlu0 %1547
    %v1549 = vcvt.f32.s32 %v1548
    %v1550 = vcvt.f32.s32 %v1544
    %v1551 = vshll.u32 %v1550, 16
    %v1552 = vadd.s32 %v1551, %v1549
    %v1553 = vand.u32 %v1381, 65535
    %v1554 = vshra.s32 %v1381, 16
    %v1555 = vcvt.s32.f32 %v1553
    %v1556 = vcvt.s32.f32 %v1554
    %1557 = vmin.xlane.f32.xlu0 %v1556
    %v1558 = vpop.xlane.xlu0 %1557
    %vm1559 = vcmp.eq.f32.partialorder %v1556, %v1558
    %v1560 = vsel %vm1559, %v1555, inf
    %1561 = vmin.xlane.f32.xlu0 %v1560
    %v1562 = vpop.xlane.xlu0 %1561
    %v1563 = vcvt.f32.s32 %v1562
    %v1564 = vcvt.f32.s32 %v1558
    %v1565 = vshll.u32 %v1564, 16
    %v1566 = vadd.s32 %v1565, %v1563
    %v1567 = vand.u32 %v1382, 65535
    %v1568 = vshra.s32 %v1382, 16
    %v1569 = vcvt.s32.f32 %v1567
    %v1570 = vcvt.s32.f32 %v1568
    %1571 = vmin.xlane.f32.xlu0 %v1570
    %v1572 = vpop.xlane.xlu0 %1571
    %vm1573 = vcmp.eq.f32.partialorder %v1570, %v1572
    %v1574 = vsel %vm1573, %v1569, inf
    %1575 = vmin.xlane.f32.xlu0 %v1574
    %v1576 = vpop.xlane.xlu0 %1575
    %v1577 = vcvt.f32.s32 %v1576
    %v1578 = vcvt.f32.s32 %v1572
    %v1579 = vshll.u32 %v1578, 16
    %v1580 = vadd.s32 %v1579, %v1577
    %v1581 = vand.u32 %v1383, 65535
    %v1582 = vshra.s32 %v1383, 16
    %v1583 = vcvt.s32.f32 %v1581
    %v1584 = vcvt.s32.f32 %v1582
    %1585 = vmin.xlane.f32.xlu0 %v1584
    %v1586 = vpop.xlane.xlu0 %1585
    %vm1587 = vcmp.eq.f32.partialorder %v1584, %v1586
    %v1588 = vsel %vm1587, %v1583, inf
    %1589 = vmin.xlane.f32.xlu0 %v1588
    %v1590 = vpop.xlane.xlu0 %1589
    %v1591 = vcvt.f32.s32 %v1590
    %v1592 = vcvt.f32.s32 %v1586
    %v1593 = vshll.u32 %v1592, 16
    %v1594 = vadd.s32 %v1593, %v1591
    %v1595 = vand.u32 %v1384, 65535
    %v1596 = vshra.s32 %v1384, 16
    %v1597 = vcvt.s32.f32 %v1595
    %v1598 = vcvt.s32.f32 %v1596
    %1599 = vmin.xlane.f32.xlu0 %v1598
    %v1600 = vpop.xlane.xlu0 %1599
    %vm1601 = vcmp.eq.f32.partialorder %v1598, %v1600
    %v1602 = vsel %vm1601, %v1597, inf
    %1603 = vmin.xlane.f32.xlu0 %v1602
    %v1604 = vpop.xlane.xlu0 %1603
    %v1605 = vcvt.f32.s32 %v1604
    %v1606 = vcvt.f32.s32 %v1600
    %v1607 = vshll.u32 %v1606, 16
    %v1608 = vadd.s32 %v1607, %v1605
    %vm1609 = vcmp.eq.s32.totalorder %v1369, %v1398
    %vm1610 = vcmp.eq.s32.totalorder %v1370, %v1412
    %vm1611 = vcmp.eq.s32.totalorder %v1371, %v1426
    %vm1612 = vcmp.eq.s32.totalorder %v1372, %v1440
    %vm1613 = vcmp.eq.s32.totalorder %v1373, %v1454
    %vm1614 = vcmp.eq.s32.totalorder %v1374, %v1468
    %vm1615 = vcmp.eq.s32.totalorder %v1375, %v1482
    %vm1616 = vcmp.eq.s32.totalorder %v1376, %v1496
    %vm1617 = vcmp.eq.s32.totalorder %v1377, %v1510
    %vm1618 = vcmp.eq.s32.totalorder %v1378, %v1524
    %vm1619 = vcmp.eq.s32.totalorder %v1379, %v1538
    %vm1620 = vcmp.eq.s32.totalorder %v1380, %v1552
    %vm1621 = vcmp.eq.s32.totalorder %v1381, %v1566
    %vm1622 = vcmp.eq.s32.totalorder %v1382, %v1580
    %vm1623 = vcmp.eq.s32.totalorder %v1383, %v1594
    %vm1624 = vcmp.eq.s32.totalorder %v1384, %v1608
    %vm1625 = vmor %vm1353, %vm1609
    %vm1626 = vmor %vm1354, %vm1610
    %vm1627 = vmor %vm1355, %vm1611
    %vm1628 = vmor %vm1356, %vm1612
    %vm1629 = vmor %vm1357, %vm1613
    %vm1630 = vmor %vm1358, %vm1614
    %vm1631 = vmor %vm1359, %vm1615
    %vm1632 = vmor %vm1360, %vm1616
    %vm1633 = vmor %vm1361, %vm1617
    %vm1634 = vmor %vm1362, %vm1618
    %vm1635 = vmor %vm1363, %vm1619
    %vm1636 = vmor %vm1364, %vm1620
    %vm1637 = vmor %vm1365, %vm1621
    %vm1638 = vmor %vm1366, %vm1622
    %vm1639 = vmor %vm1367, %vm1623
    %vm1640 = vmor %vm1368, %vm1624
    %v1641 = vsel %vm1609, 2130706432, %v1369
    %v1642 = vsel %vm1610, 2130706432, %v1370
    %v1643 = vsel %vm1611, 2130706432, %v1371
    %v1644 = vsel %vm1612, 2130706432, %v1372
    %v1645 = vsel %vm1613, 2130706432, %v1373
    %v1646 = vsel %vm1614, 2130706432, %v1374
    %v1647 = vsel %vm1615, 2130706432, %v1375
    %v1648 = vsel %vm1616, 2130706432, %v1376
    %v1649 = vsel %vm1617, 2130706432, %v1377
    %v1650 = vsel %vm1618, 2130706432, %v1378
    %v1651 = vsel %vm1619, 2130706432, %v1379
    %v1652 = vsel %vm1620, 2130706432, %v1380
    %v1653 = vsel %vm1621, 2130706432, %v1381
    %v1654 = vsel %vm1622, 2130706432, %v1382
    %v1655 = vsel %vm1623, 2130706432, %v1383
    %v1656 = vsel %vm1624, 2130706432, %v1384
    %v1657 = vand.u32 %v1641, 65535
    %v1658 = vshra.s32 %v1641, 16
    %v1659 = vcvt.s32.f32 %v1657
    %v1660 = vcvt.s32.f32 %v1658
    %1661 = vmin.xlane.f32.xlu0 %v1660
    %v1662 = vpop.xlane.xlu0 %1661
    %vm1663 = vcmp.eq.f32.partialorder %v1660, %v1662
    %v1664 = vsel %vm1663, %v1659, inf
    %1665 = vmin.xlane.f32.xlu0 %v1664
    %v1666 = vpop.xlane.xlu0 %1665
    %v1667 = vcvt.f32.s32 %v1666
    %v1668 = vcvt.f32.s32 %v1662
    %v1669 = vshll.u32 %v1668, 16
    %v1670 = vadd.s32 %v1669, %v1667
    %v1671 = vand.u32 %v1642, 65535
    %v1672 = vshra.s32 %v1642, 16
    %v1673 = vcvt.s32.f32 %v1671
    %v1674 = vcvt.s32.f32 %v1672
    %1675 = vmin.xlane.f32.xlu0 %v1674
    %v1676 = vpop.xlane.xlu0 %1675
    %vm1677 = vcmp.eq.f32.partialorder %v1674, %v1676
    %v1678 = vsel %vm1677, %v1673, inf
    %1679 = vmin.xlane.f32.xlu0 %v1678
    %v1680 = vpop.xlane.xlu0 %1679
    %v1681 = vcvt.f32.s32 %v1680
    %v1682 = vcvt.f32.s32 %v1676
    %v1683 = vshll.u32 %v1682, 16
    %v1684 = vadd.s32 %v1683, %v1681
    %v1685 = vand.u32 %v1643, 65535
    %v1686 = vshra.s32 %v1643, 16
    %v1687 = vcvt.s32.f32 %v1685
    %v1688 = vcvt.s32.f32 %v1686
    %1689 = vmin.xlane.f32.xlu0 %v1688
    %v1690 = vpop.xlane.xlu0 %1689
    %vm1691 = vcmp.eq.f32.partialorder %v1688, %v1690
    %v1692 = vsel %vm1691, %v1687, inf
    %1693 = vmin.xlane.f32.xlu0 %v1692
    %v1694 = vpop.xlane.xlu0 %1693
    %v1695 = vcvt.f32.s32 %v1694
    %v1696 = vcvt.f32.s32 %v1690
    %v1697 = vshll.u32 %v1696, 16
    %v1698 = vadd.s32 %v1697, %v1695
    %v1699 = vand.u32 %v1644, 65535
    %v1700 = vshra.s32 %v1644, 16
    %v1701 = vcvt.s32.f32 %v1699
    %v1702 = vcvt.s32.f32 %v1700
    %1703 = vmin.xlane.f32.xlu0 %v1702
    %v1704 = vpop.xlane.xlu0 %1703
    %vm1705 = vcmp.eq.f32.partialorder %v1702, %v1704
    %v1706 = vsel %vm1705, %v1701, inf
    %1707 = vmin.xlane.f32.xlu0 %v1706
    %v1708 = vpop.xlane.xlu0 %1707
    %v1709 = vcvt.f32.s32 %v1708
    %v1710 = vcvt.f32.s32 %v1704
    %v1711 = vshll.u32 %v1710, 16
    %v1712 = vadd.s32 %v1711, %v1709
    %v1713 = vand.u32 %v1645, 65535
    %v1714 = vshra.s32 %v1645, 16
    %v1715 = vcvt.s32.f32 %v1713
    %v1716 = vcvt.s32.f32 %v1714
    %1717 = vmin.xlane.f32.xlu0 %v1716
    %v1718 = vpop.xlane.xlu0 %1717
    %vm1719 = vcmp.eq.f32.partialorder %v1716, %v1718
    %v1720 = vsel %vm1719, %v1715, inf
    %1721 = vmin.xlane.f32.xlu0 %v1720
    %v1722 = vpop.xlane.xlu0 %1721
    %v1723 = vcvt.f32.s32 %v1722
    %v1724 = vcvt.f32.s32 %v1718
    %v1725 = vshll.u32 %v1724, 16
    %v1726 = vadd.s32 %v1725, %v1723
    %v1727 = vand.u32 %v1646, 65535
    %v1728 = vshra.s32 %v1646, 16
    %v1729 = vcvt.s32.f32 %v1727
    %v1730 = vcvt.s32.f32 %v1728
    %1731 = vmin.xlane.f32.xlu0 %v1730
    %v1732 = vpop.xlane.xlu0 %1731
    %vm1733 = vcmp.eq.f32.partialorder %v1730, %v1732
    %v1734 = vsel %vm1733, %v1729, inf
    %1735 = vmin.xlane.f32.xlu0 %v1734
    %v1736 = vpop.xlane.xlu0 %1735
    %v1737 = vcvt.f32.s32 %v1736
    %v1738 = vcvt.f32.s32 %v1732
    %v1739 = vshll.u32 %v1738, 16
    %v1740 = vadd.s32 %v1739, %v1737
    %v1741 = vand.u32 %v1647, 65535
    %v1742 = vshra.s32 %v1647, 16
    %v1743 = vcvt.s32.f32 %v1741
    %v1744 = vcvt.s32.f32 %v1742
    %1745 = vmin.xlane.f32.xlu0 %v1744
    %v1746 = vpop.xlane.xlu0 %1745
    %vm1747 = vcmp.eq.f32.partialorder %v1744, %v1746
    %v1748 = vsel %vm1747, %v1743, inf
    %1749 = vmin.xlane.f32.xlu0 %v1748
    %v1750 = vpop.xlane.xlu0 %1749
    %v1751 = vcvt.f32.s32 %v1750
    %v1752 = vcvt.f32.s32 %v1746
    %v1753 = vshll.u32 %v1752, 16
    %v1754 = vadd.s32 %v1753, %v1751
    %v1755 = vand.u32 %v1648, 65535
    %v1756 = vshra.s32 %v1648, 16
    %v1757 = vcvt.s32.f32 %v1755
    %v1758 = vcvt.s32.f32 %v1756
    %1759 = vmin.xlane.f32.xlu0 %v1758
    %v1760 = vpop.xlane.xlu0 %1759
    %vm1761 = vcmp.eq.f32.partialorder %v1758, %v1760
    %v1762 = vsel %vm1761, %v1757, inf
    %1763 = vmin.xlane.f32.xlu0 %v1762
    %v1764 = vpop.xlane.xlu0 %1763
    %v1765 = vcvt.f32.s32 %v1764
    %v1766 = vcvt.f32.s32 %v1760
    %v1767 = vshll.u32 %v1766, 16
    %v1768 = vadd.s32 %v1767, %v1765
    %v1769 = vand.u32 %v1649, 65535
    %v1770 = vshra.s32 %v1649, 16
    %v1771 = vcvt.s32.f32 %v1769
    %v1772 = vcvt.s32.f32 %v1770
    %1773 = vmin.xlane.f32.xlu0 %v1772
    %v1774 = vpop.xlane.xlu0 %1773
    %vm1775 = vcmp.eq.f32.partialorder %v1772, %v1774
    %v1776 = vsel %vm1775, %v1771, inf
    %1777 = vmin.xlane.f32.xlu0 %v1776
    %v1778 = vpop.xlane.xlu0 %1777
    %v1779 = vcvt.f32.s32 %v1778
    %v1780 = vcvt.f32.s32 %v1774
    %v1781 = vshll.u32 %v1780, 16
    %v1782 = vadd.s32 %v1781, %v1779
    %v1783 = vand.u32 %v1650, 65535
    %v1784 = vshra.s32 %v1650, 16
    %v1785 = vcvt.s32.f32 %v1783
    %v1786 = vcvt.s32.f32 %v1784
    %1787 = vmin.xlane.f32.xlu0 %v1786
    %v1788 = vpop.xlane.xlu0 %1787
    %vm1789 = vcmp.eq.f32.partialorder %v1786, %v1788
    %v1790 = vsel %vm1789, %v1785, inf
    %1791 = vmin.xlane.f32.xlu0 %v1790
    %v1792 = vpop.xlane.xlu0 %1791
    %v1793 = vcvt.f32.s32 %v1792
    %v1794 = vcvt.f32.s32 %v1788
    %v1795 = vshll.u32 %v1794, 16
    %v1796 = vadd.s32 %v1795, %v1793
    %v1797 = vand.u32 %v1651, 65535
    %v1798 = vshra.s32 %v1651, 16
    %v1799 = vcvt.s32.f32 %v1797
    %v1800 = vcvt.s32.f32 %v1798
    %1801 = vmin.xlane.f32.xlu0 %v1800
    %v1802 = vpop.xlane.xlu0 %1801
    %vm1803 = vcmp.eq.f32.partialorder %v1800, %v1802
    %v1804 = vsel %vm1803, %v1799, inf
    %1805 = vmin.xlane.f32.xlu0 %v1804
    %v1806 = vpop.xlane.xlu0 %1805
    %v1807 = vcvt.f32.s32 %v1806
    %v1808 = vcvt.f32.s32 %v1802
    %v1809 = vshll.u32 %v1808, 16
    %v1810 = vadd.s32 %v1809, %v1807
    %v1811 = vand.u32 %v1652, 65535
    %v1812 = vshra.s32 %v1652, 16
    %v1813 = vcvt.s32.f32 %v1811
    %v1814 = vcvt.s32.f32 %v1812
    %1815 = vmin.xlane.f32.xlu0 %v1814
    %v1816 = vpop.xlane.xlu0 %1815
    %vm1817 = vcmp.eq.f32.partialorder %v1814, %v1816
    %v1818 = vsel %vm1817, %v1813, inf
    %1819 = vmin.xlane.f32.xlu0 %v1818
    %v1820 = vpop.xlane.xlu0 %1819
    %v1821 = vcvt.f32.s32 %v1820
    %v1822 = vcvt.f32.s32 %v1816
    %v1823 = vshll.u32 %v1822, 16
    %v1824 = vadd.s32 %v1823, %v1821
    %v1825 = vand.u32 %v1653, 65535
    %v1826 = vshra.s32 %v1653, 16
    %v1827 = vcvt.s32.f32 %v1825
    %v1828 = vcvt.s32.f32 %v1826
    %1829 = vmin.xlane.f32.xlu0 %v1828
    %v1830 = vpop.xlane.xlu0 %1829
    %vm1831 = vcmp.eq.f32.partialorder %v1828, %v1830
    %v1832 = vsel %vm1831, %v1827, inf
    %1833 = vmin.xlane.f32.xlu0 %v1832
    %v1834 = vpop.xlane.xlu0 %1833
    %v1835 = vcvt.f32.s32 %v1834
    %v1836 = vcvt.f32.s32 %v1830
    %v1837 = vshll.u32 %v1836, 16
    %v1838 = vadd.s32 %v1837, %v1835
    %v1839 = vand.u32 %v1654, 65535
    %v1840 = vshra.s32 %v1654, 16
    %v1841 = vcvt.s32.f32 %v1839
    %v1842 = vcvt.s32.f32 %v1840
    %1843 = vmin.xlane.f32.xlu0 %v1842
    %v1844 = vpop.xlane.xlu0 %1843
    %vm1845 = vcmp.eq.f32.partialorder %v1842, %v1844
    %v1846 = vsel %vm1845, %v1841, inf
    %1847 = vmin.xlane.f32.xlu0 %v1846
    %v1848 = vpop.xlane.xlu0 %1847
    %v1849 = vcvt.f32.s32 %v1848
    %v1850 = vcvt.f32.s32 %v1844
    %v1851 = vshll.u32 %v1850, 16
    %v1852 = vadd.s32 %v1851, %v1849
    %v1853 = vand.u32 %v1655, 65535
    %v1854 = vshra.s32 %v1655, 16
    %v1855 = vcvt.s32.f32 %v1853
    %v1856 = vcvt.s32.f32 %v1854
    %1857 = vmin.xlane.f32.xlu0 %v1856
    %v1858 = vpop.xlane.xlu0 %1857
    %vm1859 = vcmp.eq.f32.partialorder %v1856, %v1858
    %v1860 = vsel %vm1859, %v1855, inf
    %1861 = vmin.xlane.f32.xlu0 %v1860
    %v1862 = vpop.xlane.xlu0 %1861
    %v1863 = vcvt.f32.s32 %v1862
    %v1864 = vcvt.f32.s32 %v1858
    %v1865 = vshll.u32 %v1864, 16
    %v1866 = vadd.s32 %v1865, %v1863
    %v1867 = vand.u32 %v1656, 65535
    %v1868 = vshra.s32 %v1656, 16
    %v1869 = vcvt.s32.f32 %v1867
    %v1870 = vcvt.s32.f32 %v1868
    %1871 = vmin.xlane.f32.xlu0 %v1870
    %v1872 = vpop.xlane.xlu0 %1871
    %vm1873 = vcmp.eq.f32.partialorder %v1870, %v1872
    %v1874 = vsel %vm1873, %v1869, inf
    %1875 = vmin.xlane.f32.xlu0 %v1874
    %v1876 = vpop.xlane.xlu0 %1875
    %v1877 = vcvt.f32.s32 %v1876
    %v1878 = vcvt.f32.s32 %v1872
    %v1879 = vshll.u32 %v1878, 16
    %v1880 = vadd.s32 %v1879, %v1877
    %vm1881 = vcmp.eq.s32.totalorder %v1641, %v1670
    %vm1882 = vcmp.eq.s32.totalorder %v1642, %v1684
    %vm1883 = vcmp.eq.s32.totalorder %v1643, %v1698
    %vm1884 = vcmp.eq.s32.totalorder %v1644, %v1712
    %vm1885 = vcmp.eq.s32.totalorder %v1645, %v1726
    %vm1886 = vcmp.eq.s32.totalorder %v1646, %v1740
    %vm1887 = vcmp.eq.s32.totalorder %v1647, %v1754
    %vm1888 = vcmp.eq.s32.totalorder %v1648, %v1768
    %vm1889 = vcmp.eq.s32.totalorder %v1649, %v1782
    %vm1890 = vcmp.eq.s32.totalorder %v1650, %v1796
    %vm1891 = vcmp.eq.s32.totalorder %v1651, %v1810
    %vm1892 = vcmp.eq.s32.totalorder %v1652, %v1824
    %vm1893 = vcmp.eq.s32.totalorder %v1653, %v1838
    %vm1894 = vcmp.eq.s32.totalorder %v1654, %v1852
    %vm1895 = vcmp.eq.s32.totalorder %v1655, %v1866
    %vm1896 = vcmp.eq.s32.totalorder %v1656, %v1880
    %vm1897 = vmor %vm1625, %vm1881
    %vm1898 = vmor %vm1626, %vm1882
    %vm1899 = vmor %vm1627, %vm1883
    %vm1900 = vmor %vm1628, %vm1884
    %vm1901 = vmor %vm1629, %vm1885
    %vm1902 = vmor %vm1630, %vm1886
    %vm1903 = vmor %vm1631, %vm1887
    %vm1904 = vmor %vm1632, %vm1888
    %vm1905 = vmor %vm1633, %vm1889
    %vm1906 = vmor %vm1634, %vm1890
    %vm1907 = vmor %vm1635, %vm1891
    %vm1908 = vmor %vm1636, %vm1892
    %vm1909 = vmor %vm1637, %vm1893
    %vm1910 = vmor %vm1638, %vm1894
    %vm1911 = vmor %vm1639, %vm1895
    %vm1912 = vmor %vm1640, %vm1896
    %v1913 = vld [vmem:[%s5] sm:$0xff]
    %v1914 = vld [vmem:[%s5 + $0x8] sm:$0xff]
    %v1915 = vld [vmem:[%s5 + $0x10] sm:$0xff]
    %v1916 = vld [vmem:[%s5 + $0x18] sm:$0xff]
    %1917 = vmatprep.subr.mxu0 0.0
    %1918 = vmatpush1.msra.mxu0 0.0
    %1919 = vmatprep.subr.mxu0 0.0
    %1920 = vmatpush1.msra.mxu0 0.0
    %1921 = vmatprep.subr.mxu0 0.0
    %1922 = vmatpush1.msra.mxu0 0.0
    %1923 = vmatprep.subr.mxu0 0.0
    %1924 = vmatpush1.msra.mxu0 0.0
    %1925 = vmatprep.subr.mxu0 0.0
    %1926 = vmatpush1.msra.mxu0 0.0
    %1927 = vmatprep.subr.mxu0 0.0
    %1928 = vmatpush1.msra.mxu0 0.0
    %1929 = vmatprep.subr.mxu0 0.0
    %1930 = vmatpush1.msra.mxu0 0.0
    %1931 = vmatprep.subr.mxu0 0.0
    %1932 = vmatpush1.msra.mxu0 0.0
    %1933 = vmatprep.subr.mxu0 0.0
    %1934 = vmatpush1.msra.mxu0 0.0
    %1935 = vmatprep.subr.mxu0 0.0
    %1936 = vmatpush1.msra.mxu0 0.0
    %1937 = vmatprep.subr.mxu0 0.0
    %1938 = vmatpush1.msra.mxu0 0.0
    %1939 = vmatprep.subr.mxu0 0.0
    %1940 = vmatpush1.msra.mxu0 0.0
    %1941 = vmatprep.subr.mxu0 0.0
    %1942 = vmatpush1.msra.mxu0 %v1916
    %1943 = vmatprep.subr.mxu0 0.0
    %1944 = vmatpush1.msra.mxu0 %v1915
    %1945 = vmatprep.subr.mxu0 0.0
    %1946 = vmatpush1.msra.mxu0 %v1914
    %1947 = vmatprep.subr.mxu0 0.0
    %1948 = vmatpush1.msra.mxu0 %v1913
    %1949 = vmatprep.subr.mxu0 0.0
    %1950 = vmatpush2.msra.mxu0 0.0
    %1951 = vmatprep.subr.mxu0 0.0
    %1952 = vmatpush2.msra.mxu0 0.0
    %1953 = vmatprep.subr.mxu0 0.0
    %1954 = vmatpush2.msra.mxu0 0.0
    %1955 = vmatprep.subr.mxu0 0.0
    %1956 = vmatpush2.msra.mxu0 0.0
    %1957 = vmatprep.subr.mxu0 0.0
    %1958 = vmatpush2.msra.mxu0 0.0
    %1959 = vmatprep.subr.mxu0 0.0
    %1960 = vmatpush2.msra.mxu0 0.0
    %1961 = vmatprep.subr.mxu0 0.0
    %1962 = vmatpush2.msra.mxu0 0.0
    %1963 = vmatprep.subr.mxu0 0.0
    %1964 = vmatpush2.msra.mxu0 0.0
    %1965 = vmatprep.subr.mxu0 0.0
    %1966 = vmatpush2.msra.mxu0 0.0
    %1967 = vmatprep.subr.mxu0 0.0
    %1968 = vmatpush2.msra.mxu0 0.0
    %1969 = vmatprep.subr.mxu0 0.0
    %1970 = vmatpush2.msra.mxu0 0.0
    %1971 = vmatprep.subr.mxu0 0.0
    %1972 = vmatpush2.msra.mxu0 0.0
    %1973 = vmatprep.subr.mxu0 0.0
    %1974 = vmatpush2.msra.mxu0 0.0
    %1975 = vmatprep.subr.mxu0 0.0
    %1976 = vmatpush2.msra.mxu0 0.0
    %1977 = vmatprep.subr.mxu0 0.0
    %1978 = vmatpush2.msra.mxu0 0.0
    %1979 = vmatprep.subr.mxu0 0.0
    %1980 = vmatpush2.msra.mxu0 0.0
    %1981 = vmatprep.mubr.f32.mxu0 0.0
    %1982 = vmatmul.mubr.f32.gmra.mxu0 %v385
    %v1983 = vpop.f32.mrf.mxu0
    %v1984 = vadd.f32 0.0, %v1983
    %v1985 = vpop.f32.mrf.mxu0
    %1986 = vmatprep.mubr.f32.mxu0 0.0
    %1987 = vmatmul.mubr.f32.gmra.mxu0 %v388
    %v1988 = vpop.f32.mrf.mxu0
    %v1989 = vadd.f32 0.0, %v1988
    %v1990 = vpop.f32.mrf.mxu0
    %1991 = vmatprep.mubr.f32.mxu0 0.0
    %1992 = vmatmul.mubr.f32.gmra.mxu0 %v391
    %v1993 = vpop.f32.mrf.mxu0
    %v1994 = vadd.f32 0.0, %v1993
    %v1995 = vpop.f32.mrf.mxu0
    %1996 = vmatprep.mubr.f32.mxu0 0.0
    %1997 = vmatmul.mubr.f32.gmra.mxu0 %v394
    %v1998 = vpop.f32.mrf.mxu0
    %v1999 = vadd.f32 0.0, %v1998
    %v2000 = vpop.f32.mrf.mxu0
    %2001 = vmatprep.mubr.f32.mxu0 0.0
    %2002 = vmatmul.mubr.f32.gmra.mxu0 %v397
    %v2003 = vpop.f32.mrf.mxu0
    %v2004 = vadd.f32 0.0, %v2003
    %v2005 = vpop.f32.mrf.mxu0
    %2006 = vmatprep.mubr.f32.mxu0 0.0
    %2007 = vmatmul.mubr.f32.gmra.mxu0 %v400
    %v2008 = vpop.f32.mrf.mxu0
    %v2009 = vadd.f32 0.0, %v2008
    %v2010 = vpop.f32.mrf.mxu0
    %2011 = vmatprep.mubr.f32.mxu0 0.0
    %2012 = vmatmul.mubr.f32.gmra.mxu0 %v403
    %v2013 = vpop.f32.mrf.mxu0
    %v2014 = vadd.f32 0.0, %v2013
    %v2015 = vpop.f32.mrf.mxu0
    %2016 = vmatprep.mubr.f32.mxu0 0.0
    %2017 = vmatmul.mubr.f32.gmra.mxu0 %v406
    %v2018 = vpop.f32.mrf.mxu0
    %v2019 = vadd.f32 0.0, %v2018
    %v2020 = vpop.f32.mrf.mxu0
    %2021 = vmatprep.mubr.f32.mxu0 0.0
    %2022 = vmatmul.mubr.f32.gmra.mxu0 %v409
    %v2023 = vpop.f32.mrf.mxu0
    %v2024 = vadd.f32 0.0, %v2023
    %v2025 = vpop.f32.mrf.mxu0
    %2026 = vmatprep.mubr.f32.mxu0 0.0
    %2027 = vmatmul.mubr.f32.gmra.mxu0 %v412
    %v2028 = vpop.f32.mrf.mxu0
    %v2029 = vadd.f32 0.0, %v2028
    %v2030 = vpop.f32.mrf.mxu0
    %2031 = vmatprep.mubr.f32.mxu0 0.0
    %2032 = vmatmul.mubr.f32.gmra.mxu0 %v415
    %v2033 = vpop.f32.mrf.mxu0
    %v2034 = vadd.f32 0.0, %v2033
    %v2035 = vpop.f32.mrf.mxu0
    %2036 = vmatprep.mubr.f32.mxu0 0.0
    %2037 = vmatmul.mubr.f32.gmra.mxu0 %v418
    %v2038 = vpop.f32.mrf.mxu0
    %v2039 = vadd.f32 0.0, %v2038
    %v2040 = vpop.f32.mrf.mxu0
    %2041 = vmatprep.mubr.f32.mxu0 0.0
    %2042 = vmatmul.mubr.f32.gmra.mxu0 %v421
    %v2043 = vpop.f32.mrf.mxu0
    %v2044 = vadd.f32 0.0, %v2043
    %v2045 = vpop.f32.mrf.mxu0
    %2046 = vmatprep.mubr.f32.mxu0 0.0
    %2047 = vmatmul.mubr.f32.gmra.mxu0 %v424
    %v2048 = vpop.f32.mrf.mxu0
    %v2049 = vadd.f32 0.0, %v2048
    %v2050 = vpop.f32.mrf.mxu0
    %2051 = vmatprep.mubr.f32.mxu0 0.0
    %2052 = vmatmul.mubr.f32.gmra.mxu0 %v427
    %v2053 = vpop.f32.mrf.mxu0
    %v2054 = vadd.f32 0.0, %v2053
    %v2055 = vpop.f32.mrf.mxu0
    %2056 = vmatprep.mubr.f32.mxu0 0.0
    %2057 = vmatmul.mubr.f32.gmra.mxu0 %v430
    %v2058 = vpop.f32.mrf.mxu0
    %v2059 = vadd.f32 0.0, %v2058
    %v2060 = vpop.f32.mrf.mxu0
    %2061 = vdwg.mxu0
    %2078 = vrot.lane.b32.xlu0 %v1984, 95
    %v2079 = vpop.permute.xlu0 %2078
    %2080 = vrot.lane.b32.xlu0 %v1989, 95
    %v2081 = vpop.permute.xlu0 %2080
    %2082 = vrot.lane.b32.xlu0 %v1994, 95
    %v2083 = vpop.permute.xlu0 %2082
    %2084 = vrot.lane.b32.xlu0 %v1999, 95
    %v2085 = vpop.permute.xlu0 %2084
    %2086 = vrot.lane.b32.xlu0 %v2004, 95
    %v2087 = vpop.permute.xlu0 %2086
    %2088 = vrot.lane.b32.xlu0 %v2009, 95
    %v2089 = vpop.permute.xlu0 %2088
    %2090 = vrot.lane.b32.xlu0 %v2014, 95
    %v2091 = vpop.permute.xlu0 %2090
    %2092 = vrot.lane.b32.xlu0 %v2019, 95
    %v2093 = vpop.permute.xlu0 %2092
    %2094 = vrot.lane.b32.xlu0 %v2024, 95
    %v2095 = vpop.permute.xlu0 %2094
    %2096 = vrot.lane.b32.xlu0 %v2029, 95
    %v2097 = vpop.permute.xlu0 %2096
    %2098 = vrot.lane.b32.xlu0 %v2034, 95
    %v2099 = vpop.permute.xlu0 %2098
    %2100 = vrot.lane.b32.xlu0 %v2039, 95
    %v2101 = vpop.permute.xlu0 %2100
    %2102 = vrot.lane.b32.xlu0 %v2044, 95
    %v2103 = vpop.permute.xlu0 %2102
    %2104 = vrot.lane.b32.xlu0 %v2049, 95
    %v2105 = vpop.permute.xlu0 %2104
    %2106 = vrot.lane.b32.xlu0 %v2054, 95
    %v2107 = vpop.permute.xlu0 %2106
    %2108 = vrot.lane.b32.xlu0 %v2059, 95
    %v2109 = vpop.permute.xlu0 %2108
    %2126 = vxpose.xlu0.b32.start [1/16] %v2079, 128
    %2127 = vxpose.xlu0.b32.cont [2/16] %v2081, 128
    %2128 = vxpose.xlu0.b32.cont [3/16] %v2083, 128
    %2129 = vxpose.xlu0.b32.cont [4/16] %v2085, 128
    %2130 = vxpose.xlu0.b32.cont [5/16] %v2087, 128
    %2131 = vxpose.xlu0.b32.cont [6/16] %v2089, 128
    %2132 = vxpose.xlu0.b32.cont [7/16] %v2091, 128
    %2133 = vxpose.xlu0.b32.cont [8/16] %v2093, 128
    %2134 = vxpose.xlu0.b32.cont [9/16] %v2095, 128
    %2135 = vxpose.xlu0.b32.cont [10/16] %v2097, 128
    %2136 = vxpose.xlu0.b32.cont [11/16] %v2099, 128
    %2137 = vxpose.xlu0.b32.cont [12/16] %v2101, 128
    %2138 = vxpose.xlu0.b32.cont [13/16] %v2103, 128
    %2139 = vxpose.xlu0.b32.cont [14/16] %v2105, 128
    %2140 = vxpose.xlu0.b32.cont [15/16] %v2107, 128
    %2141 = vxpose.xlu0.b32.end [16/16] %v2109, 128
    %v2142 = vpop.trf.xlu0
    %v2143 = vpop.trf.xlu0
    %v2144 = vpop.trf.xlu0
    %v2145 = vpop.trf.xlu0
    %v2146 = vpop.trf.xlu0
    %v2147 = vpop.trf.xlu0
    %v2148 = vpop.trf.xlu0
    %v2149 = vpop.trf.xlu0
    %v2150 = vpop.trf.xlu0
    %v2151 = vpop.trf.xlu0
    %v2152 = vpop.trf.xlu0
    %v2153 = vpop.trf.xlu0
    %v2154 = vpop.trf.xlu0
    %v2155 = vpop.trf.xlu0
    %v2156 = vpop.trf.xlu0
    %v2157 = vpop.trf.xlu0
    %2158 = vset.pattern.permute.xlu0 32
    %2159 = vperm.xlu0 %2158, %v1984
    %v2160 = vpop.permute.xlu0 %2159
    %2162 = vset.pattern.permute.xlu0 32
    %2163 = vperm.xlu0 %2162, %v1989
    %v2164 = vpop.permute.xlu0 %2163
    %2166 = vset.pattern.permute.xlu0 32
    %2167 = vperm.xlu0 %2166, %v1994
    %v2168 = vpop.permute.xlu0 %2167
    %2170 = vset.pattern.permute.xlu0 32
    %2171 = vperm.xlu0 %2170, %v1999
    %v2172 = vpop.permute.xlu0 %2171
    %2174 = vset.pattern.permute.xlu0 32
    %2175 = vperm.xlu0 %2174, %v2004
    %v2176 = vpop.permute.xlu0 %2175
    %2178 = vset.pattern.permute.xlu0 32
    %2179 = vperm.xlu0 %2178, %v2009
    %v2180 = vpop.permute.xlu0 %2179
    %2182 = vset.pattern.permute.xlu0 32
    %2183 = vperm.xlu0 %2182, %v2014
    %v2184 = vpop.permute.xlu0 %2183
    %2186 = vset.pattern.permute.xlu0 32
    %2187 = vperm.xlu0 %2186, %v2019
    %v2188 = vpop.permute.xlu0 %2187
    %2190 = vset.pattern.permute.xlu0 32
    %2191 = vperm.xlu0 %2190, %v2024
    %v2192 = vpop.permute.xlu0 %2191
    %2194 = vset.pattern.permute.xlu0 32
    %2195 = vperm.xlu0 %2194, %v2029
    %v2196 = vpop.permute.xlu0 %2195
    %2198 = vset.pattern.permute.xlu0 32
    %2199 = vperm.xlu0 %2198, %v2034
    %v2200 = vpop.permute.xlu0 %2199
    %2202 = vset.pattern.permute.xlu0 32
    %2203 = vperm.xlu0 %2202, %v2039
    %v2204 = vpop.permute.xlu0 %2203
    %2206 = vset.pattern.permute.xlu0 32
    %2207 = vperm.xlu0 %2206, %v2044
    %v2208 = vpop.permute.xlu0 %2207
    %2210 = vset.pattern.permute.xlu0 32
    %2211 = vperm.xlu0 %2210, %v2049
    %v2212 = vpop.permute.xlu0 %2211
    %2214 = vset.pattern.permute.xlu0 32
    %2215 = vperm.xlu0 %2214, %v2054
    %v2216 = vpop.permute.xlu0 %2215
    %2218 = vset.pattern.permute.xlu0 32
    %2219 = vperm.xlu0 %2218, %v2059
    %v2220 = vpop.permute.xlu0 %2219
    %v2222 = vlaneseq
    %v2223 = vshrl.u32 %v2222, 7
    %v2224 = vsub.s32 0, %v2223
    %v2225 = vrot.slane %v2142, %v2224
    %v2226 = vadd.f32 %v2160, %v2225
    %v2227 = vadd.f32 %v2164, %v2225
    %v2228 = vadd.f32 %v2168, %v2225
    %v2229 = vadd.f32 %v2172, %v2225
    %v2230 = vadd.f32 %v2176, %v2225
    %v2231 = vadd.f32 %v2180, %v2225
    %v2232 = vadd.f32 %v2184, %v2225
    %v2233 = vadd.f32 %v2188, %v2225
    %v2234 = vadd.f32 %v2192, %v2225
    %v2235 = vadd.f32 %v2196, %v2225
    %v2236 = vadd.f32 %v2200, %v2225
    %v2237 = vadd.f32 %v2204, %v2225
    %v2238 = vadd.f32 %v2208, %v2225
    %v2239 = vadd.f32 %v2212, %v2225
    %v2240 = vadd.f32 %v2216, %v2225
    %v2241 = vadd.f32 %v2220, %v2225
    %vm2242 = vcmp.gt.f32.partialorder %v2226, 0.0
    %vm2243 = vcmp.gt.f32.partialorder %v2227, 0.0
    %vm2244 = vcmp.gt.f32.partialorder %v2228, 0.0
    %vm2245 = vcmp.gt.f32.partialorder %v2229, 0.0
    %vm2246 = vcmp.gt.f32.partialorder %v2230, 0.0
    %vm2247 = vcmp.gt.f32.partialorder %v2231, 0.0
    %vm2248 = vcmp.gt.f32.partialorder %v2232, 0.0
    %vm2249 = vcmp.gt.f32.partialorder %v2233, 0.0
    %vm2250 = vcmp.gt.f32.partialorder %v2234, 0.0
    %vm2251 = vcmp.gt.f32.partialorder %v2235, 0.0
    %vm2252 = vcmp.gt.f32.partialorder %v2236, 0.0
    %vm2253 = vcmp.gt.f32.partialorder %v2237, 0.0
    %vm2254 = vcmp.gt.f32.partialorder %v2238, 0.0
    %vm2255 = vcmp.gt.f32.partialorder %v2239, 0.0
    %vm2256 = vcmp.gt.f32.partialorder %v2240, 0.0
    %vm2257 = vcmp.gt.f32.partialorder %v2241, 0.0
    %v2258 = vmul.f32 %v2226, 0.2
    %v2259 = vmul.f32 %v2227, 0.2
    %v2260 = vmul.f32 %v2228, 0.2
    %v2261 = vmul.f32 %v2229, 0.2
    %v2262 = vmul.f32 %v2230, 0.2
    %v2263 = vmul.f32 %v2231, 0.2
    %v2264 = vmul.f32 %v2232, 0.2
    %v2265 = vmul.f32 %v2233, 0.2
    %v2266 = vmul.f32 %v2234, 0.2
    %v2267 = vmul.f32 %v2235, 0.2
    %v2268 = vmul.f32 %v2236, 0.2
    %v2269 = vmul.f32 %v2237, 0.2
    %v2270 = vmul.f32 %v2238, 0.2
    %v2271 = vmul.f32 %v2239, 0.2
    %v2272 = vmul.f32 %v2240, 0.2
    %v2273 = vmul.f32 %v2241, 0.2
    %v2274 = vsel %vm2242, %v2226, %v2258
    %v2275 = vsel %vm2243, %v2227, %v2259
    %v2276 = vsel %vm2244, %v2228, %v2260
    %v2277 = vsel %vm2245, %v2229, %v2261
    %v2278 = vsel %vm2246, %v2230, %v2262
    %v2279 = vsel %vm2247, %v2231, %v2263
    %v2280 = vsel %vm2248, %v2232, %v2264
    %v2281 = vsel %vm2249, %v2233, %v2265
    %v2282 = vsel %vm2250, %v2234, %v2266
    %v2283 = vsel %vm2251, %v2235, %v2267
    %v2284 = vsel %vm2252, %v2236, %v2268
    %v2285 = vsel %vm2253, %v2237, %v2269
    %v2286 = vsel %vm2254, %v2238, %v2270
    %v2287 = vsel %vm2255, %v2239, %v2271
    %v2288 = vsel %vm2256, %v2240, %v2272
    %v2289 = vsel %vm2257, %v2241, %v2273
    %v2290 = vsel %vm1897, %v2274, -1e+30
    %v2291 = vsel %vm1898, %v2275, -1e+30
    %v2292 = vsel %vm1899, %v2276, -1e+30
    %v2293 = vsel %vm1900, %v2277, -1e+30
    %v2294 = vsel %vm1901, %v2278, -1e+30
    %v2295 = vsel %vm1902, %v2279, -1e+30
    %v2296 = vsel %vm1903, %v2280, -1e+30
    %v2297 = vsel %vm1904, %v2281, -1e+30
    %v2298 = vsel %vm1905, %v2282, -1e+30
    %v2299 = vsel %vm1906, %v2283, -1e+30
    %v2300 = vsel %vm1907, %v2284, -1e+30
    %v2301 = vsel %vm1908, %v2285, -1e+30
    %v2302 = vsel %vm1909, %v2286, -1e+30
    %v2303 = vsel %vm1910, %v2287, -1e+30
    %v2304 = vsel %vm1911, %v2288, -1e+30
    %v2305 = vsel %vm1912, %v2289, -1e+30
    %2306 = vmax.xlane.f32.xlu0 %v2290
    %v2307 = vpop.xlane.xlu0 %2306
    %2308 = vmax.xlane.f32.xlu0 %v2291
    %v2309 = vpop.xlane.xlu0 %2308
    %2310 = vmax.xlane.f32.xlu0 %v2292
    %v2311 = vpop.xlane.xlu0 %2310
    %2312 = vmax.xlane.f32.xlu0 %v2293
    %v2313 = vpop.xlane.xlu0 %2312
    %2314 = vmax.xlane.f32.xlu0 %v2294
    %v2315 = vpop.xlane.xlu0 %2314
    %2316 = vmax.xlane.f32.xlu0 %v2295
    %v2317 = vpop.xlane.xlu0 %2316
    %2318 = vmax.xlane.f32.xlu0 %v2296
    %v2319 = vpop.xlane.xlu0 %2318
    %2320 = vmax.xlane.f32.xlu0 %v2297
    %v2321 = vpop.xlane.xlu0 %2320
    %2322 = vmax.xlane.f32.xlu0 %v2298
    %v2323 = vpop.xlane.xlu0 %2322
    %2324 = vmax.xlane.f32.xlu0 %v2299
    %v2325 = vpop.xlane.xlu0 %2324
    %2326 = vmax.xlane.f32.xlu0 %v2300
    %v2327 = vpop.xlane.xlu0 %2326
    %2328 = vmax.xlane.f32.xlu0 %v2301
    %v2329 = vpop.xlane.xlu0 %2328
    %2330 = vmax.xlane.f32.xlu0 %v2302
    %v2331 = vpop.xlane.xlu0 %2330
    %2332 = vmax.xlane.f32.xlu0 %v2303
    %v2333 = vpop.xlane.xlu0 %2332
    %2334 = vmax.xlane.f32.xlu0 %v2304
    %v2335 = vpop.xlane.xlu0 %2334
    %2336 = vmax.xlane.f32.xlu0 %v2305
    %v2337 = vpop.xlane.xlu0 %2336
    %v2338 = vsub.f32 %v2290, %v2307
    %v2339 = vsub.f32 %v2291, %v2309
    %v2340 = vsub.f32 %v2292, %v2311
    %v2341 = vsub.f32 %v2293, %v2313
    %v2342 = vsub.f32 %v2294, %v2315
    %v2343 = vsub.f32 %v2295, %v2317
    %v2344 = vsub.f32 %v2296, %v2319
    %v2345 = vsub.f32 %v2297, %v2321
    %v2346 = vsub.f32 %v2298, %v2323
    %v2347 = vsub.f32 %v2299, %v2325
    %v2348 = vsub.f32 %v2300, %v2327
    %v2349 = vsub.f32 %v2301, %v2329
    %v2350 = vsub.f32 %v2302, %v2331
    %v2351 = vsub.f32 %v2303, %v2333
    %v2352 = vsub.f32 %v2304, %v2335
    %v2353 = vsub.f32 %v2305, %v2337
    %v2354 = vmul.f32 %v2338, 1.442695
    %v2355 = vpow.pop %v2354
    %v2356 = vmul.f32 %v2339, 1.442695
    %v2357 = vpow.pop %v2356
    %v2358 = vmul.f32 %v2340, 1.442695
    %v2359 = vpow.pop %v2358
    %v2360 = vmul.f32 %v2341, 1.442695
    %v2361 = vpow.pop %v2360
    %v2362 = vmul.f32 %v2342, 1.442695
    %v2363 = vpow.pop %v2362
    %v2364 = vmul.f32 %v2343, 1.442695
    %v2365 = vpow.pop %v2364
    %v2366 = vmul.f32 %v2344, 1.442695
    %v2367 = vpow.pop %v2366
    %v2368 = vmul.f32 %v2345, 1.442695
    %v2369 = vpow.pop %v2368
    %v2370 = vmul.f32 %v2346, 1.442695
    %v2371 = vpow.pop %v2370
    %v2372 = vmul.f32 %v2347, 1.442695
    %v2373 = vpow.pop %v2372
    %v2374 = vmul.f32 %v2348, 1.442695
    %v2375 = vpow.pop %v2374
    %v2376 = vmul.f32 %v2349, 1.442695
    %v2377 = vpow.pop %v2376
    %v2378 = vmul.f32 %v2350, 1.442695
    %v2379 = vpow.pop %v2378
    %v2380 = vmul.f32 %v2351, 1.442695
    %v2381 = vpow.pop %v2380
    %v2382 = vmul.f32 %v2352, 1.442695
    %v2383 = vpow.pop %v2382
    %v2384 = vmul.f32 %v2353, 1.442695
    %v2385 = vpow.pop %v2384
    %v2386 = vsel %vm1897, %v2355, 0.0
    %v2387 = vsel %vm1898, %v2357, 0.0
    %v2388 = vsel %vm1899, %v2359, 0.0
    %v2389 = vsel %vm1900, %v2361, 0.0
    %v2390 = vsel %vm1901, %v2363, 0.0
    %v2391 = vsel %vm1902, %v2365, 0.0
    %v2392 = vsel %vm1903, %v2367, 0.0
    %v2393 = vsel %vm1904, %v2369, 0.0
    %v2394 = vsel %vm1905, %v2371, 0.0
    %v2395 = vsel %vm1906, %v2373, 0.0
    %v2396 = vsel %vm1907, %v2375, 0.0
    %v2397 = vsel %vm1908, %v2377, 0.0
    %v2398 = vsel %vm1909, %v2379, 0.0
    %v2399 = vsel %vm1910, %v2381, 0.0
    %v2400 = vsel %vm1911, %v2383, 0.0
    %v2401 = vsel %vm1912, %v2385, 0.0
    %2402 = vadd.xlane.f32.xlu0 %v2386
    %v2403 = vpop.xlane.xlu0 %2402
    %2404 = vadd.xlane.f32.xlu0 %v2387
    %v2405 = vpop.xlane.xlu0 %2404
    %2406 = vadd.xlane.f32.xlu0 %v2388
    %v2407 = vpop.xlane.xlu0 %2406
    %2408 = vadd.xlane.f32.xlu0 %v2389
    %v2409 = vpop.xlane.xlu0 %2408
    %2410 = vadd.xlane.f32.xlu0 %v2390
    %v2411 = vpop.xlane.xlu0 %2410
    %2412 = vadd.xlane.f32.xlu0 %v2391
    %v2413 = vpop.xlane.xlu0 %2412
    %2414 = vadd.xlane.f32.xlu0 %v2392
    %v2415 = vpop.xlane.xlu0 %2414
    %2416 = vadd.xlane.f32.xlu0 %v2393
    %v2417 = vpop.xlane.xlu0 %2416
    %2418 = vadd.xlane.f32.xlu0 %v2394
    %v2419 = vpop.xlane.xlu0 %2418
    %2420 = vadd.xlane.f32.xlu0 %v2395
    %v2421 = vpop.xlane.xlu0 %2420
    %2422 = vadd.xlane.f32.xlu0 %v2396
    %v2423 = vpop.xlane.xlu0 %2422
    %2424 = vadd.xlane.f32.xlu0 %v2397
    %v2425 = vpop.xlane.xlu0 %2424
    %2426 = vadd.xlane.f32.xlu0 %v2398
    %v2427 = vpop.xlane.xlu0 %2426
    %2428 = vadd.xlane.f32.xlu0 %v2399
    %v2429 = vpop.xlane.xlu0 %2428
    %2430 = vadd.xlane.f32.xlu0 %v2400
    %v2431 = vpop.xlane.xlu0 %2430
    %2432 = vadd.xlane.f32.xlu0 %v2401
    %v2433 = vpop.xlane.xlu0 %2432
    %2434 = vmatprep.subr.mxu0 0.0
    %2435 = vmatpush1.msra.mxu0 %v2059
    %2436 = vmatprep.subr.mxu0 0.0
    %2437 = vmatpush1.msra.mxu0 %v2054
    %2438 = vmatprep.subr.mxu0 0.0
    %2439 = vmatpush1.msra.mxu0 %v2049
    %2440 = vmatprep.subr.mxu0 0.0
    %2441 = vmatpush1.msra.mxu0 %v2044
    %2442 = vmatprep.subr.mxu0 0.0
    %2443 = vmatpush1.msra.mxu0 %v2039
    %2444 = vmatprep.subr.mxu0 0.0
    %2445 = vmatpush1.msra.mxu0 %v2034
    %2446 = vmatprep.subr.mxu0 0.0
    %2447 = vmatpush1.msra.mxu0 %v2029
    %2448 = vmatprep.subr.mxu0 0.0
    %2449 = vmatpush1.msra.mxu0 %v2024
    %2450 = vmatprep.subr.mxu0 0.0
    %2451 = vmatpush1.msra.mxu0 %v2019
    %2452 = vmatprep.subr.mxu0 0.0
    %2453 = vmatpush1.msra.mxu0 %v2014
    %2454 = vmatprep.subr.mxu0 0.0
    %2455 = vmatpush1.msra.mxu0 %v2009
    %2456 = vmatprep.subr.mxu0 0.0
    %2457 = vmatpush1.msra.mxu0 %v2004
    %2458 = vmatprep.subr.mxu0 0.0
    %2459 = vmatpush1.msra.mxu0 %v1999
    %2460 = vmatprep.subr.mxu0 0.0
    %2461 = vmatpush1.msra.mxu0 %v1994
    %2462 = vmatprep.subr.mxu0 0.0
    %2463 = vmatpush1.msra.mxu0 %v1989
    %2464 = vmatprep.subr.mxu0 0.0
    %2465 = vmatpush1.msra.mxu0 %v1984
    %2466 = vmatprep.subr.mxu0 0.0
    %2467 = vmatpush2.msra.mxu0 0.0
    %2468 = vmatprep.subr.mxu0 0.0
    %2469 = vmatpush2.msra.mxu0 0.0
    %2470 = vmatprep.subr.mxu0 0.0
    %2471 = vmatpush2.msra.mxu0 0.0
    %2472 = vmatprep.subr.mxu0 0.0
    %2473 = vmatpush2.msra.mxu0 0.0
    %2474 = vmatprep.subr.mxu0 0.0
    %2475 = vmatpush2.msra.mxu0 0.0
    %2476 = vmatprep.subr.mxu0 0.0
    %2477 = vmatpush2.msra.mxu0 0.0
    %2478 = vmatprep.subr.mxu0 0.0
    %2479 = vmatpush2.msra.mxu0 0.0
    %2480 = vmatprep.subr.mxu0 0.0
    %2481 = vmatpush2.msra.mxu0 0.0
    %2482 = vmatprep.subr.mxu0 0.0
    %2483 = vmatpush2.msra.mxu0 0.0
    %2484 = vmatprep.subr.mxu0 0.0
    %2485 = vmatpush2.msra.mxu0 0.0
    %2486 = vmatprep.subr.mxu0 0.0
    %2487 = vmatpush2.msra.mxu0 0.0
    %2488 = vmatprep.subr.mxu0 0.0
    %2489 = vmatpush2.msra.mxu0 0.0
    %2490 = vmatprep.subr.mxu0 0.0
    %2491 = vmatpush2.msra.mxu0 0.0
    %2492 = vmatprep.subr.mxu0 0.0
    %2493 = vmatpush2.msra.mxu0 0.0
    %2494 = vmatprep.subr.mxu0 0.0
    %2495 = vmatpush2.msra.mxu0 0.0
    %2496 = vmatprep.subr.mxu0 0.0
    %2497 = vmatpush2.msra.mxu0 0.0
    %2498 = vmatprep.mubr.f32.mxu0 0.0
    %2499 = vmatmul.mubr.f32.gmra.mxu0 %v2386
    %v2500 = vpop.f32.mrf.mxu0
    %v2501 = vadd.f32 0.0, %v2500
    %v2502 = vpop.f32.mrf.mxu0
    %2503 = vmatprep.mubr.f32.mxu0 0.0
    %2504 = vmatmul.mubr.f32.gmra.mxu0 %v2387
    %v2505 = vpop.f32.mrf.mxu0
    %v2506 = vadd.f32 0.0, %v2505
    %v2507 = vpop.f32.mrf.mxu0
    %2508 = vmatprep.mubr.f32.mxu0 0.0
    %2509 = vmatmul.mubr.f32.gmra.mxu0 %v2388
    %v2510 = vpop.f32.mrf.mxu0
    %v2511 = vadd.f32 0.0, %v2510
    %v2512 = vpop.f32.mrf.mxu0
    %2513 = vmatprep.mubr.f32.mxu0 0.0
    %2514 = vmatmul.mubr.f32.gmra.mxu0 %v2389
    %v2515 = vpop.f32.mrf.mxu0
    %v2516 = vadd.f32 0.0, %v2515
    %v2517 = vpop.f32.mrf.mxu0
    %2518 = vmatprep.mubr.f32.mxu0 0.0
    %2519 = vmatmul.mubr.f32.gmra.mxu0 %v2390
    %v2520 = vpop.f32.mrf.mxu0
    %v2521 = vadd.f32 0.0, %v2520
    %v2522 = vpop.f32.mrf.mxu0
    %2523 = vmatprep.mubr.f32.mxu0 0.0
    %2524 = vmatmul.mubr.f32.gmra.mxu0 %v2391
    %v2525 = vpop.f32.mrf.mxu0
    %v2526 = vadd.f32 0.0, %v2525
    %v2527 = vpop.f32.mrf.mxu0
    %2528 = vmatprep.mubr.f32.mxu0 0.0
    %2529 = vmatmul.mubr.f32.gmra.mxu0 %v2392
    %v2530 = vpop.f32.mrf.mxu0
    %v2531 = vadd.f32 0.0, %v2530
    %v2532 = vpop.f32.mrf.mxu0
    %2533 = vmatprep.mubr.f32.mxu0 0.0
    %2534 = vmatmul.mubr.f32.gmra.mxu0 %v2393
    %v2535 = vpop.f32.mrf.mxu0
    %v2536 = vadd.f32 0.0, %v2535
    %v2537 = vpop.f32.mrf.mxu0
    %2538 = vmatprep.mubr.f32.mxu0 0.0
    %2539 = vmatmul.mubr.f32.gmra.mxu0 %v2394
    %v2540 = vpop.f32.mrf.mxu0
    %v2541 = vadd.f32 0.0, %v2540
    %v2542 = vpop.f32.mrf.mxu0
    %2543 = vmatprep.mubr.f32.mxu0 0.0
    %2544 = vmatmul.mubr.f32.gmra.mxu0 %v2395
    %v2545 = vpop.f32.mrf.mxu0
    %v2546 = vadd.f32 0.0, %v2545
    %v2547 = vpop.f32.mrf.mxu0
    %2548 = vmatprep.mubr.f32.mxu0 0.0
    %2549 = vmatmul.mubr.f32.gmra.mxu0 %v2396
    %v2550 = vpop.f32.mrf.mxu0
    %v2551 = vadd.f32 0.0, %v2550
    %v2552 = vpop.f32.mrf.mxu0
    %2553 = vmatprep.mubr.f32.mxu0 0.0
    %2554 = vmatmul.mubr.f32.gmra.mxu0 %v2397
    %v2555 = vpop.f32.mrf.mxu0
    %v2556 = vadd.f32 0.0, %v2555
    %v2557 = vpop.f32.mrf.mxu0
    %2558 = vmatprep.mubr.f32.mxu0 0.0
    %2559 = vmatmul.mubr.f32.gmra.mxu0 %v2398
    %v2560 = vpop.f32.mrf.mxu0
    %v2561 = vadd.f32 0.0, %v2560
    %v2562 = vpop.f32.mrf.mxu0
    %2563 = vmatprep.mubr.f32.mxu0 0.0
    %2564 = vmatmul.mubr.f32.gmra.mxu0 %v2399
    %v2565 = vpop.f32.mrf.mxu0
    %v2566 = vadd.f32 0.0, %v2565
    %v2567 = vpop.f32.mrf.mxu0
    %2568 = vmatprep.mubr.f32.mxu0 0.0
    %2569 = vmatmul.mubr.f32.gmra.mxu0 %v2400
    %v2570 = vpop.f32.mrf.mxu0
    %v2571 = vadd.f32 0.0, %v2570
    %v2572 = vpop.f32.mrf.mxu0
    %2573 = vmatprep.mubr.f32.mxu0 0.0
    %2574 = vmatmul.mubr.f32.gmra.mxu0 %v2401
    %v2575 = vpop.f32.mrf.mxu0
    %v2576 = vadd.f32 0.0, %v2575
    %v2577 = vpop.f32.mrf.mxu0
    %2578 = vdwg.mxu0
    %v2579 = vrcp.pop %v2403
    %v2580 = vrcp.pop %v2405
    %v2581 = vrcp.pop %v2407
    %v2582 = vrcp.pop %v2409
    %v2583 = vrcp.pop %v2411
    %v2584 = vrcp.pop %v2413
    %v2585 = vrcp.pop %v2415
    %v2586 = vrcp.pop %v2417
    %v2587 = vrcp.pop %v2419
    %v2588 = vrcp.pop %v2421
    %v2589 = vrcp.pop %v2423
    %v2590 = vrcp.pop %v2425
    %v2591 = vrcp.pop %v2427
    %v2592 = vrcp.pop %v2429
    %v2593 = vrcp.pop %v2431
    %v2594 = vrcp.pop %v2433
    %v2595 = vmul.f32 %v2501, %v2579
    %v2596 = vmul.f32 %v2506, %v2580
    %v2597 = vmul.f32 %v2511, %v2581
    %v2598 = vmul.f32 %v2516, %v2582
    %v2599 = vmul.f32 %v2521, %v2583
    %v2600 = vmul.f32 %v2526, %v2584
    %v2601 = vmul.f32 %v2531, %v2585
    %v2602 = vmul.f32 %v2536, %v2586
    %v2603 = vmul.f32 %v2541, %v2587
    %v2604 = vmul.f32 %v2546, %v2588
    %v2605 = vmul.f32 %v2551, %v2589
    %v2606 = vmul.f32 %v2556, %v2590
    %v2607 = vmul.f32 %v2561, %v2591
    %v2608 = vmul.f32 %v2566, %v2592
    %v2609 = vmul.f32 %v2571, %v2593
    %v2610 = vmul.f32 %v2576, %v2594
    %v2611 = vld [vmem:[%s6] sm:$0x1]
    %v2613 = vlaneseq
    %v2614 = vshrl.u32 %v2613, 7
    %v2615 = vsub.s32 0, %v2614
    %v2616 = vrot.slane %v2611, %v2615
    %v2618 = vadd.f32 %v2595, %v2616
    %v2619 = vadd.f32 %v2596, %v2616
    %v2620 = vadd.f32 %v2597, %v2616
    %v2621 = vadd.f32 %v2598, %v2616
    %v2622 = vadd.f32 %v2599, %v2616
    %v2623 = vadd.f32 %v2600, %v2616
    %v2624 = vadd.f32 %v2601, %v2616
    %v2625 = vadd.f32 %v2602, %v2616
    %v2626 = vadd.f32 %v2603, %v2616
    %v2627 = vadd.f32 %v2604, %v2616
    %v2628 = vadd.f32 %v2605, %v2616
    %v2629 = vadd.f32 %v2606, %v2616
    %v2630 = vadd.f32 %v2607, %v2616
    %v2631 = vadd.f32 %v2608, %v2616
    %v2632 = vadd.f32 %v2609, %v2616
    %v2633 = vadd.f32 %v2610, %v2616
    %v2634 = vld [vmem:[%s7] sm:$0xff]
    %v2635 = vld [vmem:[%s7 + $0x8] sm:$0xff]
    %v2636 = vld [vmem:[%s7 + $0x10] sm:$0xff]
    %v2637 = vld [vmem:[%s7 + $0x18] sm:$0xff]
    %v2638 = vld [vmem:[%s8] sm:$0x1]
    %v2640 = vlaneseq
    %v2641 = vshrl.u32 %v2640, 7
    %v2642 = vsub.s32 0, %v2641
    %v2643 = vrot.slane %v2638, %v2642
    %v2646 = vsel %vm283, %v2618, 0
    %v2649 = vsel %vm283, %v2619, 0
    %v2652 = vsel %vm283, %v2620, 0
    %v2655 = vsel %vm283, %v2621, 0
    %v2658 = vsel %vm283, %v2622, 0
    %v2661 = vsel %vm283, %v2623, 0
    %v2664 = vsel %vm283, %v2624, 0
    %v2667 = vsel %vm283, %v2625, 0
    %v2670 = vsel %vm283, %v2626, 0
    %v2673 = vsel %vm283, %v2627, 0
    %v2676 = vsel %vm283, %v2628, 0
    %v2679 = vsel %vm283, %v2629, 0
    %v2682 = vsel %vm283, %v2630, 0
    %v2685 = vsel %vm283, %v2631, 0
    %v2688 = vsel %vm283, %v2632, 0
    %v2691 = vsel %vm283, %v2633, 0
    %2693 = vmatprep.subr.mxu0 0.0
    %2694 = vmatpush1.msra.mxu0 0.0
    %2695 = vmatprep.subr.mxu0 0.0
    %2696 = vmatpush1.msra.mxu0 0.0
    %2697 = vmatprep.subr.mxu0 0.0
    %2698 = vmatpush1.msra.mxu0 0.0
    %2699 = vmatprep.subr.mxu0 0.0
    %2700 = vmatpush1.msra.mxu0 0.0
    %2701 = vmatprep.subr.mxu0 0.0
    %2702 = vmatpush1.msra.mxu0 0.0
    %2703 = vmatprep.subr.mxu0 0.0
    %2704 = vmatpush1.msra.mxu0 0.0
    %2705 = vmatprep.subr.mxu0 0.0
    %2706 = vmatpush1.msra.mxu0 0.0
    %2707 = vmatprep.subr.mxu0 0.0
    %2708 = vmatpush1.msra.mxu0 0.0
    %2709 = vmatprep.subr.mxu0 0.0
    %2710 = vmatpush1.msra.mxu0 0.0
    %2711 = vmatprep.subr.mxu0 0.0
    %2712 = vmatpush1.msra.mxu0 0.0
    %2713 = vmatprep.subr.mxu0 0.0
    %2714 = vmatpush1.msra.mxu0 0.0
    %2715 = vmatprep.subr.mxu0 0.0
    %2716 = vmatpush1.msra.mxu0 0.0
    %2717 = vmatprep.subr.mxu0 0.0
    %2718 = vmatpush1.msra.mxu0 %v2637
    %2719 = vmatprep.subr.mxu0 0.0
    %2720 = vmatpush1.msra.mxu0 %v2636
    %2721 = vmatprep.subr.mxu0 0.0
    %2722 = vmatpush1.msra.mxu0 %v2635
    %2723 = vmatprep.subr.mxu0 0.0
    %2724 = vmatpush1.msra.mxu0 %v2634
    %2725 = vmatprep.subr.mxu0 0.0
    %2726 = vmatpush2.msra.mxu0 0.0
    %2727 = vmatprep.subr.mxu0 0.0
    %2728 = vmatpush2.msra.mxu0 0.0
    %2729 = vmatprep.subr.mxu0 0.0
    %2730 = vmatpush2.msra.mxu0 0.0
    %2731 = vmatprep.subr.mxu0 0.0
    %2732 = vmatpush2.msra.mxu0 0.0
    %2733 = vmatprep.subr.mxu0 0.0
    %2734 = vmatpush2.msra.mxu0 0.0
    %2735 = vmatprep.subr.mxu0 0.0
    %2736 = vmatpush2.msra.mxu0 0.0
    %2737 = vmatprep.subr.mxu0 0.0
    %2738 = vmatpush2.msra.mxu0 0.0
    %2739 = vmatprep.subr.mxu0 0.0
    %2740 = vmatpush2.msra.mxu0 0.0
    %2741 = vmatprep.subr.mxu0 0.0
    %2742 = vmatpush2.msra.mxu0 0.0
    %2743 = vmatprep.subr.mxu0 0.0
    %2744 = vmatpush2.msra.mxu0 0.0
    %2745 = vmatprep.subr.mxu0 0.0
    %2746 = vmatpush2.msra.mxu0 0.0
    %2747 = vmatprep.subr.mxu0 0.0
    %2748 = vmatpush2.msra.mxu0 0.0
    %2749 = vmatprep.subr.mxu0 0.0
    %2750 = vmatpush2.msra.mxu0 0.0
    %2751 = vmatprep.subr.mxu0 0.0
    %2752 = vmatpush2.msra.mxu0 0.0
    %2753 = vmatprep.subr.mxu0 0.0
    %2754 = vmatpush2.msra.mxu0 0.0
    %2755 = vmatprep.subr.mxu0 0.0
    %2756 = vmatpush2.msra.mxu0 0.0
    %2757 = vmatprep.mubr.f32.mxu0 0.0
    %2758 = vmatmul.mubr.f32.gmra.mxu0 %v2646
    %v2759 = vpop.f32.mrf.mxu0
    %v2760 = vadd.f32 %v2643, %v2759
    %v2761 = vpop.f32.mrf.mxu0
    %2762 = vmatprep.mubr.f32.mxu0 0.0
    %2763 = vmatmul.mubr.f32.gmra.mxu0 %v2649
    %v2764 = vpop.f32.mrf.mxu0
    %v2765 = vadd.f32 %v2643, %v2764
    %v2766 = vpop.f32.mrf.mxu0
    %2767 = vmatprep.mubr.f32.mxu0 0.0
    %2768 = vmatmul.mubr.f32.gmra.mxu0 %v2652
    %v2769 = vpop.f32.mrf.mxu0
    %v2770 = vadd.f32 %v2643, %v2769
    %v2771 = vpop.f32.mrf.mxu0
    %2772 = vmatprep.mubr.f32.mxu0 0.0
    %2773 = vmatmul.mubr.f32.gmra.mxu0 %v2655
    %v2774 = vpop.f32.mrf.mxu0
    %v2775 = vadd.f32 %v2643, %v2774
    %v2776 = vpop.f32.mrf.mxu0
    %2777 = vmatprep.mubr.f32.mxu0 0.0
    %2778 = vmatmul.mubr.f32.gmra.mxu0 %v2658
    %v2779 = vpop.f32.mrf.mxu0
    %v2780 = vadd.f32 %v2643, %v2779
    %v2781 = vpop.f32.mrf.mxu0
    %2782 = vmatprep.mubr.f32.mxu0 0.0
    %2783 = vmatmul.mubr.f32.gmra.mxu0 %v2661
    %v2784 = vpop.f32.mrf.mxu0
    %v2785 = vadd.f32 %v2643, %v2784
    %v2786 = vpop.f32.mrf.mxu0
    %2787 = vmatprep.mubr.f32.mxu0 0.0
    %2788 = vmatmul.mubr.f32.gmra.mxu0 %v2664
    %v2789 = vpop.f32.mrf.mxu0
    %v2790 = vadd.f32 %v2643, %v2789
    %v2791 = vpop.f32.mrf.mxu0
    %2792 = vmatprep.mubr.f32.mxu0 0.0
    %2793 = vmatmul.mubr.f32.gmra.mxu0 %v2667
    %v2794 = vpop.f32.mrf.mxu0
    %v2795 = vadd.f32 %v2643, %v2794
    %v2796 = vpop.f32.mrf.mxu0
    %2797 = vmatprep.mubr.f32.mxu0 0.0
    %2798 = vmatmul.mubr.f32.gmra.mxu0 %v2670
    %v2799 = vpop.f32.mrf.mxu0
    %v2800 = vadd.f32 %v2643, %v2799
    %v2801 = vpop.f32.mrf.mxu0
    %2802 = vmatprep.mubr.f32.mxu0 0.0
    %2803 = vmatmul.mubr.f32.gmra.mxu0 %v2673
    %v2804 = vpop.f32.mrf.mxu0
    %v2805 = vadd.f32 %v2643, %v2804
    %v2806 = vpop.f32.mrf.mxu0
    %2807 = vmatprep.mubr.f32.mxu0 0.0
    %2808 = vmatmul.mubr.f32.gmra.mxu0 %v2676
    %v2809 = vpop.f32.mrf.mxu0
    %v2810 = vadd.f32 %v2643, %v2809
    %v2811 = vpop.f32.mrf.mxu0
    %2812 = vmatprep.mubr.f32.mxu0 0.0
    %2813 = vmatmul.mubr.f32.gmra.mxu0 %v2679
    %v2814 = vpop.f32.mrf.mxu0
    %v2815 = vadd.f32 %v2643, %v2814
    %v2816 = vpop.f32.mrf.mxu0
    %2817 = vmatprep.mubr.f32.mxu0 0.0
    %2818 = vmatmul.mubr.f32.gmra.mxu0 %v2682
    %v2819 = vpop.f32.mrf.mxu0
    %v2820 = vadd.f32 %v2643, %v2819
    %v2821 = vpop.f32.mrf.mxu0
    %2822 = vmatprep.mubr.f32.mxu0 0.0
    %2823 = vmatmul.mubr.f32.gmra.mxu0 %v2685
    %v2824 = vpop.f32.mrf.mxu0
    %v2825 = vadd.f32 %v2643, %v2824
    %v2826 = vpop.f32.mrf.mxu0
    %2827 = vmatprep.mubr.f32.mxu0 0.0
    %2828 = vmatmul.mubr.f32.gmra.mxu0 %v2688
    %v2829 = vpop.f32.mrf.mxu0
    %v2830 = vadd.f32 %v2643, %v2829
    %v2831 = vpop.f32.mrf.mxu0
    %2832 = vmatprep.mubr.f32.mxu0 0.0
    %2833 = vmatmul.mubr.f32.gmra.mxu0 %v2691
    %v2834 = vpop.f32.mrf.mxu0
    %v2835 = vadd.f32 %v2643, %v2834
    %v2836 = vpop.f32.mrf.mxu0
    %2837 = vdwg.mxu0
    %v2838 = vmax.f32 %v2760, 0.0
    %v2839 = vmax.f32 %v2765, 0.0
    %v2840 = vmax.f32 %v2770, 0.0
    %v2841 = vmax.f32 %v2775, 0.0
    %v2842 = vmax.f32 %v2780, 0.0
    %v2843 = vmax.f32 %v2785, 0.0
    %v2844 = vmax.f32 %v2790, 0.0
    %v2845 = vmax.f32 %v2795, 0.0
    %v2846 = vmax.f32 %v2800, 0.0
    %v2847 = vmax.f32 %v2805, 0.0
    %v2848 = vmax.f32 %v2810, 0.0
    %v2849 = vmax.f32 %v2815, 0.0
    %v2850 = vmax.f32 %v2820, 0.0
    %v2851 = vmax.f32 %v2825, 0.0
    %v2852 = vmax.f32 %v2830, 0.0
    %v2853 = vmax.f32 %v2835, 0.0
    %v2854 = vld [vmem:[%s9] sm:$0xff]
    %v2855 = vld [vmem:[%s9 + $0x8] sm:$0xff]
    %v2856 = vld [vmem:[%s9 + $0x10] sm:$0xff]
    %v2857 = vld [vmem:[%s9 + $0x18] sm:$0xff]
    %v2858 = vld [vmem:[%s9 + $0x20] sm:$0xff]
    %v2859 = vld [vmem:[%s9 + $0x28] sm:$0xff]
    %v2860 = vld [vmem:[%s9 + $0x30] sm:$0xff]
    %v2861 = vld [vmem:[%s9 + $0x38] sm:$0xff]
    %v2862 = vld [vmem:[%s9 + $0x40] sm:$0xff]
    %v2863 = vld [vmem:[%s9 + $0x48] sm:$0xff]
    %v2864 = vld [vmem:[%s9 + $0x50] sm:$0xff]
    %v2865 = vld [vmem:[%s9 + $0x58] sm:$0xff]
    %v2866 = vld [vmem:[%s9 + $0x60] sm:$0xff]
    %v2867 = vld [vmem:[%s9 + $0x68] sm:$0xff]
    %v2868 = vld [vmem:[%s9 + $0x70] sm:$0xff]
    %v2869 = vld [vmem:[%s9 + $0x78] sm:$0xff]
    %v2870 = vld [vmem:[%s10] sm:$0x1]
    %v2872 = vlaneseq
    %v2873 = vshrl.u32 %v2872, 7
    %v2874 = vsub.s32 0, %v2873
    %v2875 = vrot.slane %v2870, %v2874
    %2877 = vmatprep.subr.mxu0 0.0
    %2878 = vmatpush1.msra.mxu0 %v2869
    %2879 = vmatprep.subr.mxu0 0.0
    %2880 = vmatpush1.msra.mxu0 %v2868
    %2881 = vmatprep.subr.mxu0 0.0
    %2882 = vmatpush1.msra.mxu0 %v2867
    %2883 = vmatprep.subr.mxu0 0.0
    %2884 = vmatpush1.msra.mxu0 %v2866
    %2885 = vmatprep.subr.mxu0 0.0
    %2886 = vmatpush1.msra.mxu0 %v2865
    %2887 = vmatprep.subr.mxu0 0.0
    %2888 = vmatpush1.msra.mxu0 %v2864
    %2889 = vmatprep.subr.mxu0 0.0
    %2890 = vmatpush1.msra.mxu0 %v2863
    %2891 = vmatprep.subr.mxu0 0.0
    %2892 = vmatpush1.msra.mxu0 %v2862
    %2893 = vmatprep.subr.mxu0 0.0
    %2894 = vmatpush1.msra.mxu0 %v2861
    %2895 = vmatprep.subr.mxu0 0.0
    %2896 = vmatpush1.msra.mxu0 %v2860
    %2897 = vmatprep.subr.mxu0 0.0
    %2898 = vmatpush1.msra.mxu0 %v2859
    %2899 = vmatprep.subr.mxu0 0.0
    %2900 = vmatpush1.msra.mxu0 %v2858
    %2901 = vmatprep.subr.mxu0 0.0
    %2902 = vmatpush1.msra.mxu0 %v2857
    %2903 = vmatprep.subr.mxu0 0.0
    %2904 = vmatpush1.msra.mxu0 %v2856
    %2905 = vmatprep.subr.mxu0 0.0
    %2906 = vmatpush1.msra.mxu0 %v2855
    %2907 = vmatprep.subr.mxu0 0.0
    %2908 = vmatpush1.msra.mxu0 %v2854
    %2909 = vmatprep.subr.mxu0 0.0
    %2910 = vmatpush2.msra.mxu0 0.0
    %2911 = vmatprep.subr.mxu0 0.0
    %2912 = vmatpush2.msra.mxu0 0.0
    %2913 = vmatprep.subr.mxu0 0.0
    %2914 = vmatpush2.msra.mxu0 0.0
    %2915 = vmatprep.subr.mxu0 0.0
    %2916 = vmatpush2.msra.mxu0 0.0
    %2917 = vmatprep.subr.mxu0 0.0
    %2918 = vmatpush2.msra.mxu0 0.0
    %2919 = vmatprep.subr.mxu0 0.0
    %2920 = vmatpush2.msra.mxu0 0.0
    %2921 = vmatprep.subr.mxu0 0.0
    %2922 = vmatpush2.msra.mxu0 0.0
    %2923 = vmatprep.subr.mxu0 0.0
    %2924 = vmatpush2.msra.mxu0 0.0
    %2925 = vmatprep.subr.mxu0 0.0
    %2926 = vmatpush2.msra.mxu0 0.0
    %2927 = vmatprep.subr.mxu0 0.0
    %2928 = vmatpush2.msra.mxu0 0.0
    %2929 = vmatprep.subr.mxu0 0.0
    %2930 = vmatpush2.msra.mxu0 0.0
    %2931 = vmatprep.subr.mxu0 0.0
    %2932 = vmatpush2.msra.mxu0 0.0
    %2933 = vmatprep.subr.mxu0 0.0
    %2934 = vmatpush2.msra.mxu0 0.0
    %2935 = vmatprep.subr.mxu0 0.0
    %2936 = vmatpush2.msra.mxu0 0.0
    %2937 = vmatprep.subr.mxu0 0.0
    %2938 = vmatpush2.msra.mxu0 0.0
    %2939 = vmatprep.subr.mxu0 0.0
    %2940 = vmatpush2.msra.mxu0 0.0
    %2941 = vmatprep.mubr.f32.mxu0 0.0
    %2942 = vmatmul.mubr.f32.gmra.mxu0 %v2838
    %v2943 = vpop.f32.mrf.mxu0
    %v2944 = vadd.f32 %v2875, %v2943
    %v2945 = vpop.f32.mrf.mxu0
    %2946 = vmatprep.mubr.f32.mxu0 0.0
    %2947 = vmatmul.mubr.f32.gmra.mxu0 %v2839
    %v2948 = vpop.f32.mrf.mxu0
    %v2949 = vadd.f32 %v2875, %v2948
    %v2950 = vpop.f32.mrf.mxu0
    %2951 = vmatprep.mubr.f32.mxu0 0.0
    %2952 = vmatmul.mubr.f32.gmra.mxu0 %v2840
    %v2953 = vpop.f32.mrf.mxu0
    %v2954 = vadd.f32 %v2875, %v2953
    %v2955 = vpop.f32.mrf.mxu0
    %2956 = vmatprep.mubr.f32.mxu0 0.0
    %2957 = vmatmul.mubr.f32.gmra.mxu0 %v2841
    %v2958 = vpop.f32.mrf.mxu0
    %v2959 = vadd.f32 %v2875, %v2958
    %v2960 = vpop.f32.mrf.mxu0
    %2961 = vmatprep.mubr.f32.mxu0 0.0
    %2962 = vmatmul.mubr.f32.gmra.mxu0 %v2842
    %v2963 = vpop.f32.mrf.mxu0
    %v2964 = vadd.f32 %v2875, %v2963
    %v2965 = vpop.f32.mrf.mxu0
    %2966 = vmatprep.mubr.f32.mxu0 0.0
    %2967 = vmatmul.mubr.f32.gmra.mxu0 %v2843
    %v2968 = vpop.f32.mrf.mxu0
    %v2969 = vadd.f32 %v2875, %v2968
    %v2970 = vpop.f32.mrf.mxu0
    %2971 = vmatprep.mubr.f32.mxu0 0.0
    %2972 = vmatmul.mubr.f32.gmra.mxu0 %v2844
    %v2973 = vpop.f32.mrf.mxu0
    %v2974 = vadd.f32 %v2875, %v2973
    %v2975 = vpop.f32.mrf.mxu0
    %2976 = vmatprep.mubr.f32.mxu0 0.0
    %2977 = vmatmul.mubr.f32.gmra.mxu0 %v2845
    %v2978 = vpop.f32.mrf.mxu0
    %v2979 = vadd.f32 %v2875, %v2978
    %v2980 = vpop.f32.mrf.mxu0
    %2981 = vmatprep.mubr.f32.mxu0 0.0
    %2982 = vmatmul.mubr.f32.gmra.mxu0 %v2846
    %v2983 = vpop.f32.mrf.mxu0
    %v2984 = vadd.f32 %v2875, %v2983
    %v2985 = vpop.f32.mrf.mxu0
    %2986 = vmatprep.mubr.f32.mxu0 0.0
    %2987 = vmatmul.mubr.f32.gmra.mxu0 %v2847
    %v2988 = vpop.f32.mrf.mxu0
    %v2989 = vadd.f32 %v2875, %v2988
    %v2990 = vpop.f32.mrf.mxu0
    %2991 = vmatprep.mubr.f32.mxu0 0.0
    %2992 = vmatmul.mubr.f32.gmra.mxu0 %v2848
    %v2993 = vpop.f32.mrf.mxu0
    %v2994 = vadd.f32 %v2875, %v2993
    %v2995 = vpop.f32.mrf.mxu0
    %2996 = vmatprep.mubr.f32.mxu0 0.0
    %2997 = vmatmul.mubr.f32.gmra.mxu0 %v2849
    %v2998 = vpop.f32.mrf.mxu0
    %v2999 = vadd.f32 %v2875, %v2998
    %v3000 = vpop.f32.mrf.mxu0
    %3001 = vmatprep.mubr.f32.mxu0 0.0
    %3002 = vmatmul.mubr.f32.gmra.mxu0 %v2850
    %v3003 = vpop.f32.mrf.mxu0
    %v3004 = vadd.f32 %v2875, %v3003
    %v3005 = vpop.f32.mrf.mxu0
    %3006 = vmatprep.mubr.f32.mxu0 0.0
    %3007 = vmatmul.mubr.f32.gmra.mxu0 %v2851
    %v3008 = vpop.f32.mrf.mxu0
    %v3009 = vadd.f32 %v2875, %v3008
    %v3010 = vpop.f32.mrf.mxu0
    %3011 = vmatprep.mubr.f32.mxu0 0.0
    %3012 = vmatmul.mubr.f32.gmra.mxu0 %v2852
    %v3013 = vpop.f32.mrf.mxu0
    %v3014 = vadd.f32 %v2875, %v3013
    %v3015 = vpop.f32.mrf.mxu0
    %3016 = vmatprep.mubr.f32.mxu0 0.0
    %3017 = vmatmul.mubr.f32.gmra.mxu0 %v2853
    %v3018 = vpop.f32.mrf.mxu0
    %v3019 = vadd.f32 %v2875, %v3018
    %v3020 = vpop.f32.mrf.mxu0
    %3021 = vdwg.mxu0
    %v3022 = vmax.f32 %v2944, 0.0
    %v3023 = vmax.f32 %v2949, 0.0
    %v3024 = vmax.f32 %v2954, 0.0
    %v3025 = vmax.f32 %v2959, 0.0
    %v3026 = vmax.f32 %v2964, 0.0
    %v3027 = vmax.f32 %v2969, 0.0
    %v3028 = vmax.f32 %v2974, 0.0
    %v3029 = vmax.f32 %v2979, 0.0
    %v3030 = vmax.f32 %v2984, 0.0
    %v3031 = vmax.f32 %v2989, 0.0
    %v3032 = vmax.f32 %v2994, 0.0
    %v3033 = vmax.f32 %v2999, 0.0
    %v3034 = vmax.f32 %v3004, 0.0
    %v3035 = vmax.f32 %v3009, 0.0
    %v3036 = vmax.f32 %v3014, 0.0
    %v3037 = vmax.f32 %v3019, 0.0
    %v3038 = vld [vmem:[%s11] sm:$0xff]
    %v3039 = vld [vmem:[%s11 + $0x8] sm:$0xff]
    %v3040 = vld [vmem:[%s11 + $0x10] sm:$0xff]
    %v3041 = vld [vmem:[%s11 + $0x18] sm:$0xff]
    %v3042 = vld [vmem:[%s11 + $0x20] sm:$0xff]
    %v3043 = vld [vmem:[%s11 + $0x28] sm:$0xff]
    %v3044 = vld [vmem:[%s11 + $0x30] sm:$0xff]
    %v3045 = vld [vmem:[%s11 + $0x38] sm:$0xff]
    %v3046 = vld [vmem:[%s12] sm:$0x1]
    %v3048 = vlaneseq
    %v3049 = vshrl.u32 %v3048, 7
    %v3050 = vsub.s32 0, %v3049
    %v3051 = vrot.slane %v3046, %v3050
    %vm3053 = vcmask 523264
    %v3055 = vsel %vm3053, %v3022, 0
    %v3058 = vsel %vm3053, %v3023, 0
    %v3061 = vsel %vm3053, %v3024, 0
    %v3064 = vsel %vm3053, %v3025, 0
    %v3067 = vsel %vm3053, %v3026, 0
    %v3070 = vsel %vm3053, %v3027, 0
    %v3073 = vsel %vm3053, %v3028, 0
    %v3076 = vsel %vm3053, %v3029, 0
    %v3079 = vsel %vm3053, %v3030, 0
    %v3082 = vsel %vm3053, %v3031, 0
    %v3085 = vsel %vm3053, %v3032, 0
    %v3088 = vsel %vm3053, %v3033, 0
    %v3091 = vsel %vm3053, %v3034, 0
    %v3094 = vsel %vm3053, %v3035, 0
    %v3097 = vsel %vm3053, %v3036, 0
    %v3100 = vsel %vm3053, %v3037, 0
    %3102 = vmatprep.subr.mxu0 0.0
    %3103 = vmatpush1.msra.mxu0 0.0
    %3104 = vmatprep.subr.mxu0 0.0
    %3105 = vmatpush1.msra.mxu0 0.0
    %3106 = vmatprep.subr.mxu0 0.0
    %3107 = vmatpush1.msra.mxu0 0.0
    %3108 = vmatprep.subr.mxu0 0.0
    %3109 = vmatpush1.msra.mxu0 0.0
    %3110 = vmatprep.subr.mxu0 0.0
    %3111 = vmatpush1.msra.mxu0 0.0
    %3112 = vmatprep.subr.mxu0 0.0
    %3113 = vmatpush1.msra.mxu0 0.0
    %3114 = vmatprep.subr.mxu0 0.0
    %3115 = vmatpush1.msra.mxu0 0.0
    %3116 = vmatprep.subr.mxu0 0.0
    %3117 = vmatpush1.msra.mxu0 0.0
    %3118 = vmatprep.subr.mxu0 0.0
    %3119 = vmatpush1.msra.mxu0 %v3045
    %3120 = vmatprep.subr.mxu0 0.0
    %3121 = vmatpush1.msra.mxu0 %v3044
    %3122 = vmatprep.subr.mxu0 0.0
    %3123 = vmatpush1.msra.mxu0 %v3043
    %3124 = vmatprep.subr.mxu0 0.0
    %3125 = vmatpush1.msra.mxu0 %v3042
    %3126 = vmatprep.subr.mxu0 0.0
    %3127 = vmatpush1.msra.mxu0 %v3041
    %3128 = vmatprep.subr.mxu0 0.0
    %3129 = vmatpush1.msra.mxu0 %v3040
    %3130 = vmatprep.subr.mxu0 0.0
    %3131 = vmatpush1.msra.mxu0 %v3039
    %3132 = vmatprep.subr.mxu0 0.0
    %3133 = vmatpush1.msra.mxu0 %v3038
    %3134 = vmatprep.subr.mxu0 0.0
    %3135 = vmatpush2.msra.mxu0 0.0
    %3136 = vmatprep.subr.mxu0 0.0
    %3137 = vmatpush2.msra.mxu0 0.0
    %3138 = vmatprep.subr.mxu0 0.0
    %3139 = vmatpush2.msra.mxu0 0.0
    %3140 = vmatprep.subr.mxu0 0.0
    %3141 = vmatpush2.msra.mxu0 0.0
    %3142 = vmatprep.subr.mxu0 0.0
    %3143 = vmatpush2.msra.mxu0 0.0
    %3144 = vmatprep.subr.mxu0 0.0
    %3145 = vmatpush2.msra.mxu0 0.0
    %3146 = vmatprep.subr.mxu0 0.0
    %3147 = vmatpush2.msra.mxu0 0.0
    %3148 = vmatprep.subr.mxu0 0.0
    %3149 = vmatpush2.msra.mxu0 0.0
    %3150 = vmatprep.subr.mxu0 0.0
    %3151 = vmatpush2.msra.mxu0 0.0
    %3152 = vmatprep.subr.mxu0 0.0
    %3153 = vmatpush2.msra.mxu0 0.0
    %3154 = vmatprep.subr.mxu0 0.0
    %3155 = vmatpush2.msra.mxu0 0.0
    %3156 = vmatprep.subr.mxu0 0.0
    %3157 = vmatpush2.msra.mxu0 0.0
    %3158 = vmatprep.subr.mxu0 0.0
    %3159 = vmatpush2.msra.mxu0 0.0
    %3160 = vmatprep.subr.mxu0 0.0
    %3161 = vmatpush2.msra.mxu0 0.0
    %3162 = vmatprep.subr.mxu0 0.0
    %3163 = vmatpush2.msra.mxu0 0.0
    %3164 = vmatprep.subr.mxu0 0.0
    %3165 = vmatpush2.msra.mxu0 0.0
    %3166 = vmatprep.mubr.f32.mxu0 0.0
    %3167 = vmatmul.mubr.f32.gmra.mxu0 %v3055
    %v3168 = vpop.f32.mrf.mxu0
    %v3169 = vadd.f32 %v3051, %v3168
    %v3170 = vpop.f32.mrf.mxu0
    %3171 = vmatprep.mubr.f32.mxu0 0.0
    %3172 = vmatmul.mubr.f32.gmra.mxu0 %v3058
    %v3173 = vpop.f32.mrf.mxu0
    %v3174 = vadd.f32 %v3051, %v3173
    %v3175 = vpop.f32.mrf.mxu0
    %3176 = vmatprep.mubr.f32.mxu0 0.0
    %3177 = vmatmul.mubr.f32.gmra.mxu0 %v3061
    %v3178 = vpop.f32.mrf.mxu0
    %v3179 = vadd.f32 %v3051, %v3178
    %v3180 = vpop.f32.mrf.mxu0
    %3181 = vmatprep.mubr.f32.mxu0 0.0
    %3182 = vmatmul.mubr.f32.gmra.mxu0 %v3064
    %v3183 = vpop.f32.mrf.mxu0
    %v3184 = vadd.f32 %v3051, %v3183
    %v3185 = vpop.f32.mrf.mxu0
    %3186 = vmatprep.mubr.f32.mxu0 0.0
    %3187 = vmatmul.mubr.f32.gmra.mxu0 %v3067
    %v3188 = vpop.f32.mrf.mxu0
    %v3189 = vadd.f32 %v3051, %v3188
    %v3190 = vpop.f32.mrf.mxu0
    %3191 = vmatprep.mubr.f32.mxu0 0.0
    %3192 = vmatmul.mubr.f32.gmra.mxu0 %v3070
    %v3193 = vpop.f32.mrf.mxu0
    %v3194 = vadd.f32 %v3051, %v3193
    %v3195 = vpop.f32.mrf.mxu0
    %3196 = vmatprep.mubr.f32.mxu0 0.0
    %3197 = vmatmul.mubr.f32.gmra.mxu0 %v3073
    %v3198 = vpop.f32.mrf.mxu0
    %v3199 = vadd.f32 %v3051, %v3198
    %v3200 = vpop.f32.mrf.mxu0
    %3201 = vmatprep.mubr.f32.mxu0 0.0
    %3202 = vmatmul.mubr.f32.gmra.mxu0 %v3076
    %v3203 = vpop.f32.mrf.mxu0
    %v3204 = vadd.f32 %v3051, %v3203
    %v3205 = vpop.f32.mrf.mxu0
    %3206 = vmatprep.mubr.f32.mxu0 0.0
    %3207 = vmatmul.mubr.f32.gmra.mxu0 %v3079
    %v3208 = vpop.f32.mrf.mxu0
    %v3209 = vadd.f32 %v3051, %v3208
    %v3210 = vpop.f32.mrf.mxu0
    %3211 = vmatprep.mubr.f32.mxu0 0.0
    %3212 = vmatmul.mubr.f32.gmra.mxu0 %v3082
    %v3213 = vpop.f32.mrf.mxu0
    %v3214 = vadd.f32 %v3051, %v3213
    %v3215 = vpop.f32.mrf.mxu0
    %3216 = vmatprep.mubr.f32.mxu0 0.0
    %3217 = vmatmul.mubr.f32.gmra.mxu0 %v3085
    %v3218 = vpop.f32.mrf.mxu0
    %v3219 = vadd.f32 %v3051, %v3218
    %v3220 = vpop.f32.mrf.mxu0
    %3221 = vmatprep.mubr.f32.mxu0 0.0
    %3222 = vmatmul.mubr.f32.gmra.mxu0 %v3088
    %v3223 = vpop.f32.mrf.mxu0
    %v3224 = vadd.f32 %v3051, %v3223
    %v3225 = vpop.f32.mrf.mxu0
    %3226 = vmatprep.mubr.f32.mxu0 0.0
    %3227 = vmatmul.mubr.f32.gmra.mxu0 %v3091
    %v3228 = vpop.f32.mrf.mxu0
    %v3229 = vadd.f32 %v3051, %v3228
    %v3230 = vpop.f32.mrf.mxu0
    %3231 = vmatprep.mubr.f32.mxu0 0.0
    %3232 = vmatmul.mubr.f32.gmra.mxu0 %v3094
    %v3233 = vpop.f32.mrf.mxu0
    %v3234 = vadd.f32 %v3051, %v3233
    %v3235 = vpop.f32.mrf.mxu0
    %3236 = vmatprep.mubr.f32.mxu0 0.0
    %3237 = vmatmul.mubr.f32.gmra.mxu0 %v3097
    %v3238 = vpop.f32.mrf.mxu0
    %v3239 = vadd.f32 %v3051, %v3238
    %v3240 = vpop.f32.mrf.mxu0
    %3241 = vmatprep.mubr.f32.mxu0 0.0
    %3242 = vmatmul.mubr.f32.gmra.mxu0 %v3100
    %v3243 = vpop.f32.mrf.mxu0
    %v3244 = vadd.f32 %v3051, %v3243
    %v3245 = vpop.f32.mrf.mxu0
    %3246 = vdwg.mxu0
    %3247 = vst [vmem:[%s13] sm:$0xff] %v3169
    %3248 = vst [vmem:[%s13 + $0x8] sm:$0xff] %v3174
    %3249 = vst [vmem:[%s13 + $0x10] sm:$0xff] %v3179
    %3250 = vst [vmem:[%s13 + $0x18] sm:$0xff] %v3184
    %3251 = vst [vmem:[%s13 + $0x20] sm:$0xff] %v3189
    %3252 = vst [vmem:[%s13 + $0x28] sm:$0xff] %v3194
    %3253 = vst [vmem:[%s13 + $0x30] sm:$0xff] %v3199
    %3254 = vst [vmem:[%s13 + $0x38] sm:$0xff] %v3204
    %3255 = vst [vmem:[%s13 + $0x40] sm:$0xff] %v3209
    %3256 = vst [vmem:[%s13 + $0x48] sm:$0xff] %v3214
    %3257 = vst [vmem:[%s13 + $0x50] sm:$0xff] %v3219
    %3258 = vst [vmem:[%s13 + $0x58] sm:$0xff] %v3224
    %3259 = vst [vmem:[%s13 + $0x60] sm:$0xff] %v3229
    %3260 = vst [vmem:[%s13 + $0x68] sm:$0xff] %v3234
    %3261 = vst [vmem:[%s13 + $0x70] sm:$0xff] %v3239
    %3262 = vst [vmem:[%s13 + $0x78] sm:$0xff] %v3244
    %vm3263 = vmpackc.low %vm1898, %vm1897
    %vm3264 = vmpackc.low %vm1900, %vm1899
    %vm3265 = vmpackc.even %vm3264, %vm3263
    %vm3266 = vmpackc.low %vm1902, %vm1901
    %vm3267 = vmpackc.low %vm1904, %vm1903
    %vm3268 = vmpackc.even %vm3267, %vm3266
    %vm3269 = vmpackc.low %vm1906, %vm1905
    %vm3270 = vmpackc.low %vm1908, %vm1907
    %vm3271 = vmpackc.even %vm3270, %vm3269
    %vm3272 = vmpackc.low %vm1910, %vm1909
    %vm3273 = vmpackc.low %vm1912, %vm1911
    %vm3274 = vmpackc.even %vm3273, %vm3272
    %v3275 = vsel %vm3265, 16843009, 0
    %v3276 = vsel %vm3268, 16843009, 0
    %v3277 = vsel %vm3271, 16843009, 0
    %v3278 = vsel %vm3274, 16843009, 0
    %3279 = vst [vmem:[#allocation2] sm:$0xff] %v3275
    %3280 = vst [vmem:[#allocation2 + $0x8] sm:$0xff] %v3276
    %3281 = vst [vmem:[#allocation2 + $0x10] sm:$0xff] %v3277
    %3282 = vst [vmem:[#allocation2 + $0x18] sm:$0xff] %v3278
    // Predicated region
    $region54: #{dr_network_forward.1} parent=1 // pred_check
      _
    $region55: #{dr_network_forward.1} parent=1 // pred_check_branch
      %3284 = sbr.rel (0) target = $region57
    $region56: #{dr_network_forward.1} parent=1 // pred_region
      _
    $region57: #{dr_network_forward.1} parent=1 // pred_fallthru
      _
    // Predicated region
    $region58: #{dr_network_forward.1} parent=1 // pred_check
      _
    $region59: #{dr_network_forward.1} parent=1 // pred_check_branch
      %3286 = sbr.rel (0) target = $region61
    $region60: #{dr_network_forward.1} parent=1 // pred_region
      %s3288 = ssub.s32 512, 512
      %3289 = vsyncadd [#allocation3], %s3288
      %s3290 = sshll.u32 [#allocation2], 4
      %s3291 = int_to_ptr.vmem [resolvable:$true] %s3290
      %3296 = dma.vmem_to_hbm [thread:$0]  %s3291, 512, %s14, [#allocation3], 128, 128, 8
    $region61: #{dr_network_forward.1} parent=1 // pred_fallthru
      _
    // Predicated region
    $region62: #{dr_network_forward.1} parent=1 // pred_check
      _
    $region63: #{dr_network_forward.1} parent=1 // pred_check_branch
      %3298 = sbr.rel (0) target = $region65
    $region64: #{dr_network_forward.1} parent=1 // pred_region
      _
    $region65: #{dr_network_forward.1} parent=1 // pred_fallthru
      _
    // Predicated region
    $region66: #{dr_network_forward.1} parent=1 // pred_check
      _
    $region67: #{dr_network_forward.1} parent=1 // pred_check_branch
      %3300 = sbr.rel (0) target = $region69
    $region68: #{dr_network_forward.1} parent=1 // pred_region
      %3301 = dma.done [#allocation3], 512
    $region69: #{dr_network_forward.1} parent=1 // pred_fallthru
      _
    %3302 = vsyncpa [#allocation3], 1

</llo_original>
